<compile_context>
chip_gen: v6e
topology: v6e:2x2x1
jax: 0.10.0
libtpu: 0.0.40
codegen_flags: <defaults>
</compile_context>

<pallas_src>
import functools

import jax
import jax.numpy as jnp
from jax import lax
from jax.experimental import pallas as pl
from jax.experimental.pallas import tpu as pltpu


def _round_up(x, m):
    return (x + m - 1) // m * m


# ---------------------------------------------------------------------------
# Pass 1: tiled conv matmul (bf16 operands, f32 accumulation directly in the
# resident output block) + per-M-tile channel sum / sum-of-squares.
#   p_ref:     (tile_m, tile_k)  bf16 im2col patch rows
#   w_ref:     (k_pad,  c_pad)   bf16 folded weights (VMEM-resident, constant)
#   conv_ref:  (tile_m, c_pad)   f32 conv output tile (accumulator across K)
#   stats_ref: (1, 8, c_pad)     f32; row0 = sum, row1 = sum of squares
# ---------------------------------------------------------------------------
def _conv_stats_kernel(p_ref, w_ref, conv_ref, stats_ref, *, tile_k):
    k = pl.program_id(1)
    nk = pl.num_programs(1)

    koff = pl.multiple_of(k * tile_k, tile_k)
    partial = jnp.dot(p_ref[...], w_ref[pl.ds(koff, tile_k), :],
                      preferred_element_type=jnp.float32)

    @pl.when(k == 0)
    def _first():
        conv_ref[...] = partial

    @pl.when(k > 0)
    def _rest():
        conv_ref[...] += partial

    @pl.when(k == nk - 1)
    def _finalize():
        acc = conv_ref[...]
        stats_ref[0, 0:1, :] = jnp.sum(acc, axis=0, keepdims=True)
        stats_ref[0, 1:2, :] = jnp.sum(acc * acc, axis=0, keepdims=True)


# ---------------------------------------------------------------------------
# Pass 2: BN affine (precomputed global scale/shift) + ReLU over a lane-dense
# folded view (rows, fold*c_pad).
# ---------------------------------------------------------------------------
def _bn_relu_kernel(conv_ref, scale_ref, shift_ref, o_ref):
    o_ref[...] = jnp.maximum(
        conv_ref[...] * scale_ref[...] + shift_ref[...], 0.0)


def basic_conv3d(x_ncdhw, weight_oidhw, gamma, beta, *, stride, padding,
                 eps=1e-3, tile_m=2048):
    """PyTorch-convention wrapper: x NCDHW, weight OIDHW -> output NCDHW."""
    st, sh, sw = stride
    pt, ph, pw = padding

    # ---- layout glue: channels-last activations, tap-major weights ---------
    x = jnp.transpose(x_ncdhw, (0, 2, 3, 4, 1)).astype(jnp.float32)       # NDHWC
    w = jnp.transpose(weight_oidhw, (2, 3, 4, 1, 0)).astype(jnp.float32)  # (kt,kh,kw,Cin,Cout)
    kt, kh, kw, cin, cout = w.shape
    xp = jnp.pad(x, ((0, 0), (pt, pt), (ph, ph), (pw, pw), (0, 0)))

    N, Dp, Hp, Wp, _ = xp.shape
    Do = (Dp - kt) // st + 1
    Ho = (Hp - kh) // sh + 1
    Wo = (Wp - kw) // sw + 1
    M = N * Do * Ho * Wo

    # ---- im2col once in the wrapper (pre-staged patch rows) ----------------
    taps = []
    for kd in range(kt):
        for ki in range(kh):
            for kj in range(kw):
                taps.append(lax.slice(
                    xp,
                    (0, kd, ki, kj, 0),
                    (N,
                     kd + (Do - 1) * st + 1,
                     ki + (Ho - 1) * sh + 1,
                     kj + (Wo - 1) * sw + 1,
                     cin),
                    (1, st, sh, sw, 1)))
    patches = jnp.stack(taps, axis=4).reshape(M, kt * kh * kw * cin)  # (M, K_eff)
    w_mat = w.reshape(kt * kh * kw * cin, cout)                       # (K_eff, Cout)

    # ---- padded, 128-aligned problem sizes ----------------------------------
    k_eff = kt * kh * kw * cin
    # Pick tile_k minimizing K padding; tie-break toward larger tiles.
    tile_k = min((128, 256, 384, 512),
                 key=lambda t: (_round_up(k_eff, t) - k_eff, -t))
    k_pad = _round_up(k_eff, tile_k)
    k_tiles = k_pad // tile_k
    c_pad = _round_up(cout, 128)
    tile_m = min(tile_m, _round_up(M, 8))   # multiple of 8 always
    m_pad = _round_up(M, tile_m)
    m_tiles = m_pad // tile_m

    # bf16 operands: halves the dominant HBM read stream; accumulation is f32.
    patches = jnp.pad(patches.astype(jnp.bfloat16),
                      ((0, m_pad - M), (0, k_pad - k_eff)))
    w_mat = jnp.pad(w_mat.astype(jnp.bfloat16),
                    ((0, k_pad - k_eff), (0, c_pad - cout)))

    # Per-step VMEM (test shapes): ~3 MiB; worst realistic (~c_pad=512,
    # tile_k=512) ~16 MiB -- raise vmem_limit_bytes for those shapes if needed.

    # ---- pass 1: conv tiles + per-tile channel sums --------------------------
    conv_flat, stats = pl.pallas_call(
        functools.partial(_conv_stats_kernel, tile_k=tile_k),
        out_shape=(jax.ShapeDtypeStruct((m_pad, c_pad), jnp.float32),
                   jax.ShapeDtypeStruct((m_tiles, 8, c_pad), jnp.float32)),
        grid_spec=pltpu.PrefetchScalarGridSpec(
            num_scalar_prefetch=0,
            grid=(m_tiles, k_tiles),
            in_specs=[pl.BlockSpec((tile_m, tile_k), lambda i, k: (i, k)),
                      # constant block index -> weight DMA'd into VMEM once
                      pl.BlockSpec((k_pad, c_pad), lambda i, k: (0, 0))],
            out_specs=[pl.BlockSpec((tile_m, c_pad), lambda i, k: (i, 0)),
                       pl.BlockSpec((1, 8, c_pad), lambda i, k: (i, 0, 0))]),
        compiler_params=pltpu.CompilerParams(
            dimension_semantics=("parallel", "arbitrary")),
        cost_estimate=pl.CostEstimate(
            flops=2 * m_pad * k_pad * c_pad,
            transcendentals=0,
            bytes_accessed=(2 * m_pad * k_pad + 2 * k_pad * c_pad
                            + 4 * m_pad * c_pad + 4 * m_tiles * 8 * c_pad)),
    )(patches, w_mat)

    # ---- global batch statistics -> per-channel scale/shift (tiny, pure JAX)
    # Padded rows/channels contribute zeros to the sums; dividing by the true
    # count M keeps the statistics exact. (Only rows 0/1 of `stats` are used.)
    tot = jnp.sum(stats, axis=0)                           # (8, c_pad)
    mean = tot[0] / M
    var = jnp.maximum(tot[1] / M - mean * mean, 0.0)       # E[x^2]-E[x]^2 (f32)
    inv = lax.rsqrt(var + eps)
    gamma_p = jnp.pad(gamma.astype(jnp.float32), (0, c_pad - cout))
    beta_p = jnp.pad(beta.astype(jnp.float32), (0, c_pad - cout))
    scale = (gamma_p * inv).reshape(1, c_pad)
    shift = (beta_p - mean * gamma_p * inv).reshape(1, c_pad)
    # TODO(synk): BatchNorm running-stats (momentum) buffer updates are
    # training-time state mutation, not part of the forward output; not modeled.

    # ---- pass 2: BN affine + ReLU over a lane-dense folded view ---------------
    fold = max(1, min(8, 1024 // c_pad))    # in {1,2,4,8}; divides tile_m
    rows2 = m_pad // fold
    width = fold * c_pad
    tile_r = tile_m // fold
    conv2 = conv_flat.reshape(rows2, width)          # contiguous -> no HBM copy
    scale2 = jnp.tile(scale, (1, fold))
    shift2 = jnp.tile(shift, (1, fold))

    out2 = pl.pallas_call(
        _bn_relu_kernel,
        out_shape=jax.ShapeDtypeStruct((rows2, width), jnp.float32),
        grid_spec=pltpu.PrefetchScalarGridSpec(
            num_scalar_prefetch=0,
            grid=(m_tiles,),
            in_specs=[pl.BlockSpec((tile_r, width), lambda i: (i, 0)),
                      pl.BlockSpec((1, width), lambda i: (0, 0)),
                      pl.BlockSpec((1, width), lambda i: (0, 0))],
            out_specs=pl.BlockSpec((tile_r, width), lambda i: (i, 0))),
        compiler_params=pltpu.CompilerParams(
            dimension_semantics=("parallel",)),
        cost_estimate=pl.CostEstimate(
            flops=2 * m_pad * c_pad,
            transcendentals=0,
            bytes_accessed=8 * m_pad * c_pad + 8 * width),
    )(conv2, scale2, shift2)

    out = out2.reshape(m_pad, c_pad)[:M, :cout].reshape(N, Do, Ho, Wo, cout)
    return jnp.transpose(out, (0, 4, 1, 2, 3))             # back to NCDHW


def _reference(x_ncdhw, weight_oidhw, gamma, beta, *, stride, padding, eps):
    """Pure-JAX reference mirroring the PyTorch module's forward (f32)."""
    conv = lax.conv_general_dilated(
        x_ncdhw.astype(jnp.float32), weight_oidhw.astype(jnp.float32),
        window_strides=stride,
        padding=[(p, p) for p in padding],
        dimension_numbers=('NCDHW', 'OIDHW', 'NCDHW'))
    mean = conv.mean(axis=(0, 2, 3, 4), keepdims=True)
    var = ((conv - mean) ** 2).mean(axis=(0, 2, 3, 4), keepdims=True)
    g = gamma.reshape(1, -1, 1, 1, 1)
    b = beta.reshape(1, -1, 1, 1, 1)
    y = (conv - mean) * lax.rsqrt(var + eps) * g + b
    return jnp.maximum(y, 0.0)


if __name__ == "__main__":
    # Small BasicConv3d instance: in_planes=4, out_planes=8,
    # kernel_size=3, stride=1, padding=1.
    N, Cin, Cout = 2, 4, 8
    D, H, W = 8, 16, 16
    ksize, stride, padding = (3, 3, 3), (1, 1, 1), (1, 1, 1)
    eps = 1e-3

    key = jax.random.PRNGKey(0)
    kx, kw_ = jax.random.split(key)
    x = jax.random.normal(kx, (N, Cin, D, H, W), dtype=jnp.float32)
    weight = 0.1 * jax.random.normal(kw_, (Cout, Cin) + ksize, dtype=jnp.float32)
    gamma = jnp.ones((Cout,), jnp.float32)    # BatchNorm3d affine defaults
    beta = jnp.zeros((Cout,), jnp.float32)

    out = basic_conv3d(x, weight, gamma, beta,
                       stride=stride, padding=padding, eps=eps)
    out = jax.block_until_ready(out)

    ref = _reference(x, weight, gamma, beta,
                     stride=stride, padding=padding, eps=eps)
    assert out.shape == ref.shape, (out.shape, ref.shape)
    # bf16 matmul operands (f32 accumulation) -> ~1e-2-scale deviation vs f32 ref.
    if not jnp.allclose(out, ref, atol=3e-2, rtol=3e-2):
        max_err = float(jnp.max(jnp.abs(out - ref)))
        raise AssertionError(f"mismatch vs reference, max abs err={max_err}")

    print("KERNEL_OK")
</pallas_src>

<mosaic_0001>
module attributes {stable_mosaic.version = 11 : i64} {
  func.func @_conv_stats_kernel(%arg0: i32, %arg1: i32, %arg2: memref<2048x128xbf16, #tpu.memory_space<vmem>>, %arg3: memref<128x128xbf16, #tpu.memory_space<vmem>>, %arg4: memref<2048x128xf32, #tpu.memory_space<vmem>>, %arg5: memref<1x8x128xf32, #tpu.memory_space<vmem>>) attributes {dimension_semantics = [#tpu.dimension_semantics<parallel>, #tpu.dimension_semantics<arbitrary>], iteration_bounds = array<i64: 2, 1>, scalar_prefetch = 0 : i64, scratch_operands = 0 : i64, tpu.core_type = #tpu.core_type<tc>, window_params = [{transform_indices = @transform_0, window_bounds = array<i64: 2048, 128>}, {pipeline_mode = #tpu.pipeline_mode<synchronous>, transform_indices = @transform_1, window_bounds = array<i64: 128, 128>}, {transform_indices = @transform_2, window_bounds = array<i64: 2048, 128>}, {transform_indices = @transform_3, window_bounds = array<i64: 1, 8, 128>}]} {
    %c128_i32 = arith.constant 128 : i32
    %0 = arith.muli %arg1, %c128_i32 : i32
    %1 = tpu.assume_multiple %0, 128 : i32
    %c0 = arith.constant 0 : index
    %c0_0 = arith.constant 0 : index
    %2 = vector.load %arg2[%c0, %c0_0] : memref<2048x128xbf16, #tpu.memory_space<vmem>>, vector<2048x128xbf16>
    %3 = arith.index_cast %1 : i32 to index
    %c0_1 = arith.constant 0 : index
    %4 = vector.load %arg3[%3, %c0_1] : memref<128x128xbf16, #tpu.memory_space<vmem>>, vector<128x128xbf16>
    %cst = arith.constant dense<0.000000e+00> : vector<2048x128xf32>
    %5 = tpu.matmul %2, %4, %cst {dimension_numbers = #tpu.dot_dimension_numbers<[1], [0], [0], [1], [0, 0, 1, 1], [], []>} : vector<2048x128xbf16>, vector<128x128xbf16>, vector<2048x128xf32> -> vector<2048x128xf32>
    %c0_i32 = arith.constant 0 : i32
    %6 = arith.cmpi eq, %arg1, %c0_i32 : i32
    %7 = arith.extui %6 : i1 to i32
    %c0_i32_2 = arith.constant 0 : i32
    %8 = arith.cmpi ne, %7, %c0_i32_2 : i32
    scf.if %8 {
      %c0_7 = arith.constant 0 : index
      %c0_8 = arith.constant 0 : index
      %15 = vector.load %arg4[%c0_7, %c0_8] : memref<2048x128xf32, #tpu.memory_space<vmem>>, vector<2048x128xf32>
      tpu.vector_store %arg4[%c0_7, %c0_8], %5 {strides = array<i32>} : memref<2048x128xf32, #tpu.memory_space<vmem>>, vector<2048x128xf32>,
    } else {
    }
    %c0_i32_3 = arith.constant 0 : i32
    %9 = arith.cmpi sgt, %arg1, %c0_i32_3 : i32
    %10 = arith.extui %9 : i1 to i32
    %c0_i32_4 = arith.constant 0 : i32
    %11 = arith.cmpi ne, %10, %c0_i32_4 : i32
    scf.if %11 {
      %c0_7 = arith.constant 0 : index
      %c0_8 = arith.constant 0 : index
      %15 = vector.load %arg4[%c0_7, %c0_8] : memref<2048x128xf32, #tpu.memory_space<vmem>>, vector<2048x128xf32>
      %16 = arith.addf %15, %5 : vector<2048x128xf32>
      %c0_9 = arith.constant 0 : index
      %c0_10 = arith.constant 0 : index
      %17 = vector.load %arg4[%c0_9, %c0_10] : memref<2048x128xf32, #tpu.memory_space<vmem>>, vector<2048x128xf32>
      tpu.vector_store %arg4[%c0_9, %c0_10], %16 {strides = array<i32>} : memref<2048x128xf32, #tpu.memory_space<vmem>>, vector<2048x128xf32>,
    } else {
    }
    %c0_i32_5 = arith.constant 0 : i32
    %12 = arith.cmpi eq, %arg1, %c0_i32_5 : i32
    %13 = arith.extui %12 : i1 to i32
    %c0_i32_6 = arith.constant 0 : i32
    %14 = arith.cmpi ne, %13, %c0_i32_6 : i32
    scf.if %14 {
      %c0_7 = arith.constant 0 : index
      %c0_8 = arith.constant 0 : index
      %15 = vector.load %arg4[%c0_7, %c0_8] : memref<2048x128xf32, #tpu.memory_space<vmem>>, vector<2048x128xf32>
      %cst_9 = arith.constant dense<0.000000e+00> : vector<128xf32>
      %16 = vector.multi_reduction <add>, %15, %cst_9 [0] : vector<2048x128xf32> to vector<128xf32>
      %17 = vector.shape_cast %16 : vector<128xf32> to vector<1x128xf32>
      %c0_10 = arith.constant 0 : index
      %c0_11 = arith.constant 0 : index
      %c0_12 = arith.constant 0 : index
      %18 = vector.load %arg5[%c0_10, %c0_11, %c0_12] : memref<1x8x128xf32, #tpu.memory_space<vmem>>, vector<1x1x128xf32>
      %19 = vector.shape_cast %18 : vector<1x1x128xf32> to vector<1x128xf32>
      %20 = vector.shape_cast %17 : vector<1x128xf32> to vector<1x1x128xf32>
      tpu.vector_store %arg5[%c0_10, %c0_11, %c0_12], %20 {strides = array<i32>} : memref<1x8x128xf32, #tpu.memory_space<vmem>>, vector<1x1x128xf32>,
      %21 = arith.mulf %15, %15 : vector<2048x128xf32>
      %cst_13 = arith.constant dense<0.000000e+00> : vector<128xf32>
      %22 = vector.multi_reduction <add>, %21, %cst_13 [0] : vector<2048x128xf32> to vector<128xf32>
      %23 = vector.shape_cast %22 : vector<128xf32> to vector<1x128xf32>
      %c0_14 = arith.constant 0 : index
      %c1 = arith.constant 1 : index
      %c0_15 = arith.constant 0 : index
      %24 = vector.load %arg5[%c0_14, %c1, %c0_15] : memref<1x8x128xf32, #tpu.memory_space<vmem>>, vector<1x1x128xf32>
      %25 = vector.shape_cast %24 : vector<1x1x128xf32> to vector<1x128xf32>
      %26 = vector.shape_cast %23 : vector<1x128xf32> to vector<1x1x128xf32>
      tpu.vector_store %arg5[%c0_14, %c1, %c0_15], %26 {strides = array<i32>} : memref<1x8x128xf32, #tpu.memory_space<vmem>>, vector<1x1x128xf32>,
    } else {
    }
    return
  }
  func.func @transform_0(%arg0: i32, %arg1: i32) -> (i32, i32) {
    %c0_i32 = arith.constant 0 : i32
    return %arg0, %arg1 : i32, i32
  }
  func.func @transform_1(%arg0: i32, %arg1: i32) -> (i32, i32) {
    %c0_i32 = arith.constant 0 : i32
    %c0_i32_0 = arith.constant 0 : i32
    %c0_i32_1 = arith.constant 0 : i32
    return %c0_i32, %c0_i32_0 : i32, i32
  }
  func.func @transform_2(%arg0: i32, %arg1: i32) -> (i32, i32) {
    %c0_i32 = arith.constant 0 : i32
    %c0_i32_0 = arith.constant 0 : i32
    return %arg0, %c0_i32 : i32, i32
  }
  func.func @transform_3(%arg0: i32, %arg1: i32) -> (i32, i32, i32) {
    %c0_i32 = arith.constant 0 : i32
    %c0_i32_0 = arith.constant 0 : i32
    %c0_i32_1 = arith.constant 0 : i32
    return %arg0, %c0_i32, %c0_i32_0 : i32, i32, i32
  }
}

</mosaic_0001>

<llo_original>
// kernel: tpu_custom_call.1
$region0: #{tpu_custom_call.1}
  #allocation0 [shape = 'u32[]', space=smem, size = 0x4, offset = 0x4, fixed_abs, tag = 'smem constant byte address 0x4 - core index']
  #allocation1 [shape = 'u32[144,128]{1,0:T(1,128)}', space=vmem, size = 0x12000, scoped, tag = 'internal scratch']
  %s0 = inlined_call_operand.hbm [shape: bf16[4096,128], index: 0, kind: input, shape index: {}]
  %s1 = inlined_call_operand.hbm [shape: bf16[128,128], index: 1, kind: input, shape index: {}]
  %s2 = inlined_call_operand.hbm [shape: f32[4096,128], index: 2, kind: output, shape index: {0}]
  %s3 = inlined_call_operand.hbm [shape: f32[2,8,128], index: 3, kind: output, shape index: {1}]
  %4 = xla_tuple %s2, %s3
  %s5 = sld [smem:[#allocation0]]
  $region69: #{tpu_custom_call.1} parent=0
    _
  %s7 = ssub.s32 1, %s5
  %s8 = scalar_select 0, %s7, %s5
  $region1: #{tpu_custom_call.1} parent=0
    #allocation2 [shape = 'u8[1048576]{0}', space=vmem, size = 0x100000, scoped, tag = 'input window, operand 0']
    #allocation3 [shape = 's32[2]{0}', space=sflag, size = 0x8, scoped, tag = 'scoped memory for tpu_custom_call.1']
    #allocation4 [shape = 's32[2]{0}', space=sflag, size = 0x8, scoped, tag = 'scoped memory for tpu_custom_call.1']
    #allocation5 [shape = 'u8[32768]{0}', space=vmem, size = 0x8000, scoped, tag = 'input window, operand 1, single buffered']
    #allocation6 [shape = 's32[1]{0}', space=sflag, size = 0x4, scoped, tag = 'scoped memory for tpu_custom_call.1']
    #allocation7 [shape = 'u8[2097152]{0}', space=vmem, size = 0x200000, scoped, tag = 'output window, operand 0']
    #allocation8 [shape = 'u8[8192]{0}', space=vmem, size = 0x2000, scoped, tag = 'output window, operand 1']
    #allocation9 [shape = 's32[2]{0}', space=sflag, size = 0x8, scoped, tag = 'scoped memory for tpu_custom_call.1']
    %9 = vsyncpa [#allocation3], 0
    %s10 = scalar_lea.sflag [#allocation3], 1
    %11 = vsyncpa %s10, 0
    %12 = vsyncpa [#allocation6], 0
    %13 = vsyncpa [#allocation4], 0
    %s14 = scalar_lea.sflag [#allocation4], 1
    %15 = vsyncpa %s14, 0
    %16 = vsyncpa [#allocation9], 0
    %s17 = scalar_lea.sflag [#allocation9], 1
    %18 = vsyncpa %s17, 0
    loop: start=0, step=1, limit=4
    $region2: #{tpu_custom_call.1} parent=1 // loop_pre_header
      _
    $region3: #{tpu_custom_call.1} parent=1 // loop_header
      %s20 = sphi 0, %s24
      %p21 = scmp.ge.s32.totalorder %s20, 4
      %s27 = sphi 0, %s39
      %s28 = sphi 0, %s35
      %s29 = sphi 0, %s27
      %s30 = sphi 0, %s28
      %s31 = sphi 0, %s29
      %s32 = sphi 0, %s30
      %s44 = sphi 0, %s46
      %s47 = sphi 0, %s44
      %s48 = sphi 0, %s47
      %s64 = sphi 0, %s48
      %s68 = sphi 0, %s68
      %s70 = sphi 0, %s68
      %s71 = sphi 0, %s70
      %s85 = sphi 0, %s71
      %s91 = sphi 0, %s93
      %s94 = sphi 0, %s91
      %s95 = sphi 0, %s94
      %s111 = sphi 0, %s95
      %s117 = sphi 0, %s119
      %s120 = sphi 0, %s117
      %s121 = sphi 0, %s120
      %s137 = sphi 0, %s121
    $region4: #{tpu_custom_call.1} parent=1 // loop_header_branch
      %23 = sbr.rel (%p21) target = $region8
    $region5: #{tpu_custom_call.1} parent=1 // loop_body
      %s25 = ssub.s32 %s20, 1
      %s26 = ssub.s32 %s20, 2
      %s33 = sadd.s32 1, %s28
      %p34 = scmp.ge.s32.totalorder %s33, 1
      %s35 = scalar_select %p34, 0, %s33
      %s36 = sadd.s32 1, %s27
      %s37 = scalar_select %p34, %s36, %s27
      %p38 = scmp.ge.s32.totalorder %s37, 2
      %s39 = scalar_select %p38, 0, %s37
      %s40 = ssub.s32 %s27, %s39
      %s41 = ssub.s32 %s28, %s35
      %s42 = sor.u32 %s40, %s41
      %p43 = scmp.eq.s32.totalorder %s42, 0
      %s45 = sadd.s32 %s44, 1
      %s46 = scalar_select %p43, %s44, %s45
      %p49 = pneg %p43
      %p50 = scmp.eq.s32.totalorder %s20, 1
      %p51 = por %p49, %p50
      %p52 = scmp.ne.s32.totalorder %s44, %s47
      %p53 = scmp.eq.s32.totalorder %s20, 0
      %p54 = por %p52, %p53
      %p55 = scmp.ne.s32.totalorder %s44, %s47
      %p56 = scmp.eq.s32.totalorder %s25, 1
      %p57 = por %p55, %p56
      %p58 = scmp.ne.s32.totalorder %s47, %s48
      %p59 = scmp.eq.s32.totalorder %s25, 0
      %p60 = por %p58, %p59
      %p61 = scmp.ne.s32.totalorder %s47, %s48
      %p62 = scmp.eq.s32.totalorder %s26, 1
      %p63 = por %p61, %p62
      %p65 = scmp.ne.s32.totalorder %s48, %s64
      %p66 = scmp.eq.s32.totalorder %s26, 0
      %p67 = por %p65, %p66
      %s69 = sadd.s32 %s68, 1
      %p72 = scmp.eq.s32.totalorder %s20, 1
      %p73 = scmp.ne.s32.totalorder %s68, %s70
      %p74 = scmp.eq.s32.totalorder %s20, 0
      %p75 = por %p73, %p74
      %p76 = scmp.ne.s32.totalorder %s68, %s70
      %p77 = scmp.eq.s32.totalorder %s25, 1
      %p78 = por %p76, %p77
      %p79 = scmp.ne.s32.totalorder %s70, %s71
      %p80 = scmp.eq.s32.totalorder %s25, 0
      %p81 = por %p79, %p80
      %p82 = scmp.ne.s32.totalorder %s70, %s71
      %p83 = scmp.eq.s32.totalorder %s26, 1
      %p84 = por %p82, %p83
      %p86 = scmp.ne.s32.totalorder %s71, %s85
      %p87 = scmp.eq.s32.totalorder %s26, 0
      %p88 = por %p86, %p87
      %s89 = ssub.s32 %s27, %s39
      %p90 = scmp.eq.s32.totalorder %s89, 0
      %s92 = sadd.s32 %s91, 1
      %s93 = scalar_select %p90, %s91, %s92
      %p96 = pneg %p90
      %p97 = scmp.eq.s32.totalorder %s20, 1
      %p98 = por %p96, %p97
      %p99 = scmp.ne.s32.totalorder %s91, %s94
      %p100 = scmp.eq.s32.totalorder %s20, 0
      %p101 = por %p99, %p100
      %p102 = scmp.ne.s32.totalorder %s91, %s94
      %p103 = scmp.eq.s32.totalorder %s25, 1
      %p104 = por %p102, %p103
      %p105 = scmp.ne.s32.totalorder %s94, %s95
      %p106 = scmp.eq.s32.totalorder %s25, 0
      %p107 = por %p105, %p106
      %p108 = scmp.ne.s32.totalorder %s94, %s95
      %p109 = scmp.eq.s32.totalorder %s26, 1
      %p110 = por %p108, %p109
      %p112 = scmp.ne.s32.totalorder %s95, %s111
      %p113 = scmp.eq.s32.totalorder %s26, 0
      %p114 = por %p112, %p113
      %s115 = ssub.s32 %s27, %s39
      %p116 = scmp.eq.s32.totalorder %s115, 0
      %s118 = sadd.s32 %s117, 1
      %s119 = scalar_select %p116, %s117, %s118
      %p122 = pneg %p116
      %p123 = scmp.eq.s32.totalorder %s20, 1
      %p124 = por %p122, %p123
      %p125 = scmp.ne.s32.totalorder %s117, %s120
      %p126 = scmp.eq.s32.totalorder %s20, 0
      %p127 = por %p125, %p126
      %p128 = scmp.ne.s32.totalorder %s117, %s120
      %p129 = scmp.eq.s32.totalorder %s25, 1
      %p130 = por %p128, %p129
      %p131 = scmp.ne.s32.totalorder %s120, %s121
      %p132 = scmp.eq.s32.totalorder %s25, 0
      %p133 = por %p131, %p132
      %p134 = scmp.ne.s32.totalorder %s120, %s121
      %p135 = scmp.eq.s32.totalorder %s26, 1
      %p136 = por %p134, %p135
      %p138 = scmp.ne.s32.totalorder %s121, %s137
      %p139 = scmp.eq.s32.totalorder %s26, 0
      %p140 = por %p138, %p139
      %p141 = scmp.le.s32.totalorder 1, %s20
      %p142 = scmp.lt.s32.totalorder %s20, 3
      %p143 = pnand %p141, %p142
      %p144 = pneg %p143
      // Predicated region
      $region9: #{tpu_custom_call.1} parent=5 // pred_check
        _
      $region10: #{tpu_custom_call.1} parent=5 // pred_check_branch
        %146 = sbr.rel (%p143) target = $region12
      $region11: #{tpu_custom_call.1} parent=5 // pred_region
        %s147 = ssub.s32 %s20, 1
        // Predicated region
        $region13: #{tpu_custom_call.1} parent=11 // pred_check
          %p148 = pneg %p81
        $region14: #{tpu_custom_call.1} parent=11 // pred_check_branch
          %150 = sbr.rel (%p148) target = $region16
        $region15: #{tpu_custom_call.1} parent=11 // pred_region
          %s152 = ssub.s32 1024, 1024
          %153 = vsyncadd [#allocation6], %s152
          %s154 = sshll.u32 [#allocation5], 4
          %s155 = int_to_ptr.vmem [resolvable:$true] %s154
          %160 = dma.hbm_to_vmem [thread:$0]  %s1, 1024, %s155, [#allocation6], 64, 64, 4
        $region16: #{tpu_custom_call.1} parent=11 // pred_fallthru
          _
      $region12: #{tpu_custom_call.1} parent=5 // pred_fallthru
        _
      %p161 = scmp.lt.s32.totalorder %s20, 2
      // Predicated region
      $region17: #{tpu_custom_call.1} parent=5 // pred_check
        %p162 = pneg %p161
      $region18: #{tpu_custom_call.1} parent=5 // pred_check_branch
        %164 = sbr.rel (%p162) target = $region20
      $region19: #{tpu_custom_call.1} parent=5 // pred_region
        // Predicated region
        $region21: #{tpu_custom_call.1} parent=19 // pred_check
          %p165 = pneg %p54
        $region22: #{tpu_custom_call.1} parent=19 // pred_check_branch
          %167 = sbr.rel (%p165) target = $region24
        $region23: #{tpu_custom_call.1} parent=19 // pred_region
          %s168 = sand.u32 %s44, 1
          %s169 = scalar_lea.sflag [#allocation3], %s168
          %s170 = sand.u32 %s44, 1
          %s171 = smul.addr %s170, 1024
          %s172 = scalar_lea.vmem [#allocation2], %s171
          %s173 = smul.u32 256, %s27
          %s175 = ssub.s32 16384, 16384
          %176 = vsyncadd %s169, %s175
          %s177 = sadd.s32 %s28, %s173
          %s178 = smul.addr %s177, 64
          %s179 = scalar_lea.hbm %s0, %s178
          %s180 = sshll.u32 %s172, 4
          %s181 = int_to_ptr.vmem [resolvable:$true] %s180
          %186 = dma.hbm_to_vmem [thread:$0]  %s179, 16384, %s181, %s169, 64, 64, 4
        $region24: #{tpu_custom_call.1} parent=19 // pred_fallthru
          _
      $region20: #{tpu_custom_call.1} parent=5 // pred_fallthru
        _
      %p187 = scmp.le.s32.totalorder 1, %s20
      %p188 = scmp.lt.s32.totalorder %s20, 3
      %p189 = pnand %p187, %p188
      %p190 = pneg %p189
      // Predicated region
      $region25: #{tpu_custom_call.1} parent=5 // pred_check
        _
      $region26: #{tpu_custom_call.1} parent=5 // pred_check_branch
        %192 = sbr.rel (%p189) target = $region28
      $region27: #{tpu_custom_call.1} parent=5 // pred_region
        %s193 = ssub.s32 %s20, 1
        %s194 = sand.u32 %s47, 1
        %s195 = scalar_lea.sflag [#allocation3], %s194
        %s196 = sand.u32 %s47, 1
        %s197 = smul.addr %s196, 1024
        %s198 = scalar_lea.vmem [#allocation2], %s197
        // Predicated region
        $region29: #{tpu_custom_call.1} parent=27 // pred_check
          %p199 = pneg %p60
        $region30: #{tpu_custom_call.1} parent=27 // pred_check_branch
          %201 = sbr.rel (%p199) target = $region32
        $region31: #{tpu_custom_call.1} parent=27 // pred_region
          %202 = dma.done %s195, 16384
        $region32: #{tpu_custom_call.1} parent=27 // pred_fallthru
          _
        // Predicated region
        $region33: #{tpu_custom_call.1} parent=27 // pred_check
          %p203 = pneg %p81
        $region34: #{tpu_custom_call.1} parent=27 // pred_check_branch
          %205 = sbr.rel (%p203) target = $region36
        $region35: #{tpu_custom_call.1} parent=27 // pred_region
          %206 = dma.done [#allocation6], 1024
        $region36: #{tpu_custom_call.1} parent=27 // pred_fallthru
          _
        %s207 = sand.u32 %s47, 1
        %s208 = scalar_lea.sflag [#allocation3], %s207
        %s209 = sand.u32 %s47, 1
        %s210 = smul.addr %s209, 1024
        %s211 = scalar_lea.vmem [#allocation2], %s210
        %p212 = pneg %p60
        %p213 = pneg %p57
        %p214 = pneg %p81
        %p215 = pneg %p78
        %p216 = pneg %p107
        %p217 = pneg %p104
        %s218 = sand.u32 %s94, 1
        %s219 = scalar_lea.sflag [#allocation4], %s218
        %s220 = sand.u32 %s94, 1
        %s221 = smul.addr %s220, 2048
        %s222 = scalar_lea.vmem [#allocation7], %s221
        %p223 = pneg %p133
        %p224 = pneg %p130
        %s225 = sand.u32 %s120, 1
        %s226 = scalar_lea.sflag [#allocation9], %s225
        %s227 = sand.u32 %s120, 1
        %s228 = smul.addr %s227, 8
        %s229 = scalar_lea.vmem [#allocation8], %s228
        %s230 = smul.u32 256, %s29
        %s231 = smul.u32 256, %s29
        %s233 = smul.u32 %s30, 128
        %v234 = vld [vmem:[%s198] sm:$0xf]
        %v235 = vld [vmem:[%s198 + $0x4] sm:$0xf]
        %v236 = vld [vmem:[%s198 + $0x8] sm:$0xf]
        %v237 = vld [vmem:[%s198 + $0xc] sm:$0xf]
        %v238 = vld [vmem:[%s198 + $0x10] sm:$0xf]
        %v239 = vld [vmem:[%s198 + $0x14] sm:$0xf]
        %v240 = vld [vmem:[%s198 + $0x18] sm:$0xf]
        %v241 = vld [vmem:[%s198 + $0x1c] sm:$0xf]
        %v242 = vld [vmem:[%s198 + $0x20] sm:$0xf]
        %v243 = vld [vmem:[%s198 + $0x24] sm:$0xf]
        %v244 = vld [vmem:[%s198 + $0x28] sm:$0xf]
        %v245 = vld [vmem:[%s198 + $0x2c] sm:$0xf]
        %v246 = vld [vmem:[%s198 + $0x30] sm:$0xf]
        %v247 = vld [vmem:[%s198 + $0x34] sm:$0xf]
        %v248 = vld [vmem:[%s198 + $0x38] sm:$0xf]
        %v249 = vld [vmem:[%s198 + $0x3c] sm:$0xf]
        %v250 = vld [vmem:[%s198 + $0x40] sm:$0xf]
        %v251 = vld [vmem:[%s198 + $0x44] sm:$0xf]
        %v252 = vld [vmem:[%s198 + $0x48] sm:$0xf]
        %v253 = vld [vmem:[%s198 + $0x4c] sm:$0xf]
        %v254 = vld [vmem:[%s198 + $0x50] sm:$0xf]
        %v255 = vld [vmem:[%s198 + $0x54] sm:$0xf]
        %v256 = vld [vmem:[%s198 + $0x58] sm:$0xf]
        %v257 = vld [vmem:[%s198 + $0x5c] sm:$0xf]
        %v258 = vld [vmem:[%s198 + $0x60] sm:$0xf]
        %v259 = vld [vmem:[%s198 + $0x64] sm:$0xf]
        %v260 = vld [vmem:[%s198 + $0x68] sm:$0xf]
        %v261 = vld [vmem:[%s198 + $0x6c] sm:$0xf]
        %v262 = vld [vmem:[%s198 + $0x70] sm:$0xf]
        %v263 = vld [vmem:[%s198 + $0x74] sm:$0xf]
        %v264 = vld [vmem:[%s198 + $0x78] sm:$0xf]
        %v265 = vld [vmem:[%s198 + $0x7c] sm:$0xf]
        %v266 = vld [vmem:[%s198 + $0x80] sm:$0xf]
        %v267 = vld [vmem:[%s198 + $0x84] sm:$0xf]
        %v268 = vld [vmem:[%s198 + $0x88] sm:$0xf]
        %v269 = vld [vmem:[%s198 + $0x8c] sm:$0xf]
        %v270 = vld [vmem:[%s198 + $0x90] sm:$0xf]
        %v271 = vld [vmem:[%s198 + $0x94] sm:$0xf]
        %v272 = vld [vmem:[%s198 + $0x98] sm:$0xf]
        %v273 = vld [vmem:[%s198 + $0x9c] sm:$0xf]
        %v274 = vld [vmem:[%s198 + $0xa0] sm:$0xf]
        %v275 = vld [vmem:[%s198 + $0xa4] sm:$0xf]
        %v276 = vld [vmem:[%s198 + $0xa8] sm:$0xf]
        %v277 = vld [vmem:[%s198 + $0xac] sm:$0xf]
        %v278 = vld [vmem:[%s198 + $0xb0] sm:$0xf]
        %v279 = vld [vmem:[%s198 + $0xb4] sm:$0xf]
        %v280 = vld [vmem:[%s198 + $0xb8] sm:$0xf]
        %v281 = vld [vmem:[%s198 + $0xbc] sm:$0xf]
        %v282 = vld [vmem:[%s198 + $0xc0] sm:$0xf]
        %v283 = vld [vmem:[%s198 + $0xc4] sm:$0xf]
        %v284 = vld [vmem:[%s198 + $0xc8] sm:$0xf]
        %v285 = vld [vmem:[%s198 + $0xcc] sm:$0xf]
        %v286 = vld [vmem:[%s198 + $0xd0] sm:$0xf]
        %v287 = vld [vmem:[%s198 + $0xd4] sm:$0xf]
        %v288 = vld [vmem:[%s198 + $0xd8] sm:$0xf]
        %v289 = vld [vmem:[%s198 + $0xdc] sm:$0xf]
        %v290 = vld [vmem:[%s198 + $0xe0] sm:$0xf]
        %v291 = vld [vmem:[%s198 + $0xe4] sm:$0xf]
        %v292 = vld [vmem:[%s198 + $0xe8] sm:$0xf]
        %v293 = vld [vmem:[%s198 + $0xec] sm:$0xf]
        %v294 = vld [vmem:[%s198 + $0xf0] sm:$0xf]
        %v295 = vld [vmem:[%s198 + $0xf4] sm:$0xf]
        %v296 = vld [vmem:[%s198 + $0xf8] sm:$0xf]
        %v297 = vld [vmem:[%s198 + $0xfc] sm:$0xf]
        %v298 = vld [vmem:[%s198 + $0x100] sm:$0xf]
        %v299 = vld [vmem:[%s198 + $0x104] sm:$0xf]
        %v300 = vld [vmem:[%s198 + $0x108] sm:$0xf]
        %v301 = vld [vmem:[%s198 + $0x10c] sm:$0xf]
        %v302 = vld [vmem:[%s198 + $0x110] sm:$0xf]
        %v303 = vld [vmem:[%s198 + $0x114] sm:$0xf]
        %v304 = vld [vmem:[%s198 + $0x118] sm:$0xf]
        %v305 = vld [vmem:[%s198 + $0x11c] sm:$0xf]
        %v306 = vld [vmem:[%s198 + $0x120] sm:$0xf]
        %v307 = vld [vmem:[%s198 + $0x124] sm:$0xf]
        %v308 = vld [vmem:[%s198 + $0x128] sm:$0xf]
        %v309 = vld [vmem:[%s198 + $0x12c] sm:$0xf]
        %v310 = vld [vmem:[%s198 + $0x130] sm:$0xf]
        %v311 = vld [vmem:[%s198 + $0x134] sm:$0xf]
        %v312 = vld [vmem:[%s198 + $0x138] sm:$0xf]
        %v313 = vld [vmem:[%s198 + $0x13c] sm:$0xf]
        %v314 = vld [vmem:[%s198 + $0x140] sm:$0xf]
        %v315 = vld [vmem:[%s198 + $0x144] sm:$0xf]
        %v316 = vld [vmem:[%s198 + $0x148] sm:$0xf]
        %v317 = vld [vmem:[%s198 + $0x14c] sm:$0xf]
        %v318 = vld [vmem:[%s198 + $0x150] sm:$0xf]
        %v319 = vld [vmem:[%s198 + $0x154] sm:$0xf]
        %v320 = vld [vmem:[%s198 + $0x158] sm:$0xf]
        %v321 = vld [vmem:[%s198 + $0x15c] sm:$0xf]
        %v322 = vld [vmem:[%s198 + $0x160] sm:$0xf]
        %v323 = vld [vmem:[%s198 + $0x164] sm:$0xf]
        %v324 = vld [vmem:[%s198 + $0x168] sm:$0xf]
        %v325 = vld [vmem:[%s198 + $0x16c] sm:$0xf]
        %v326 = vld [vmem:[%s198 + $0x170] sm:$0xf]
        %v327 = vld [vmem:[%s198 + $0x174] sm:$0xf]
        %v328 = vld [vmem:[%s198 + $0x178] sm:$0xf]
        %v329 = vld [vmem:[%s198 + $0x17c] sm:$0xf]
        %v330 = vld [vmem:[%s198 + $0x180] sm:$0xf]
        %v331 = vld [vmem:[%s198 + $0x184] sm:$0xf]
        %v332 = vld [vmem:[%s198 + $0x188] sm:$0xf]
        %v333 = vld [vmem:[%s198 + $0x18c] sm:$0xf]
        %v334 = vld [vmem:[%s198 + $0x190] sm:$0xf]
        %v335 = vld [vmem:[%s198 + $0x194] sm:$0xf]
        %v336 = vld [vmem:[%s198 + $0x198] sm:$0xf]
        %v337 = vld [vmem:[%s198 + $0x19c] sm:$0xf]
        %v338 = vld [vmem:[%s198 + $0x1a0] sm:$0xf]
        %v339 = vld [vmem:[%s198 + $0x1a4] sm:$0xf]
        %v340 = vld [vmem:[%s198 + $0x1a8] sm:$0xf]
        %v341 = vld [vmem:[%s198 + $0x1ac] sm:$0xf]
        %v342 = vld [vmem:[%s198 + $0x1b0] sm:$0xf]
        %v343 = vld [vmem:[%s198 + $0x1b4] sm:$0xf]
        %v344 = vld [vmem:[%s198 + $0x1b8] sm:$0xf]
        %v345 = vld [vmem:[%s198 + $0x1bc] sm:$0xf]
        %v346 = vld [vmem:[%s198 + $0x1c0] sm:$0xf]
        %v347 = vld [vmem:[%s198 + $0x1c4] sm:$0xf]
        %v348 = vld [vmem:[%s198 + $0x1c8] sm:$0xf]
        %v349 = vld [vmem:[%s198 + $0x1cc] sm:$0xf]
        %v350 = vld [vmem:[%s198 + $0x1d0] sm:$0xf]
        %v351 = vld [vmem:[%s198 + $0x1d4] sm:$0xf]
        %v352 = vld [vmem:[%s198 + $0x1d8] sm:$0xf]
        %v353 = vld [vmem:[%s198 + $0x1dc] sm:$0xf]
        %v354 = vld [vmem:[%s198 + $0x1e0] sm:$0xf]
        %v355 = vld [vmem:[%s198 + $0x1e4] sm:$0xf]
        %v356 = vld [vmem:[%s198 + $0x1e8] sm:$0xf]
        %v357 = vld [vmem:[%s198 + $0x1ec] sm:$0xf]
        %v358 = vld [vmem:[%s198 + $0x1f0] sm:$0xf]
        %v359 = vld [vmem:[%s198 + $0x1f4] sm:$0xf]
        %v360 = vld [vmem:[%s198 + $0x1f8] sm:$0xf]
        %v361 = vld [vmem:[%s198 + $0x1fc] sm:$0xf]
        %v362 = vld [vmem:[%s198 + $0x200] sm:$0xf]
        %v363 = vld [vmem:[%s198 + $0x204] sm:$0xf]
        %v364 = vld [vmem:[%s198 + $0x208] sm:$0xf]
        %v365 = vld [vmem:[%s198 + $0x20c] sm:$0xf]
        %v366 = vld [vmem:[%s198 + $0x210] sm:$0xf]
        %v367 = vld [vmem:[%s198 + $0x214] sm:$0xf]
        %v368 = vld [vmem:[%s198 + $0x218] sm:$0xf]
        %v369 = vld [vmem:[%s198 + $0x21c] sm:$0xf]
        %v370 = vld [vmem:[%s198 + $0x220] sm:$0xf]
        %v371 = vld [vmem:[%s198 + $0x224] sm:$0xf]
        %v372 = vld [vmem:[%s198 + $0x228] sm:$0xf]
        %v373 = vld [vmem:[%s198 + $0x22c] sm:$0xf]
        %v374 = vld [vmem:[%s198 + $0x230] sm:$0xf]
        %v375 = vld [vmem:[%s198 + $0x234] sm:$0xf]
        %v376 = vld [vmem:[%s198 + $0x238] sm:$0xf]
        %v377 = vld [vmem:[%s198 + $0x23c] sm:$0xf]
        %v378 = vld [vmem:[%s198 + $0x240] sm:$0xf]
        %v379 = vld [vmem:[%s198 + $0x244] sm:$0xf]
        %v380 = vld [vmem:[%s198 + $0x248] sm:$0xf]
        %v381 = vld [vmem:[%s198 + $0x24c] sm:$0xf]
        %v382 = vld [vmem:[%s198 + $0x250] sm:$0xf]
        %v383 = vld [vmem:[%s198 + $0x254] sm:$0xf]
        %v384 = vld [vmem:[%s198 + $0x258] sm:$0xf]
        %v385 = vld [vmem:[%s198 + $0x25c] sm:$0xf]
        %v386 = vld [vmem:[%s198 + $0x260] sm:$0xf]
        %v387 = vld [vmem:[%s198 + $0x264] sm:$0xf]
        %v388 = vld [vmem:[%s198 + $0x268] sm:$0xf]
        %v389 = vld [vmem:[%s198 + $0x26c] sm:$0xf]
        %v390 = vld [vmem:[%s198 + $0x270] sm:$0xf]
        %v391 = vld [vmem:[%s198 + $0x274] sm:$0xf]
        %v392 = vld [vmem:[%s198 + $0x278] sm:$0xf]
        %v393 = vld [vmem:[%s198 + $0x27c] sm:$0xf]
        %v394 = vld [vmem:[%s198 + $0x280] sm:$0xf]
        %v395 = vld [vmem:[%s198 + $0x284] sm:$0xf]
        %v396 = vld [vmem:[%s198 + $0x288] sm:$0xf]
        %v397 = vld [vmem:[%s198 + $0x28c] sm:$0xf]
        %v398 = vld [vmem:[%s198 + $0x290] sm:$0xf]
        %v399 = vld [vmem:[%s198 + $0x294] sm:$0xf]
        %v400 = vld [vmem:[%s198 + $0x298] sm:$0xf]
        %v401 = vld [vmem:[%s198 + $0x29c] sm:$0xf]
        %v402 = vld [vmem:[%s198 + $0x2a0] sm:$0xf]
        %v403 = vld [vmem:[%s198 + $0x2a4] sm:$0xf]
        %v404 = vld [vmem:[%s198 + $0x2a8] sm:$0xf]
        %v405 = vld [vmem:[%s198 + $0x2ac] sm:$0xf]
        %v406 = vld [vmem:[%s198 + $0x2b0] sm:$0xf]
        %v407 = vld [vmem:[%s198 + $0x2b4] sm:$0xf]
        %v408 = vld [vmem:[%s198 + $0x2b8] sm:$0xf]
        %v409 = vld [vmem:[%s198 + $0x2bc] sm:$0xf]
        %v410 = vld [vmem:[%s198 + $0x2c0] sm:$0xf]
        %v411 = vld [vmem:[%s198 + $0x2c4] sm:$0xf]
        %v412 = vld [vmem:[%s198 + $0x2c8] sm:$0xf]
        %v413 = vld [vmem:[%s198 + $0x2cc] sm:$0xf]
        %v414 = vld [vmem:[%s198 + $0x2d0] sm:$0xf]
        %v415 = vld [vmem:[%s198 + $0x2d4] sm:$0xf]
        %v416 = vld [vmem:[%s198 + $0x2d8] sm:$0xf]
        %v417 = vld [vmem:[%s198 + $0x2dc] sm:$0xf]
        %v418 = vld [vmem:[%s198 + $0x2e0] sm:$0xf]
        %v419 = vld [vmem:[%s198 + $0x2e4] sm:$0xf]
        %v420 = vld [vmem:[%s198 + $0x2e8] sm:$0xf]
        %v421 = vld [vmem:[%s198 + $0x2ec] sm:$0xf]
        %v422 = vld [vmem:[%s198 + $0x2f0] sm:$0xf]
        %v423 = vld [vmem:[%s198 + $0x2f4] sm:$0xf]
        %v424 = vld [vmem:[%s198 + $0x2f8] sm:$0xf]
        %v425 = vld [vmem:[%s198 + $0x2fc] sm:$0xf]
        %v426 = vld [vmem:[%s198 + $0x300] sm:$0xf]
        %v427 = vld [vmem:[%s198 + $0x304] sm:$0xf]
        %v428 = vld [vmem:[%s198 + $0x308] sm:$0xf]
        %v429 = vld [vmem:[%s198 + $0x30c] sm:$0xf]
        %v430 = vld [vmem:[%s198 + $0x310] sm:$0xf]
        %v431 = vld [vmem:[%s198 + $0x314] sm:$0xf]
        %v432 = vld [vmem:[%s198 + $0x318] sm:$0xf]
        %v433 = vld [vmem:[%s198 + $0x31c] sm:$0xf]
        %v434 = vld [vmem:[%s198 + $0x320] sm:$0xf]
        %v435 = vld [vmem:[%s198 + $0x324] sm:$0xf]
        %v436 = vld [vmem:[%s198 + $0x328] sm:$0xf]
        %v437 = vld [vmem:[%s198 + $0x32c] sm:$0xf]
        %v438 = vld [vmem:[%s198 + $0x330] sm:$0xf]
        %v439 = vld [vmem:[%s198 + $0x334] sm:$0xf]
        %v440 = vld [vmem:[%s198 + $0x338] sm:$0xf]
        %v441 = vld [vmem:[%s198 + $0x33c] sm:$0xf]
        %v442 = vld [vmem:[%s198 + $0x340] sm:$0xf]
        %v443 = vld [vmem:[%s198 + $0x344] sm:$0xf]
        %v444 = vld [vmem:[%s198 + $0x348] sm:$0xf]
        %v445 = vld [vmem:[%s198 + $0x34c] sm:$0xf]
        %v446 = vld [vmem:[%s198 + $0x350] sm:$0xf]
        %v447 = vld [vmem:[%s198 + $0x354] sm:$0xf]
        %v448 = vld [vmem:[%s198 + $0x358] sm:$0xf]
        %v449 = vld [vmem:[%s198 + $0x35c] sm:$0xf]
        %v450 = vld [vmem:[%s198 + $0x360] sm:$0xf]
        %v451 = vld [vmem:[%s198 + $0x364] sm:$0xf]
        %v452 = vld [vmem:[%s198 + $0x368] sm:$0xf]
        %v453 = vld [vmem:[%s198 + $0x36c] sm:$0xf]
        %v454 = vld [vmem:[%s198 + $0x370] sm:$0xf]
        %v455 = vld [vmem:[%s198 + $0x374] sm:$0xf]
        %v456 = vld [vmem:[%s198 + $0x378] sm:$0xf]
        %v457 = vld [vmem:[%s198 + $0x37c] sm:$0xf]
        %v458 = vld [vmem:[%s198 + $0x380] sm:$0xf]
        %v459 = vld [vmem:[%s198 + $0x384] sm:$0xf]
        %v460 = vld [vmem:[%s198 + $0x388] sm:$0xf]
        %v461 = vld [vmem:[%s198 + $0x38c] sm:$0xf]
        %v462 = vld [vmem:[%s198 + $0x390] sm:$0xf]
        %v463 = vld [vmem:[%s198 + $0x394] sm:$0xf]
        %v464 = vld [vmem:[%s198 + $0x398] sm:$0xf]
        %v465 = vld [vmem:[%s198 + $0x39c] sm:$0xf]
        %v466 = vld [vmem:[%s198 + $0x3a0] sm:$0xf]
        %v467 = vld [vmem:[%s198 + $0x3a4] sm:$0xf]
        %v468 = vld [vmem:[%s198 + $0x3a8] sm:$0xf]
        %v469 = vld [vmem:[%s198 + $0x3ac] sm:$0xf]
        %v470 = vld [vmem:[%s198 + $0x3b0] sm:$0xf]
        %v471 = vld [vmem:[%s198 + $0x3b4] sm:$0xf]
        %v472 = vld [vmem:[%s198 + $0x3b8] sm:$0xf]
        %v473 = vld [vmem:[%s198 + $0x3bc] sm:$0xf]
        %v474 = vld [vmem:[%s198 + $0x3c0] sm:$0xf]
        %v475 = vld [vmem:[%s198 + $0x3c4] sm:$0xf]
        %v476 = vld [vmem:[%s198 + $0x3c8] sm:$0xf]
        %v477 = vld [vmem:[%s198 + $0x3cc] sm:$0xf]
        %v478 = vld [vmem:[%s198 + $0x3d0] sm:$0xf]
        %v479 = vld [vmem:[%s198 + $0x3d4] sm:$0xf]
        %v480 = vld [vmem:[%s198 + $0x3d8] sm:$0xf]
        %v481 = vld [vmem:[%s198 + $0x3dc] sm:$0xf]
        %v482 = vld [vmem:[%s198 + $0x3e0] sm:$0xf]
        %v483 = vld [vmem:[%s198 + $0x3e4] sm:$0xf]
        %v484 = vld [vmem:[%s198 + $0x3e8] sm:$0xf]
        %v485 = vld [vmem:[%s198 + $0x3ec] sm:$0xf]
        %v486 = vld [vmem:[%s198 + $0x3f0] sm:$0xf]
        %v487 = vld [vmem:[%s198 + $0x3f4] sm:$0xf]
        %v488 = vld [vmem:[%s198 + $0x3f8] sm:$0xf]
        %v489 = vld [vmem:[%s198 + $0x3fc] sm:$0xf]
        %s490 = sshra.s32 %s233, 3
        %s491 = sand.u32 %s233, 7
        %s492 = smul.addr %s490, 4
        %s493 = scalar_lea.vmem [#allocation5], %s492
        %v494 = vld [vmem:[%s493] sm:$0xf]
        %v495 = vld [vmem:[%s493 + $0x4] sm:$0xf]
        %v496 = vld [vmem:[%s493 + $0x8] sm:$0xf]
        %v497 = vld [vmem:[%s493 + $0xc] sm:$0xf]
        %v498 = vld [vmem:[%s493 + $0x10] sm:$0xf]
        %v499 = vld [vmem:[%s493 + $0x14] sm:$0xf]
        %v500 = vld [vmem:[%s493 + $0x18] sm:$0xf]
        %v501 = vld [vmem:[%s493 + $0x1c] sm:$0xf]
        %v502 = vld [vmem:[%s493 + $0x20] sm:$0xf]
        %v503 = vld [vmem:[%s493 + $0x24] sm:$0xf]
        %v504 = vld [vmem:[%s493 + $0x28] sm:$0xf]
        %v505 = vld [vmem:[%s493 + $0x2c] sm:$0xf]
        %v506 = vld [vmem:[%s493 + $0x30] sm:$0xf]
        %v507 = vld [vmem:[%s493 + $0x34] sm:$0xf]
        %v508 = vld [vmem:[%s493 + $0x38] sm:$0xf]
        %v509 = vld [vmem:[%s493 + $0x3c] sm:$0xf]
        %v766 = vunpack.c.l.b16 %v234
        %v767 = vunpack.c.l.b16 %v235
        %v768 = vunpack.c.l.b16 %v236
        %v769 = vunpack.c.l.b16 %v237
        %v770 = vunpack.c.l.b16 %v238
        %v771 = vunpack.c.l.b16 %v239
        %v772 = vunpack.c.l.b16 %v240
        %v773 = vunpack.c.l.b16 %v241
        %v774 = vunpack.c.l.b16 %v242
        %v775 = vunpack.c.l.b16 %v243
        %v776 = vunpack.c.l.b16 %v244
        %v777 = vunpack.c.l.b16 %v245
        %v778 = vunpack.c.l.b16 %v246
        %v779 = vunpack.c.l.b16 %v247
        %v780 = vunpack.c.l.b16 %v248
        %v781 = vunpack.c.l.b16 %v249
        %v782 = vunpack.c.l.b16 %v250
        %v783 = vunpack.c.l.b16 %v251
        %v784 = vunpack.c.l.b16 %v252
        %v785 = vunpack.c.l.b16 %v253
        %v786 = vunpack.c.l.b16 %v254
        %v787 = vunpack.c.l.b16 %v255
        %v788 = vunpack.c.l.b16 %v256
        %v789 = vunpack.c.l.b16 %v257
        %v790 = vunpack.c.l.b16 %v258
        %v791 = vunpack.c.l.b16 %v259
        %v792 = vunpack.c.l.b16 %v260
        %v793 = vunpack.c.l.b16 %v261
        %v794 = vunpack.c.l.b16 %v262
        %v795 = vunpack.c.l.b16 %v263
        %v796 = vunpack.c.l.b16 %v264
        %v797 = vunpack.c.l.b16 %v265
        %v798 = vunpack.c.l.b16 %v266
        %v799 = vunpack.c.l.b16 %v267
        %v800 = vunpack.c.l.b16 %v268
        %v801 = vunpack.c.l.b16 %v269
        %v802 = vunpack.c.l.b16 %v270
        %v803 = vunpack.c.l.b16 %v271
        %v804 = vunpack.c.l.b16 %v272
        %v805 = vunpack.c.l.b16 %v273
        %v806 = vunpack.c.l.b16 %v274
        %v807 = vunpack.c.l.b16 %v275
        %v808 = vunpack.c.l.b16 %v276
        %v809 = vunpack.c.l.b16 %v277
        %v810 = vunpack.c.l.b16 %v278
        %v811 = vunpack.c.l.b16 %v279
        %v812 = vunpack.c.l.b16 %v280
        %v813 = vunpack.c.l.b16 %v281
        %v814 = vunpack.c.l.b16 %v282
        %v815 = vunpack.c.l.b16 %v283
        %v816 = vunpack.c.l.b16 %v284
        %v817 = vunpack.c.l.b16 %v285
        %v818 = vunpack.c.l.b16 %v286
        %v819 = vunpack.c.l.b16 %v287
        %v820 = vunpack.c.l.b16 %v288
        %v821 = vunpack.c.l.b16 %v289
        %v822 = vunpack.c.l.b16 %v290
        %v823 = vunpack.c.l.b16 %v291
        %v824 = vunpack.c.l.b16 %v292
        %v825 = vunpack.c.l.b16 %v293
        %v826 = vunpack.c.l.b16 %v294
        %v827 = vunpack.c.l.b16 %v295
        %v828 = vunpack.c.l.b16 %v296
        %v829 = vunpack.c.l.b16 %v297
        %v830 = vunpack.c.l.b16 %v298
        %v831 = vunpack.c.l.b16 %v299
        %v832 = vunpack.c.l.b16 %v300
        %v833 = vunpack.c.l.b16 %v301
        %v834 = vunpack.c.l.b16 %v302
        %v835 = vunpack.c.l.b16 %v303
        %v836 = vunpack.c.l.b16 %v304
        %v837 = vunpack.c.l.b16 %v305
        %v838 = vunpack.c.l.b16 %v306
        %v839 = vunpack.c.l.b16 %v307
        %v840 = vunpack.c.l.b16 %v308
        %v841 = vunpack.c.l.b16 %v309
        %v842 = vunpack.c.l.b16 %v310
        %v843 = vunpack.c.l.b16 %v311
        %v844 = vunpack.c.l.b16 %v312
        %v845 = vunpack.c.l.b16 %v313
        %v846 = vunpack.c.l.b16 %v314
        %v847 = vunpack.c.l.b16 %v315
        %v848 = vunpack.c.l.b16 %v316
        %v849 = vunpack.c.l.b16 %v317
        %v850 = vunpack.c.l.b16 %v318
        %v851 = vunpack.c.l.b16 %v319
        %v852 = vunpack.c.l.b16 %v320
        %v853 = vunpack.c.l.b16 %v321
        %v854 = vunpack.c.l.b16 %v322
        %v855 = vunpack.c.l.b16 %v323
        %v856 = vunpack.c.l.b16 %v324
        %v857 = vunpack.c.l.b16 %v325
        %v858 = vunpack.c.l.b16 %v326
        %v859 = vunpack.c.l.b16 %v327
        %v860 = vunpack.c.l.b16 %v328
        %v861 = vunpack.c.l.b16 %v329
        %v862 = vunpack.c.l.b16 %v330
        %v863 = vunpack.c.l.b16 %v331
        %v864 = vunpack.c.l.b16 %v332
        %v865 = vunpack.c.l.b16 %v333
        %v866 = vunpack.c.l.b16 %v334
        %v867 = vunpack.c.l.b16 %v335
        %v868 = vunpack.c.l.b16 %v336
        %v869 = vunpack.c.l.b16 %v337
        %v870 = vunpack.c.l.b16 %v338
        %v871 = vunpack.c.l.b16 %v339
        %v872 = vunpack.c.l.b16 %v340
        %v873 = vunpack.c.l.b16 %v341
        %v874 = vunpack.c.l.b16 %v342
        %v875 = vunpack.c.l.b16 %v343
        %v876 = vunpack.c.l.b16 %v344
        %v877 = vunpack.c.l.b16 %v345
        %v878 = vunpack.c.l.b16 %v346
        %v879 = vunpack.c.l.b16 %v347
        %v880 = vunpack.c.l.b16 %v348
        %v881 = vunpack.c.l.b16 %v349
        %v882 = vunpack.c.l.b16 %v350
        %v883 = vunpack.c.l.b16 %v351
        %v884 = vunpack.c.l.b16 %v352
        %v885 = vunpack.c.l.b16 %v353
        %v886 = vunpack.c.l.b16 %v354
        %v887 = vunpack.c.l.b16 %v355
        %v888 = vunpack.c.l.b16 %v356
        %v889 = vunpack.c.l.b16 %v357
        %v890 = vunpack.c.l.b16 %v358
        %v891 = vunpack.c.l.b16 %v359
        %v892 = vunpack.c.l.b16 %v360
        %v893 = vunpack.c.l.b16 %v361
        %v894 = vunpack.c.l.b16 %v362
        %v895 = vunpack.c.l.b16 %v363
        %v896 = vunpack.c.l.b16 %v364
        %v897 = vunpack.c.l.b16 %v365
        %v898 = vunpack.c.l.b16 %v366
        %v899 = vunpack.c.l.b16 %v367
        %v900 = vunpack.c.l.b16 %v368
        %v901 = vunpack.c.l.b16 %v369
        %v902 = vunpack.c.l.b16 %v370
        %v903 = vunpack.c.l.b16 %v371
        %v904 = vunpack.c.l.b16 %v372
        %v905 = vunpack.c.l.b16 %v373
        %v906 = vunpack.c.l.b16 %v374
        %v907 = vunpack.c.l.b16 %v375
        %v908 = vunpack.c.l.b16 %v376
        %v909 = vunpack.c.l.b16 %v377
        %v910 = vunpack.c.l.b16 %v378
        %v911 = vunpack.c.l.b16 %v379
        %v912 = vunpack.c.l.b16 %v380
        %v913 = vunpack.c.l.b16 %v381
        %v914 = vunpack.c.l.b16 %v382
        %v915 = vunpack.c.l.b16 %v383
        %v916 = vunpack.c.l.b16 %v384
        %v917 = vunpack.c.l.b16 %v385
        %v918 = vunpack.c.l.b16 %v386
        %v919 = vunpack.c.l.b16 %v387
        %v920 = vunpack.c.l.b16 %v388
        %v921 = vunpack.c.l.b16 %v389
        %v922 = vunpack.c.l.b16 %v390
        %v923 = vunpack.c.l.b16 %v391
        %v924 = vunpack.c.l.b16 %v392
        %v925 = vunpack.c.l.b16 %v393
        %v926 = vunpack.c.l.b16 %v394
        %v927 = vunpack.c.l.b16 %v395
        %v928 = vunpack.c.l.b16 %v396
        %v929 = vunpack.c.l.b16 %v397
        %v930 = vunpack.c.l.b16 %v398
        %v931 = vunpack.c.l.b16 %v399
        %v932 = vunpack.c.l.b16 %v400
        %v933 = vunpack.c.l.b16 %v401
        %v934 = vunpack.c.l.b16 %v402
        %v935 = vunpack.c.l.b16 %v403
        %v936 = vunpack.c.l.b16 %v404
        %v937 = vunpack.c.l.b16 %v405
        %v938 = vunpack.c.l.b16 %v406
        %v939 = vunpack.c.l.b16 %v407
        %v940 = vunpack.c.l.b16 %v408
        %v941 = vunpack.c.l.b16 %v409
        %v942 = vunpack.c.l.b16 %v410
        %v943 = vunpack.c.l.b16 %v411
        %v944 = vunpack.c.l.b16 %v412
        %v945 = vunpack.c.l.b16 %v413
        %v946 = vunpack.c.l.b16 %v414
        %v947 = vunpack.c.l.b16 %v415
        %v948 = vunpack.c.l.b16 %v416
        %v949 = vunpack.c.l.b16 %v417
        %v950 = vunpack.c.l.b16 %v418
        %v951 = vunpack.c.l.b16 %v419
        %v952 = vunpack.c.l.b16 %v420
        %v953 = vunpack.c.l.b16 %v421
        %v954 = vunpack.c.l.b16 %v422
        %v955 = vunpack.c.l.b16 %v423
        %v956 = vunpack.c.l.b16 %v424
        %v957 = vunpack.c.l.b16 %v425
        %v958 = vunpack.c.l.b16 %v426
        %v959 = vunpack.c.l.b16 %v427
        %v960 = vunpack.c.l.b16 %v428
        %v961 = vunpack.c.l.b16 %v429
        %v962 = vunpack.c.l.b16 %v430
        %v963 = vunpack.c.l.b16 %v431
        %v964 = vunpack.c.l.b16 %v432
        %v965 = vunpack.c.l.b16 %v433
        %v966 = vunpack.c.l.b16 %v434
        %v967 = vunpack.c.l.b16 %v435
        %v968 = vunpack.c.l.b16 %v436
        %v969 = vunpack.c.l.b16 %v437
        %v970 = vunpack.c.l.b16 %v438
        %v971 = vunpack.c.l.b16 %v439
        %v972 = vunpack.c.l.b16 %v440
        %v973 = vunpack.c.l.b16 %v441
        %v974 = vunpack.c.l.b16 %v442
        %v975 = vunpack.c.l.b16 %v443
        %v976 = vunpack.c.l.b16 %v444
        %v977 = vunpack.c.l.b16 %v445
        %v978 = vunpack.c.l.b16 %v446
        %v979 = vunpack.c.l.b16 %v447
        %v980 = vunpack.c.l.b16 %v448
        %v981 = vunpack.c.l.b16 %v449
        %v982 = vunpack.c.l.b16 %v450
        %v983 = vunpack.c.l.b16 %v451
        %v984 = vunpack.c.l.b16 %v452
        %v985 = vunpack.c.l.b16 %v453
        %v986 = vunpack.c.l.b16 %v454
        %v987 = vunpack.c.l.b16 %v455
        %v988 = vunpack.c.l.b16 %v456
        %v989 = vunpack.c.l.b16 %v457
        %v990 = vunpack.c.l.b16 %v458
        %v991 = vunpack.c.l.b16 %v459
        %v992 = vunpack.c.l.b16 %v460
        %v993 = vunpack.c.l.b16 %v461
        %v994 = vunpack.c.l.b16 %v462
        %v995 = vunpack.c.l.b16 %v463
        %v996 = vunpack.c.l.b16 %v464
        %v997 = vunpack.c.l.b16 %v465
        %v998 = vunpack.c.l.b16 %v466
        %v999 = vunpack.c.l.b16 %v467
        %v1000 = vunpack.c.l.b16 %v468
        %v1001 = vunpack.c.l.b16 %v469
        %v1002 = vunpack.c.l.b16 %v470
        %v1003 = vunpack.c.l.b16 %v471
        %v1004 = vunpack.c.l.b16 %v472
        %v1005 = vunpack.c.l.b16 %v473
        %v1006 = vunpack.c.l.b16 %v474
        %v1007 = vunpack.c.l.b16 %v475
        %v1008 = vunpack.c.l.b16 %v476
        %v1009 = vunpack.c.l.b16 %v477
        %v1010 = vunpack.c.l.b16 %v478
        %v1011 = vunpack.c.l.b16 %v479
        %v1012 = vunpack.c.l.b16 %v480
        %v1013 = vunpack.c.l.b16 %v481
        %v1014 = vunpack.c.l.b16 %v482
        %v1015 = vunpack.c.l.b16 %v483
        %v1016 = vunpack.c.l.b16 %v484
        %v1017 = vunpack.c.l.b16 %v485
        %v1018 = vunpack.c.l.b16 %v486
        %v1019 = vunpack.c.l.b16 %v487
        %v1020 = vunpack.c.l.b16 %v488
        %v1021 = vunpack.c.l.b16 %v489
        %v1022 = vpack.c.b16 %v767, %v766
        %v1023 = vpack.c.b16 %v769, %v768
        %v1024 = vpack.c.b16 %v771, %v770
        %v1025 = vpack.c.b16 %v773, %v772
        %v1026 = vpack.c.b16 %v775, %v774
        %v1027 = vpack.c.b16 %v777, %v776
        %v1028 = vpack.c.b16 %v779, %v778
        %v1029 = vpack.c.b16 %v781, %v780
        %v1030 = vpack.c.b16 %v783, %v782
        %v1031 = vpack.c.b16 %v785, %v784
        %v1032 = vpack.c.b16 %v787, %v786
        %v1033 = vpack.c.b16 %v789, %v788
        %v1034 = vpack.c.b16 %v791, %v790
        %v1035 = vpack.c.b16 %v793, %v792
        %v1036 = vpack.c.b16 %v795, %v794
        %v1037 = vpack.c.b16 %v797, %v796
        %v1038 = vpack.c.b16 %v799, %v798
        %v1039 = vpack.c.b16 %v801, %v800
        %v1040 = vpack.c.b16 %v803, %v802
        %v1041 = vpack.c.b16 %v805, %v804
        %v1042 = vpack.c.b16 %v807, %v806
        %v1043 = vpack.c.b16 %v809, %v808
        %v1044 = vpack.c.b16 %v811, %v810
        %v1045 = vpack.c.b16 %v813, %v812
        %v1046 = vpack.c.b16 %v815, %v814
        %v1047 = vpack.c.b16 %v817, %v816
        %v1048 = vpack.c.b16 %v819, %v818
        %v1049 = vpack.c.b16 %v821, %v820
        %v1050 = vpack.c.b16 %v823, %v822
        %v1051 = vpack.c.b16 %v825, %v824
        %v1052 = vpack.c.b16 %v827, %v826
        %v1053 = vpack.c.b16 %v829, %v828
        %v1054 = vpack.c.b16 %v831, %v830
        %v1055 = vpack.c.b16 %v833, %v832
        %v1056 = vpack.c.b16 %v835, %v834
        %v1057 = vpack.c.b16 %v837, %v836
        %v1058 = vpack.c.b16 %v839, %v838
        %v1059 = vpack.c.b16 %v841, %v840
        %v1060 = vpack.c.b16 %v843, %v842
        %v1061 = vpack.c.b16 %v845, %v844
        %v1062 = vpack.c.b16 %v847, %v846
        %v1063 = vpack.c.b16 %v849, %v848
        %v1064 = vpack.c.b16 %v851, %v850
        %v1065 = vpack.c.b16 %v853, %v852
        %v1066 = vpack.c.b16 %v855, %v854
        %v1067 = vpack.c.b16 %v857, %v856
        %v1068 = vpack.c.b16 %v859, %v858
        %v1069 = vpack.c.b16 %v861, %v860
        %v1070 = vpack.c.b16 %v863, %v862
        %v1071 = vpack.c.b16 %v865, %v864
        %v1072 = vpack.c.b16 %v867, %v866
        %v1073 = vpack.c.b16 %v869, %v868
        %v1074 = vpack.c.b16 %v871, %v870
        %v1075 = vpack.c.b16 %v873, %v872
        %v1076 = vpack.c.b16 %v875, %v874
        %v1077 = vpack.c.b16 %v877, %v876
        %v1078 = vpack.c.b16 %v879, %v878
        %v1079 = vpack.c.b16 %v881, %v880
        %v1080 = vpack.c.b16 %v883, %v882
        %v1081 = vpack.c.b16 %v885, %v884
        %v1082 = vpack.c.b16 %v887, %v886
        %v1083 = vpack.c.b16 %v889, %v888
        %v1084 = vpack.c.b16 %v891, %v890
        %v1085 = vpack.c.b16 %v893, %v892
        %v1086 = vpack.c.b16 %v895, %v894
        %v1087 = vpack.c.b16 %v897, %v896
        %v1088 = vpack.c.b16 %v899, %v898
        %v1089 = vpack.c.b16 %v901, %v900
        %v1090 = vpack.c.b16 %v903, %v902
        %v1091 = vpack.c.b16 %v905, %v904
        %v1092 = vpack.c.b16 %v907, %v906
        %v1093 = vpack.c.b16 %v909, %v908
        %v1094 = vpack.c.b16 %v911, %v910
        %v1095 = vpack.c.b16 %v913, %v912
        %v1096 = vpack.c.b16 %v915, %v914
        %v1097 = vpack.c.b16 %v917, %v916
        %v1098 = vpack.c.b16 %v919, %v918
        %v1099 = vpack.c.b16 %v921, %v920
        %v1100 = vpack.c.b16 %v923, %v922
        %v1101 = vpack.c.b16 %v925, %v924
        %v1102 = vpack.c.b16 %v927, %v926
        %v1103 = vpack.c.b16 %v929, %v928
        %v1104 = vpack.c.b16 %v931, %v930
        %v1105 = vpack.c.b16 %v933, %v932
        %v1106 = vpack.c.b16 %v935, %v934
        %v1107 = vpack.c.b16 %v937, %v936
        %v1108 = vpack.c.b16 %v939, %v938
        %v1109 = vpack.c.b16 %v941, %v940
        %v1110 = vpack.c.b16 %v943, %v942
        %v1111 = vpack.c.b16 %v945, %v944
        %v1112 = vpack.c.b16 %v947, %v946
        %v1113 = vpack.c.b16 %v949, %v948
        %v1114 = vpack.c.b16 %v951, %v950
        %v1115 = vpack.c.b16 %v953, %v952
        %v1116 = vpack.c.b16 %v955, %v954
        %v1117 = vpack.c.b16 %v957, %v956
        %v1118 = vpack.c.b16 %v959, %v958
        %v1119 = vpack.c.b16 %v961, %v960
        %v1120 = vpack.c.b16 %v963, %v962
        %v1121 = vpack.c.b16 %v965, %v964
        %v1122 = vpack.c.b16 %v967, %v966
        %v1123 = vpack.c.b16 %v969, %v968
        %v1124 = vpack.c.b16 %v971, %v970
        %v1125 = vpack.c.b16 %v973, %v972
        %v1126 = vpack.c.b16 %v975, %v974
        %v1127 = vpack.c.b16 %v977, %v976
        %v1128 = vpack.c.b16 %v979, %v978
        %v1129 = vpack.c.b16 %v981, %v980
        %v1130 = vpack.c.b16 %v983, %v982
        %v1131 = vpack.c.b16 %v985, %v984
        %v1132 = vpack.c.b16 %v987, %v986
        %v1133 = vpack.c.b16 %v989, %v988
        %v1134 = vpack.c.b16 %v991, %v990
        %v1135 = vpack.c.b16 %v993, %v992
        %v1136 = vpack.c.b16 %v995, %v994
        %v1137 = vpack.c.b16 %v997, %v996
        %v1138 = vpack.c.b16 %v999, %v998
        %v1139 = vpack.c.b16 %v1001, %v1000
        %v1140 = vpack.c.b16 %v1003, %v1002
        %v1141 = vpack.c.b16 %v1005, %v1004
        %v1142 = vpack.c.b16 %v1007, %v1006
        %v1143 = vpack.c.b16 %v1009, %v1008
        %v1144 = vpack.c.b16 %v1011, %v1010
        %v1145 = vpack.c.b16 %v1013, %v1012
        %v1146 = vpack.c.b16 %v1015, %v1014
        %v1147 = vpack.c.b16 %v1017, %v1016
        %v1148 = vpack.c.b16 %v1019, %v1018
        %v1149 = vpack.c.b16 %v1021, %v1020
        %v1294 = vunpack.c.l.b16 %v494
        %v1295 = vunpack.c.l.b16 %v495
        %v1296 = vunpack.c.l.b16 %v496
        %v1297 = vunpack.c.l.b16 %v497
        %v1298 = vunpack.c.l.b16 %v498
        %v1299 = vunpack.c.l.b16 %v499
        %v1300 = vunpack.c.l.b16 %v500
        %v1301 = vunpack.c.l.b16 %v501
        %v1302 = vunpack.c.l.b16 %v502
        %v1303 = vunpack.c.l.b16 %v503
        %v1304 = vunpack.c.l.b16 %v504
        %v1305 = vunpack.c.l.b16 %v505
        %v1306 = vunpack.c.l.b16 %v506
        %v1307 = vunpack.c.l.b16 %v507
        %v1308 = vunpack.c.l.b16 %v508
        %v1309 = vunpack.c.l.b16 %v509
        %v1310 = vpack.c.b16 %v1295, %v1294
        %v1311 = vpack.c.b16 %v1297, %v1296
        %v1312 = vpack.c.b16 %v1299, %v1298
        %v1313 = vpack.c.b16 %v1301, %v1300
        %v1314 = vpack.c.b16 %v1303, %v1302
        %v1315 = vpack.c.b16 %v1305, %v1304
        %v1316 = vpack.c.b16 %v1307, %v1306
        %v1317 = vpack.c.b16 %v1309, %v1308
        %1326 = vmatprep.subr.bf16.mxu0 0
        %1327 = vmatpush1.bf16.msra.mxu0 %v1317
        %1328 = vmatprep.subr.bf16.mxu0 0
        %1329 = vmatpush1.bf16.msra.mxu0 %v1316
        %1330 = vmatprep.subr.bf16.mxu0 0
        %1331 = vmatpush1.bf16.msra.mxu0 %v1315
        %1332 = vmatprep.subr.bf16.mxu0 0
        %1333 = vmatpush1.bf16.msra.mxu0 %v1314
        %1334 = vmatprep.subr.bf16.mxu0 0
        %1335 = vmatpush1.bf16.msra.mxu0 %v1313
        %1336 = vmatprep.subr.bf16.mxu0 0
        %1337 = vmatpush1.bf16.msra.mxu0 %v1312
        %1338 = vmatprep.subr.bf16.mxu0 0
        %1339 = vmatpush1.bf16.msra.mxu0 %v1311
        %1340 = vmatprep.subr.bf16.mxu0 0
        %1341 = vmatpush1.bf16.msra.mxu0 %v1310
        %1342 = vmatprep.subr.bf16.mxu0 0
        %1343 = vmatpush2.bf16.msra.mxu0 0
        %1344 = vmatprep.subr.bf16.mxu0 0
        %1345 = vmatpush2.bf16.msra.mxu0 0
        %1346 = vmatprep.subr.bf16.mxu0 0
        %1347 = vmatpush2.bf16.msra.mxu0 0
        %1348 = vmatprep.subr.bf16.mxu0 0
        %1349 = vmatpush2.bf16.msra.mxu0 0
        %1350 = vmatprep.subr.bf16.mxu0 0
        %1351 = vmatpush2.bf16.msra.mxu0 0
        %1352 = vmatprep.subr.bf16.mxu0 0
        %1353 = vmatpush2.bf16.msra.mxu0 0
        %1354 = vmatprep.subr.bf16.mxu0 0
        %1355 = vmatpush2.bf16.msra.mxu0 0
        %1356 = vmatprep.subr.bf16.mxu0 0
        %1357 = vmatpush2.bf16.msra.mxu0 0
        %1358 = vmatprep.mubr.bf16.mxu0 0
        %1359 = vmatmul.mubr.bf16.gmra.mxu0 %v1022
        %v1360 = vpop.f32.mrf.mxu0
        %v1361 = vadd.f32 0.0, %v1360
        %v1362 = vpop.f32.mrf.mxu0
        %v1363 = vpop.f32.mrf.mxu0
        %v1364 = vadd.f32 0.0, %v1363
        %v1365 = vpop.f32.mrf.mxu0
        %1366 = vmatprep.mubr.bf16.mxu0 0
        %1367 = vmatmul.mubr.bf16.gmra.mxu0 %v1023
        %v1368 = vpop.f32.mrf.mxu0
        %v1369 = vadd.f32 0.0, %v1368
        %v1370 = vpop.f32.mrf.mxu0
        %v1371 = vpop.f32.mrf.mxu0
        %v1372 = vadd.f32 0.0, %v1371
        %v1373 = vpop.f32.mrf.mxu0
        %1374 = vmatprep.mubr.bf16.mxu0 0
        %1375 = vmatmul.mubr.bf16.gmra.mxu0 %v1024
        %v1376 = vpop.f32.mrf.mxu0
        %v1377 = vadd.f32 0.0, %v1376
        %v1378 = vpop.f32.mrf.mxu0
        %v1379 = vpop.f32.mrf.mxu0
        %v1380 = vadd.f32 0.0, %v1379
        %v1381 = vpop.f32.mrf.mxu0
        %1382 = vmatprep.mubr.bf16.mxu0 0
        %1383 = vmatmul.mubr.bf16.gmra.mxu0 %v1025
        %v1384 = vpop.f32.mrf.mxu0
        %v1385 = vadd.f32 0.0, %v1384
        %v1386 = vpop.f32.mrf.mxu0
        %v1387 = vpop.f32.mrf.mxu0
        %v1388 = vadd.f32 0.0, %v1387
        %v1389 = vpop.f32.mrf.mxu0
        %1390 = vmatprep.mubr.bf16.mxu0 0
        %1391 = vmatmul.mubr.bf16.gmra.mxu0 %v1026
        %v1392 = vpop.f32.mrf.mxu0
        %v1393 = vadd.f32 0.0, %v1392
        %v1394 = vpop.f32.mrf.mxu0
        %v1395 = vpop.f32.mrf.mxu0
        %v1396 = vadd.f32 0.0, %v1395
        %v1397 = vpop.f32.mrf.mxu0
        %1398 = vmatprep.mubr.bf16.mxu0 0
        %1399 = vmatmul.mubr.bf16.gmra.mxu0 %v1027
        %v1400 = vpop.f32.mrf.mxu0
        %v1401 = vadd.f32 0.0, %v1400
        %v1402 = vpop.f32.mrf.mxu0
        %v1403 = vpop.f32.mrf.mxu0
        %v1404 = vadd.f32 0.0, %v1403
        %v1405 = vpop.f32.mrf.mxu0
        %1406 = vmatprep.mubr.bf16.mxu0 0
        %1407 = vmatmul.mubr.bf16.gmra.mxu0 %v1028
        %v1408 = vpop.f32.mrf.mxu0
        %v1409 = vadd.f32 0.0, %v1408
        %v1410 = vpop.f32.mrf.mxu0
        %v1411 = vpop.f32.mrf.mxu0
        %v1412 = vadd.f32 0.0, %v1411
        %v1413 = vpop.f32.mrf.mxu0
        %1414 = vmatprep.mubr.bf16.mxu0 0
        %1415 = vmatmul.mubr.bf16.gmra.mxu0 %v1029
        %v1416 = vpop.f32.mrf.mxu0
        %v1417 = vadd.f32 0.0, %v1416
        %v1418 = vpop.f32.mrf.mxu0
        %v1419 = vpop.f32.mrf.mxu0
        %v1420 = vadd.f32 0.0, %v1419
        %v1421 = vpop.f32.mrf.mxu0
        %1422 = vmatprep.mubr.bf16.mxu0 0
        %1423 = vmatmul.mubr.bf16.gmra.mxu0 %v1030
        %v1424 = vpop.f32.mrf.mxu0
        %v1425 = vadd.f32 0.0, %v1424
        %v1426 = vpop.f32.mrf.mxu0
        %v1427 = vpop.f32.mrf.mxu0
        %v1428 = vadd.f32 0.0, %v1427
        %v1429 = vpop.f32.mrf.mxu0
        %1430 = vmatprep.mubr.bf16.mxu0 0
        %1431 = vmatmul.mubr.bf16.gmra.mxu0 %v1031
        %v1432 = vpop.f32.mrf.mxu0
        %v1433 = vadd.f32 0.0, %v1432
        %v1434 = vpop.f32.mrf.mxu0
        %v1435 = vpop.f32.mrf.mxu0
        %v1436 = vadd.f32 0.0, %v1435
        %v1437 = vpop.f32.mrf.mxu0
        %1438 = vmatprep.mubr.bf16.mxu0 0
        %1439 = vmatmul.mubr.bf16.gmra.mxu0 %v1032
        %v1440 = vpop.f32.mrf.mxu0
        %v1441 = vadd.f32 0.0, %v1440
        %v1442 = vpop.f32.mrf.mxu0
        %v1443 = vpop.f32.mrf.mxu0
        %v1444 = vadd.f32 0.0, %v1443
        %v1445 = vpop.f32.mrf.mxu0
        %1446 = vmatprep.mubr.bf16.mxu0 0
        %1447 = vmatmul.mubr.bf16.gmra.mxu0 %v1033
        %v1448 = vpop.f32.mrf.mxu0
        %v1449 = vadd.f32 0.0, %v1448
        %v1450 = vpop.f32.mrf.mxu0
        %v1451 = vpop.f32.mrf.mxu0
        %v1452 = vadd.f32 0.0, %v1451
        %v1453 = vpop.f32.mrf.mxu0
        %1454 = vmatprep.mubr.bf16.mxu0 0
        %1455 = vmatmul.mubr.bf16.gmra.mxu0 %v1034
        %v1456 = vpop.f32.mrf.mxu0
        %v1457 = vadd.f32 0.0, %v1456
        %v1458 = vpop.f32.mrf.mxu0
        %v1459 = vpop.f32.mrf.mxu0
        %v1460 = vadd.f32 0.0, %v1459
        %v1461 = vpop.f32.mrf.mxu0
        %1462 = vmatprep.mubr.bf16.mxu0 0
        %1463 = vmatmul.mubr.bf16.gmra.mxu0 %v1035
        %v1464 = vpop.f32.mrf.mxu0
        %v1465 = vadd.f32 0.0, %v1464
        %v1466 = vpop.f32.mrf.mxu0
        %v1467 = vpop.f32.mrf.mxu0
        %v1468 = vadd.f32 0.0, %v1467
        %v1469 = vpop.f32.mrf.mxu0
        %1470 = vmatprep.mubr.bf16.mxu0 0
        %1471 = vmatmul.mubr.bf16.gmra.mxu0 %v1036
        %v1472 = vpop.f32.mrf.mxu0
        %v1473 = vadd.f32 0.0, %v1472
        %v1474 = vpop.f32.mrf.mxu0
        %v1475 = vpop.f32.mrf.mxu0
        %v1476 = vadd.f32 0.0, %v1475
        %v1477 = vpop.f32.mrf.mxu0
        %1478 = vmatprep.mubr.bf16.mxu0 0
        %1479 = vmatmul.mubr.bf16.gmra.mxu0 %v1037
        %v1480 = vpop.f32.mrf.mxu0
        %v1481 = vadd.f32 0.0, %v1480
        %v1482 = vpop.f32.mrf.mxu0
        %v1483 = vpop.f32.mrf.mxu0
        %v1484 = vadd.f32 0.0, %v1483
        %v1485 = vpop.f32.mrf.mxu0
        %1486 = vmatprep.mubr.bf16.mxu0 0
        %1487 = vmatmul.mubr.bf16.gmra.mxu0 %v1038
        %v1488 = vpop.f32.mrf.mxu0
        %v1489 = vadd.f32 0.0, %v1488
        %v1490 = vpop.f32.mrf.mxu0
        %v1491 = vpop.f32.mrf.mxu0
        %v1492 = vadd.f32 0.0, %v1491
        %v1493 = vpop.f32.mrf.mxu0
        %1494 = vmatprep.mubr.bf16.mxu0 0
        %1495 = vmatmul.mubr.bf16.gmra.mxu0 %v1039
        %v1496 = vpop.f32.mrf.mxu0
        %v1497 = vadd.f32 0.0, %v1496
        %v1498 = vpop.f32.mrf.mxu0
        %v1499 = vpop.f32.mrf.mxu0
        %v1500 = vadd.f32 0.0, %v1499
        %v1501 = vpop.f32.mrf.mxu0
        %1502 = vmatprep.mubr.bf16.mxu0 0
        %1503 = vmatmul.mubr.bf16.gmra.mxu0 %v1040
        %v1504 = vpop.f32.mrf.mxu0
        %v1505 = vadd.f32 0.0, %v1504
        %v1506 = vpop.f32.mrf.mxu0
        %v1507 = vpop.f32.mrf.mxu0
        %v1508 = vadd.f32 0.0, %v1507
        %v1509 = vpop.f32.mrf.mxu0
        %1510 = vmatprep.mubr.bf16.mxu0 0
        %1511 = vmatmul.mubr.bf16.gmra.mxu0 %v1041
        %v1512 = vpop.f32.mrf.mxu0
        %v1513 = vadd.f32 0.0, %v1512
        %v1514 = vpop.f32.mrf.mxu0
        %v1515 = vpop.f32.mrf.mxu0
        %v1516 = vadd.f32 0.0, %v1515
        %v1517 = vpop.f32.mrf.mxu0
        %1518 = vmatprep.mubr.bf16.mxu0 0
        %1519 = vmatmul.mubr.bf16.gmra.mxu0 %v1042
        %v1520 = vpop.f32.mrf.mxu0
        %v1521 = vadd.f32 0.0, %v1520
        %v1522 = vpop.f32.mrf.mxu0
        %v1523 = vpop.f32.mrf.mxu0
        %v1524 = vadd.f32 0.0, %v1523
        %v1525 = vpop.f32.mrf.mxu0
        %1526 = vmatprep.mubr.bf16.mxu0 0
        %1527 = vmatmul.mubr.bf16.gmra.mxu0 %v1043
        %v1528 = vpop.f32.mrf.mxu0
        %v1529 = vadd.f32 0.0, %v1528
        %v1530 = vpop.f32.mrf.mxu0
        %v1531 = vpop.f32.mrf.mxu0
        %v1532 = vadd.f32 0.0, %v1531
        %v1533 = vpop.f32.mrf.mxu0
        %1534 = vmatprep.mubr.bf16.mxu0 0
        %1535 = vmatmul.mubr.bf16.gmra.mxu0 %v1044
        %v1536 = vpop.f32.mrf.mxu0
        %v1537 = vadd.f32 0.0, %v1536
        %v1538 = vpop.f32.mrf.mxu0
        %v1539 = vpop.f32.mrf.mxu0
        %v1540 = vadd.f32 0.0, %v1539
        %v1541 = vpop.f32.mrf.mxu0
        %1542 = vmatprep.mubr.bf16.mxu0 0
        %1543 = vmatmul.mubr.bf16.gmra.mxu0 %v1045
        %v1544 = vpop.f32.mrf.mxu0
        %v1545 = vadd.f32 0.0, %v1544
        %v1546 = vpop.f32.mrf.mxu0
        %v1547 = vpop.f32.mrf.mxu0
        %v1548 = vadd.f32 0.0, %v1547
        %v1549 = vpop.f32.mrf.mxu0
        %1550 = vmatprep.mubr.bf16.mxu0 0
        %1551 = vmatmul.mubr.bf16.gmra.mxu0 %v1046
        %v1552 = vpop.f32.mrf.mxu0
        %v1553 = vadd.f32 0.0, %v1552
        %v1554 = vpop.f32.mrf.mxu0
        %v1555 = vpop.f32.mrf.mxu0
        %v1556 = vadd.f32 0.0, %v1555
        %v1557 = vpop.f32.mrf.mxu0
        %1558 = vmatprep.mubr.bf16.mxu0 0
        %1559 = vmatmul.mubr.bf16.gmra.mxu0 %v1047
        %v1560 = vpop.f32.mrf.mxu0
        %v1561 = vadd.f32 0.0, %v1560
        %v1562 = vpop.f32.mrf.mxu0
        %v1563 = vpop.f32.mrf.mxu0
        %v1564 = vadd.f32 0.0, %v1563
        %v1565 = vpop.f32.mrf.mxu0
        %1566 = vmatprep.mubr.bf16.mxu0 0
        %1567 = vmatmul.mubr.bf16.gmra.mxu0 %v1048
        %v1568 = vpop.f32.mrf.mxu0
        %v1569 = vadd.f32 0.0, %v1568
        %v1570 = vpop.f32.mrf.mxu0
        %v1571 = vpop.f32.mrf.mxu0
        %v1572 = vadd.f32 0.0, %v1571
        %v1573 = vpop.f32.mrf.mxu0
        %1574 = vmatprep.mubr.bf16.mxu0 0
        %1575 = vmatmul.mubr.bf16.gmra.mxu0 %v1049
        %v1576 = vpop.f32.mrf.mxu0
        %v1577 = vadd.f32 0.0, %v1576
        %v1578 = vpop.f32.mrf.mxu0
        %v1579 = vpop.f32.mrf.mxu0
        %v1580 = vadd.f32 0.0, %v1579
        %v1581 = vpop.f32.mrf.mxu0
        %1582 = vmatprep.mubr.bf16.mxu0 0
        %1583 = vmatmul.mubr.bf16.gmra.mxu0 %v1050
        %v1584 = vpop.f32.mrf.mxu0
        %v1585 = vadd.f32 0.0, %v1584
        %v1586 = vpop.f32.mrf.mxu0
        %v1587 = vpop.f32.mrf.mxu0
        %v1588 = vadd.f32 0.0, %v1587
        %v1589 = vpop.f32.mrf.mxu0
        %1590 = vmatprep.mubr.bf16.mxu0 0
        %1591 = vmatmul.mubr.bf16.gmra.mxu0 %v1051
        %v1592 = vpop.f32.mrf.mxu0
        %v1593 = vadd.f32 0.0, %v1592
        %v1594 = vpop.f32.mrf.mxu0
        %v1595 = vpop.f32.mrf.mxu0
        %v1596 = vadd.f32 0.0, %v1595
        %v1597 = vpop.f32.mrf.mxu0
        %1598 = vmatprep.mubr.bf16.mxu0 0
        %1599 = vmatmul.mubr.bf16.gmra.mxu0 %v1052
        %v1600 = vpop.f32.mrf.mxu0
        %v1601 = vadd.f32 0.0, %v1600
        %v1602 = vpop.f32.mrf.mxu0
        %v1603 = vpop.f32.mrf.mxu0
        %v1604 = vadd.f32 0.0, %v1603
        %v1605 = vpop.f32.mrf.mxu0
        %1606 = vmatprep.mubr.bf16.mxu0 0
        %1607 = vmatmul.mubr.bf16.gmra.mxu0 %v1053
        %v1608 = vpop.f32.mrf.mxu0
        %v1609 = vadd.f32 0.0, %v1608
        %v1610 = vpop.f32.mrf.mxu0
        %v1611 = vpop.f32.mrf.mxu0
        %v1612 = vadd.f32 0.0, %v1611
        %v1613 = vpop.f32.mrf.mxu0
        %1614 = vmatprep.mubr.bf16.mxu0 0
        %1615 = vmatmul.mubr.bf16.gmra.mxu0 %v1054
        %v1616 = vpop.f32.mrf.mxu0
        %v1617 = vadd.f32 0.0, %v1616
        %v1618 = vpop.f32.mrf.mxu0
        %v1619 = vpop.f32.mrf.mxu0
        %v1620 = vadd.f32 0.0, %v1619
        %v1621 = vpop.f32.mrf.mxu0
        %1622 = vmatprep.mubr.bf16.mxu0 0
        %1623 = vmatmul.mubr.bf16.gmra.mxu0 %v1055
        %v1624 = vpop.f32.mrf.mxu0
        %v1625 = vadd.f32 0.0, %v1624
        %v1626 = vpop.f32.mrf.mxu0
        %v1627 = vpop.f32.mrf.mxu0
        %v1628 = vadd.f32 0.0, %v1627
        %v1629 = vpop.f32.mrf.mxu0
        %1630 = vmatprep.mubr.bf16.mxu0 0
        %1631 = vmatmul.mubr.bf16.gmra.mxu0 %v1056
        %v1632 = vpop.f32.mrf.mxu0
        %v1633 = vadd.f32 0.0, %v1632
        %v1634 = vpop.f32.mrf.mxu0
        %v1635 = vpop.f32.mrf.mxu0
        %v1636 = vadd.f32 0.0, %v1635
        %v1637 = vpop.f32.mrf.mxu0
        %1638 = vmatprep.mubr.bf16.mxu0 0
        %1639 = vmatmul.mubr.bf16.gmra.mxu0 %v1057
        %v1640 = vpop.f32.mrf.mxu0
        %v1641 = vadd.f32 0.0, %v1640
        %v1642 = vpop.f32.mrf.mxu0
        %v1643 = vpop.f32.mrf.mxu0
        %v1644 = vadd.f32 0.0, %v1643
        %v1645 = vpop.f32.mrf.mxu0
        %1646 = vmatprep.mubr.bf16.mxu0 0
        %1647 = vmatmul.mubr.bf16.gmra.mxu0 %v1058
        %v1648 = vpop.f32.mrf.mxu0
        %v1649 = vadd.f32 0.0, %v1648
        %v1650 = vpop.f32.mrf.mxu0
        %v1651 = vpop.f32.mrf.mxu0
        %v1652 = vadd.f32 0.0, %v1651
        %v1653 = vpop.f32.mrf.mxu0
        %1654 = vmatprep.mubr.bf16.mxu0 0
        %1655 = vmatmul.mubr.bf16.gmra.mxu0 %v1059
        %v1656 = vpop.f32.mrf.mxu0
        %v1657 = vadd.f32 0.0, %v1656
        %v1658 = vpop.f32.mrf.mxu0
        %v1659 = vpop.f32.mrf.mxu0
        %v1660 = vadd.f32 0.0, %v1659
        %v1661 = vpop.f32.mrf.mxu0
        %1662 = vmatprep.mubr.bf16.mxu0 0
        %1663 = vmatmul.mubr.bf16.gmra.mxu0 %v1060
        %v1664 = vpop.f32.mrf.mxu0
        %v1665 = vadd.f32 0.0, %v1664
        %v1666 = vpop.f32.mrf.mxu0
        %v1667 = vpop.f32.mrf.mxu0
        %v1668 = vadd.f32 0.0, %v1667
        %v1669 = vpop.f32.mrf.mxu0
        %1670 = vmatprep.mubr.bf16.mxu0 0
        %1671 = vmatmul.mubr.bf16.gmra.mxu0 %v1061
        %v1672 = vpop.f32.mrf.mxu0
        %v1673 = vadd.f32 0.0, %v1672
        %v1674 = vpop.f32.mrf.mxu0
        %v1675 = vpop.f32.mrf.mxu0
        %v1676 = vadd.f32 0.0, %v1675
        %v1677 = vpop.f32.mrf.mxu0
        %1678 = vmatprep.mubr.bf16.mxu0 0
        %1679 = vmatmul.mubr.bf16.gmra.mxu0 %v1062
        %v1680 = vpop.f32.mrf.mxu0
        %v1681 = vadd.f32 0.0, %v1680
        %v1682 = vpop.f32.mrf.mxu0
        %v1683 = vpop.f32.mrf.mxu0
        %v1684 = vadd.f32 0.0, %v1683
        %v1685 = vpop.f32.mrf.mxu0
        %1686 = vmatprep.mubr.bf16.mxu0 0
        %1687 = vmatmul.mubr.bf16.gmra.mxu0 %v1063
        %v1688 = vpop.f32.mrf.mxu0
        %v1689 = vadd.f32 0.0, %v1688
        %v1690 = vpop.f32.mrf.mxu0
        %v1691 = vpop.f32.mrf.mxu0
        %v1692 = vadd.f32 0.0, %v1691
        %v1693 = vpop.f32.mrf.mxu0
        %1694 = vmatprep.mubr.bf16.mxu0 0
        %1695 = vmatmul.mubr.bf16.gmra.mxu0 %v1064
        %v1696 = vpop.f32.mrf.mxu0
        %v1697 = vadd.f32 0.0, %v1696
        %v1698 = vpop.f32.mrf.mxu0
        %v1699 = vpop.f32.mrf.mxu0
        %v1700 = vadd.f32 0.0, %v1699
        %v1701 = vpop.f32.mrf.mxu0
        %1702 = vmatprep.mubr.bf16.mxu0 0
        %1703 = vmatmul.mubr.bf16.gmra.mxu0 %v1065
        %v1704 = vpop.f32.mrf.mxu0
        %v1705 = vadd.f32 0.0, %v1704
        %v1706 = vpop.f32.mrf.mxu0
        %v1707 = vpop.f32.mrf.mxu0
        %v1708 = vadd.f32 0.0, %v1707
        %v1709 = vpop.f32.mrf.mxu0
        %1710 = vmatprep.mubr.bf16.mxu0 0
        %1711 = vmatmul.mubr.bf16.gmra.mxu0 %v1066
        %v1712 = vpop.f32.mrf.mxu0
        %v1713 = vadd.f32 0.0, %v1712
        %v1714 = vpop.f32.mrf.mxu0
        %v1715 = vpop.f32.mrf.mxu0
        %v1716 = vadd.f32 0.0, %v1715
        %v1717 = vpop.f32.mrf.mxu0
        %1718 = vmatprep.mubr.bf16.mxu0 0
        %1719 = vmatmul.mubr.bf16.gmra.mxu0 %v1067
        %v1720 = vpop.f32.mrf.mxu0
        %v1721 = vadd.f32 0.0, %v1720
        %v1722 = vpop.f32.mrf.mxu0
        %v1723 = vpop.f32.mrf.mxu0
        %v1724 = vadd.f32 0.0, %v1723
        %v1725 = vpop.f32.mrf.mxu0
        %1726 = vmatprep.mubr.bf16.mxu0 0
        %1727 = vmatmul.mubr.bf16.gmra.mxu0 %v1068
        %v1728 = vpop.f32.mrf.mxu0
        %v1729 = vadd.f32 0.0, %v1728
        %v1730 = vpop.f32.mrf.mxu0
        %v1731 = vpop.f32.mrf.mxu0
        %v1732 = vadd.f32 0.0, %v1731
        %v1733 = vpop.f32.mrf.mxu0
        %1734 = vmatprep.mubr.bf16.mxu0 0
        %1735 = vmatmul.mubr.bf16.gmra.mxu0 %v1069
        %v1736 = vpop.f32.mrf.mxu0
        %v1737 = vadd.f32 0.0, %v1736
        %v1738 = vpop.f32.mrf.mxu0
        %v1739 = vpop.f32.mrf.mxu0
        %v1740 = vadd.f32 0.0, %v1739
        %v1741 = vpop.f32.mrf.mxu0
        %1742 = vmatprep.mubr.bf16.mxu0 0
        %1743 = vmatmul.mubr.bf16.gmra.mxu0 %v1070
        %v1744 = vpop.f32.mrf.mxu0
        %v1745 = vadd.f32 0.0, %v1744
        %v1746 = vpop.f32.mrf.mxu0
        %v1747 = vpop.f32.mrf.mxu0
        %v1748 = vadd.f32 0.0, %v1747
        %v1749 = vpop.f32.mrf.mxu0
        %1750 = vmatprep.mubr.bf16.mxu0 0
        %1751 = vmatmul.mubr.bf16.gmra.mxu0 %v1071
        %v1752 = vpop.f32.mrf.mxu0
        %v1753 = vadd.f32 0.0, %v1752
        %v1754 = vpop.f32.mrf.mxu0
        %v1755 = vpop.f32.mrf.mxu0
        %v1756 = vadd.f32 0.0, %v1755
        %v1757 = vpop.f32.mrf.mxu0
        %1758 = vmatprep.mubr.bf16.mxu0 0
        %1759 = vmatmul.mubr.bf16.gmra.mxu0 %v1072
        %v1760 = vpop.f32.mrf.mxu0
        %v1761 = vadd.f32 0.0, %v1760
        %v1762 = vpop.f32.mrf.mxu0
        %v1763 = vpop.f32.mrf.mxu0
        %v1764 = vadd.f32 0.0, %v1763
        %v1765 = vpop.f32.mrf.mxu0
        %1766 = vmatprep.mubr.bf16.mxu0 0
        %1767 = vmatmul.mubr.bf16.gmra.mxu0 %v1073
        %v1768 = vpop.f32.mrf.mxu0
        %v1769 = vadd.f32 0.0, %v1768
        %v1770 = vpop.f32.mrf.mxu0
        %v1771 = vpop.f32.mrf.mxu0
        %v1772 = vadd.f32 0.0, %v1771
        %v1773 = vpop.f32.mrf.mxu0
        %1774 = vmatprep.mubr.bf16.mxu0 0
        %1775 = vmatmul.mubr.bf16.gmra.mxu0 %v1074
        %v1776 = vpop.f32.mrf.mxu0
        %v1777 = vadd.f32 0.0, %v1776
        %v1778 = vpop.f32.mrf.mxu0
        %v1779 = vpop.f32.mrf.mxu0
        %v1780 = vadd.f32 0.0, %v1779
        %v1781 = vpop.f32.mrf.mxu0
        %1782 = vmatprep.mubr.bf16.mxu0 0
        %1783 = vmatmul.mubr.bf16.gmra.mxu0 %v1075
        %v1784 = vpop.f32.mrf.mxu0
        %v1785 = vadd.f32 0.0, %v1784
        %v1786 = vpop.f32.mrf.mxu0
        %v1787 = vpop.f32.mrf.mxu0
        %v1788 = vadd.f32 0.0, %v1787
        %v1789 = vpop.f32.mrf.mxu0
        %1790 = vmatprep.mubr.bf16.mxu0 0
        %1791 = vmatmul.mubr.bf16.gmra.mxu0 %v1076
        %v1792 = vpop.f32.mrf.mxu0
        %v1793 = vadd.f32 0.0, %v1792
        %v1794 = vpop.f32.mrf.mxu0
        %v1795 = vpop.f32.mrf.mxu0
        %v1796 = vadd.f32 0.0, %v1795
        %v1797 = vpop.f32.mrf.mxu0
        %1798 = vmatprep.mubr.bf16.mxu0 0
        %1799 = vmatmul.mubr.bf16.gmra.mxu0 %v1077
        %v1800 = vpop.f32.mrf.mxu0
        %v1801 = vadd.f32 0.0, %v1800
        %v1802 = vpop.f32.mrf.mxu0
        %v1803 = vpop.f32.mrf.mxu0
        %v1804 = vadd.f32 0.0, %v1803
        %v1805 = vpop.f32.mrf.mxu0
        %1806 = vmatprep.mubr.bf16.mxu0 0
        %1807 = vmatmul.mubr.bf16.gmra.mxu0 %v1078
        %v1808 = vpop.f32.mrf.mxu0
        %v1809 = vadd.f32 0.0, %v1808
        %v1810 = vpop.f32.mrf.mxu0
        %v1811 = vpop.f32.mrf.mxu0
        %v1812 = vadd.f32 0.0, %v1811
        %v1813 = vpop.f32.mrf.mxu0
        %1814 = vmatprep.mubr.bf16.mxu0 0
        %1815 = vmatmul.mubr.bf16.gmra.mxu0 %v1079
        %v1816 = vpop.f32.mrf.mxu0
        %v1817 = vadd.f32 0.0, %v1816
        %v1818 = vpop.f32.mrf.mxu0
        %v1819 = vpop.f32.mrf.mxu0
        %v1820 = vadd.f32 0.0, %v1819
        %v1821 = vpop.f32.mrf.mxu0
        %1822 = vmatprep.mubr.bf16.mxu0 0
        %1823 = vmatmul.mubr.bf16.gmra.mxu0 %v1080
        %v1824 = vpop.f32.mrf.mxu0
        %v1825 = vadd.f32 0.0, %v1824
        %v1826 = vpop.f32.mrf.mxu0
        %v1827 = vpop.f32.mrf.mxu0
        %v1828 = vadd.f32 0.0, %v1827
        %v1829 = vpop.f32.mrf.mxu0
        %1830 = vmatprep.mubr.bf16.mxu0 0
        %1831 = vmatmul.mubr.bf16.gmra.mxu0 %v1081
        %v1832 = vpop.f32.mrf.mxu0
        %v1833 = vadd.f32 0.0, %v1832
        %v1834 = vpop.f32.mrf.mxu0
        %v1835 = vpop.f32.mrf.mxu0
        %v1836 = vadd.f32 0.0, %v1835
        %v1837 = vpop.f32.mrf.mxu0
        %1838 = vmatprep.mubr.bf16.mxu0 0
        %1839 = vmatmul.mubr.bf16.gmra.mxu0 %v1082
        %v1840 = vpop.f32.mrf.mxu0
        %v1841 = vadd.f32 0.0, %v1840
        %v1842 = vpop.f32.mrf.mxu0
        %v1843 = vpop.f32.mrf.mxu0
        %v1844 = vadd.f32 0.0, %v1843
        %v1845 = vpop.f32.mrf.mxu0
        %1846 = vmatprep.mubr.bf16.mxu0 0
        %1847 = vmatmul.mubr.bf16.gmra.mxu0 %v1083
        %v1848 = vpop.f32.mrf.mxu0
        %v1849 = vadd.f32 0.0, %v1848
        %v1850 = vpop.f32.mrf.mxu0
        %v1851 = vpop.f32.mrf.mxu0
        %v1852 = vadd.f32 0.0, %v1851
        %v1853 = vpop.f32.mrf.mxu0
        %1854 = vmatprep.mubr.bf16.mxu0 0
        %1855 = vmatmul.mubr.bf16.gmra.mxu0 %v1084
        %v1856 = vpop.f32.mrf.mxu0
        %v1857 = vadd.f32 0.0, %v1856
        %v1858 = vpop.f32.mrf.mxu0
        %v1859 = vpop.f32.mrf.mxu0
        %v1860 = vadd.f32 0.0, %v1859
        %v1861 = vpop.f32.mrf.mxu0
        %1862 = vmatprep.mubr.bf16.mxu0 0
        %1863 = vmatmul.mubr.bf16.gmra.mxu0 %v1085
        %v1864 = vpop.f32.mrf.mxu0
        %v1865 = vadd.f32 0.0, %v1864
        %v1866 = vpop.f32.mrf.mxu0
        %v1867 = vpop.f32.mrf.mxu0
        %v1868 = vadd.f32 0.0, %v1867
        %v1869 = vpop.f32.mrf.mxu0
        %1870 = vmatprep.mubr.bf16.mxu0 0
        %1871 = vmatmul.mubr.bf16.gmra.mxu0 %v1086
        %v1872 = vpop.f32.mrf.mxu0
        %v1873 = vadd.f32 0.0, %v1872
        %v1874 = vpop.f32.mrf.mxu0
        %v1875 = vpop.f32.mrf.mxu0
        %v1876 = vadd.f32 0.0, %v1875
        %v1877 = vpop.f32.mrf.mxu0
        %1878 = vmatprep.mubr.bf16.mxu0 0
        %1879 = vmatmul.mubr.bf16.gmra.mxu0 %v1087
        %v1880 = vpop.f32.mrf.mxu0
        %v1881 = vadd.f32 0.0, %v1880
        %v1882 = vpop.f32.mrf.mxu0
        %v1883 = vpop.f32.mrf.mxu0
        %v1884 = vadd.f32 0.0, %v1883
        %v1885 = vpop.f32.mrf.mxu0
        %1886 = vmatprep.mubr.bf16.mxu0 0
        %1887 = vmatmul.mubr.bf16.gmra.mxu0 %v1088
        %v1888 = vpop.f32.mrf.mxu0
        %v1889 = vadd.f32 0.0, %v1888
        %v1890 = vpop.f32.mrf.mxu0
        %v1891 = vpop.f32.mrf.mxu0
        %v1892 = vadd.f32 0.0, %v1891
        %v1893 = vpop.f32.mrf.mxu0
        %1894 = vmatprep.mubr.bf16.mxu0 0
        %1895 = vmatmul.mubr.bf16.gmra.mxu0 %v1089
        %v1896 = vpop.f32.mrf.mxu0
        %v1897 = vadd.f32 0.0, %v1896
        %v1898 = vpop.f32.mrf.mxu0
        %v1899 = vpop.f32.mrf.mxu0
        %v1900 = vadd.f32 0.0, %v1899
        %v1901 = vpop.f32.mrf.mxu0
        %1902 = vmatprep.mubr.bf16.mxu0 0
        %1903 = vmatmul.mubr.bf16.gmra.mxu0 %v1090
        %v1904 = vpop.f32.mrf.mxu0
        %v1905 = vadd.f32 0.0, %v1904
        %v1906 = vpop.f32.mrf.mxu0
        %v1907 = vpop.f32.mrf.mxu0
        %v1908 = vadd.f32 0.0, %v1907
        %v1909 = vpop.f32.mrf.mxu0
        %1910 = vmatprep.mubr.bf16.mxu0 0
        %1911 = vmatmul.mubr.bf16.gmra.mxu0 %v1091
        %v1912 = vpop.f32.mrf.mxu0
        %v1913 = vadd.f32 0.0, %v1912
        %v1914 = vpop.f32.mrf.mxu0
        %v1915 = vpop.f32.mrf.mxu0
        %v1916 = vadd.f32 0.0, %v1915
        %v1917 = vpop.f32.mrf.mxu0
        %1918 = vmatprep.mubr.bf16.mxu0 0
        %1919 = vmatmul.mubr.bf16.gmra.mxu0 %v1092
        %v1920 = vpop.f32.mrf.mxu0
        %v1921 = vadd.f32 0.0, %v1920
        %v1922 = vpop.f32.mrf.mxu0
        %v1923 = vpop.f32.mrf.mxu0
        %v1924 = vadd.f32 0.0, %v1923
        %v1925 = vpop.f32.mrf.mxu0
        %1926 = vmatprep.mubr.bf16.mxu0 0
        %1927 = vmatmul.mubr.bf16.gmra.mxu0 %v1093
        %v1928 = vpop.f32.mrf.mxu0
        %v1929 = vadd.f32 0.0, %v1928
        %v1930 = vpop.f32.mrf.mxu0
        %v1931 = vpop.f32.mrf.mxu0
        %v1932 = vadd.f32 0.0, %v1931
        %v1933 = vpop.f32.mrf.mxu0
        %1934 = vmatprep.mubr.bf16.mxu0 0
        %1935 = vmatmul.mubr.bf16.gmra.mxu0 %v1094
        %v1936 = vpop.f32.mrf.mxu0
        %v1937 = vadd.f32 0.0, %v1936
        %v1938 = vpop.f32.mrf.mxu0
        %v1939 = vpop.f32.mrf.mxu0
        %v1940 = vadd.f32 0.0, %v1939
        %v1941 = vpop.f32.mrf.mxu0
        %1942 = vmatprep.mubr.bf16.mxu0 0
        %1943 = vmatmul.mubr.bf16.gmra.mxu0 %v1095
        %v1944 = vpop.f32.mrf.mxu0
        %v1945 = vadd.f32 0.0, %v1944
        %v1946 = vpop.f32.mrf.mxu0
        %v1947 = vpop.f32.mrf.mxu0
        %v1948 = vadd.f32 0.0, %v1947
        %v1949 = vpop.f32.mrf.mxu0
        %1950 = vmatprep.mubr.bf16.mxu0 0
        %1951 = vmatmul.mubr.bf16.gmra.mxu0 %v1096
        %v1952 = vpop.f32.mrf.mxu0
        %v1953 = vadd.f32 0.0, %v1952
        %v1954 = vpop.f32.mrf.mxu0
        %v1955 = vpop.f32.mrf.mxu0
        %v1956 = vadd.f32 0.0, %v1955
        %v1957 = vpop.f32.mrf.mxu0
        %1958 = vmatprep.mubr.bf16.mxu0 0
        %1959 = vmatmul.mubr.bf16.gmra.mxu0 %v1097
        %v1960 = vpop.f32.mrf.mxu0
        %v1961 = vadd.f32 0.0, %v1960
        %v1962 = vpop.f32.mrf.mxu0
        %v1963 = vpop.f32.mrf.mxu0
        %v1964 = vadd.f32 0.0, %v1963
        %v1965 = vpop.f32.mrf.mxu0
        %1966 = vmatprep.mubr.bf16.mxu0 0
        %1967 = vmatmul.mubr.bf16.gmra.mxu0 %v1098
        %v1968 = vpop.f32.mrf.mxu0
        %v1969 = vadd.f32 0.0, %v1968
        %v1970 = vpop.f32.mrf.mxu0
        %v1971 = vpop.f32.mrf.mxu0
        %v1972 = vadd.f32 0.0, %v1971
        %v1973 = vpop.f32.mrf.mxu0
        %1974 = vmatprep.mubr.bf16.mxu0 0
        %1975 = vmatmul.mubr.bf16.gmra.mxu0 %v1099
        %v1976 = vpop.f32.mrf.mxu0
        %v1977 = vadd.f32 0.0, %v1976
        %v1978 = vpop.f32.mrf.mxu0
        %v1979 = vpop.f32.mrf.mxu0
        %v1980 = vadd.f32 0.0, %v1979
        %v1981 = vpop.f32.mrf.mxu0
        %1982 = vmatprep.mubr.bf16.mxu0 0
        %1983 = vmatmul.mubr.bf16.gmra.mxu0 %v1100
        %v1984 = vpop.f32.mrf.mxu0
        %v1985 = vadd.f32 0.0, %v1984
        %v1986 = vpop.f32.mrf.mxu0
        %v1987 = vpop.f32.mrf.mxu0
        %v1988 = vadd.f32 0.0, %v1987
        %v1989 = vpop.f32.mrf.mxu0
        %1990 = vmatprep.mubr.bf16.mxu0 0
        %1991 = vmatmul.mubr.bf16.gmra.mxu0 %v1101
        %v1992 = vpop.f32.mrf.mxu0
        %v1993 = vadd.f32 0.0, %v1992
        %v1994 = vpop.f32.mrf.mxu0
        %v1995 = vpop.f32.mrf.mxu0
        %v1996 = vadd.f32 0.0, %v1995
        %v1997 = vpop.f32.mrf.mxu0
        %1998 = vmatprep.mubr.bf16.mxu0 0
        %1999 = vmatmul.mubr.bf16.gmra.mxu0 %v1102
        %v2000 = vpop.f32.mrf.mxu0
        %v2001 = vadd.f32 0.0, %v2000
        %v2002 = vpop.f32.mrf.mxu0
        %v2003 = vpop.f32.mrf.mxu0
        %v2004 = vadd.f32 0.0, %v2003
        %v2005 = vpop.f32.mrf.mxu0
        %2006 = vmatprep.mubr.bf16.mxu0 0
        %2007 = vmatmul.mubr.bf16.gmra.mxu0 %v1103
        %v2008 = vpop.f32.mrf.mxu0
        %v2009 = vadd.f32 0.0, %v2008
        %v2010 = vpop.f32.mrf.mxu0
        %v2011 = vpop.f32.mrf.mxu0
        %v2012 = vadd.f32 0.0, %v2011
        %v2013 = vpop.f32.mrf.mxu0
        %2014 = vmatprep.mubr.bf16.mxu0 0
        %2015 = vmatmul.mubr.bf16.gmra.mxu0 %v1104
        %v2016 = vpop.f32.mrf.mxu0
        %v2017 = vadd.f32 0.0, %v2016
        %v2018 = vpop.f32.mrf.mxu0
        %v2019 = vpop.f32.mrf.mxu0
        %v2020 = vadd.f32 0.0, %v2019
        %v2021 = vpop.f32.mrf.mxu0
        %2022 = vmatprep.mubr.bf16.mxu0 0
        %2023 = vmatmul.mubr.bf16.gmra.mxu0 %v1105
        %v2024 = vpop.f32.mrf.mxu0
        %v2025 = vadd.f32 0.0, %v2024
        %v2026 = vpop.f32.mrf.mxu0
        %v2027 = vpop.f32.mrf.mxu0
        %v2028 = vadd.f32 0.0, %v2027
        %v2029 = vpop.f32.mrf.mxu0
        %2030 = vmatprep.mubr.bf16.mxu0 0
        %2031 = vmatmul.mubr.bf16.gmra.mxu0 %v1106
        %v2032 = vpop.f32.mrf.mxu0
        %v2033 = vadd.f32 0.0, %v2032
        %v2034 = vpop.f32.mrf.mxu0
        %v2035 = vpop.f32.mrf.mxu0
        %v2036 = vadd.f32 0.0, %v2035
        %v2037 = vpop.f32.mrf.mxu0
        %2038 = vmatprep.mubr.bf16.mxu0 0
        %2039 = vmatmul.mubr.bf16.gmra.mxu0 %v1107
        %v2040 = vpop.f32.mrf.mxu0
        %v2041 = vadd.f32 0.0, %v2040
        %v2042 = vpop.f32.mrf.mxu0
        %v2043 = vpop.f32.mrf.mxu0
        %v2044 = vadd.f32 0.0, %v2043
        %v2045 = vpop.f32.mrf.mxu0
        %2046 = vmatprep.mubr.bf16.mxu0 0
        %2047 = vmatmul.mubr.bf16.gmra.mxu0 %v1108
        %v2048 = vpop.f32.mrf.mxu0
        %v2049 = vadd.f32 0.0, %v2048
        %v2050 = vpop.f32.mrf.mxu0
        %v2051 = vpop.f32.mrf.mxu0
        %v2052 = vadd.f32 0.0, %v2051
        %v2053 = vpop.f32.mrf.mxu0
        %2054 = vmatprep.mubr.bf16.mxu0 0
        %2055 = vmatmul.mubr.bf16.gmra.mxu0 %v1109
        %v2056 = vpop.f32.mrf.mxu0
        %v2057 = vadd.f32 0.0, %v2056
        %v2058 = vpop.f32.mrf.mxu0
        %v2059 = vpop.f32.mrf.mxu0
        %v2060 = vadd.f32 0.0, %v2059
        %v2061 = vpop.f32.mrf.mxu0
        %2062 = vmatprep.mubr.bf16.mxu0 0
        %2063 = vmatmul.mubr.bf16.gmra.mxu0 %v1110
        %v2064 = vpop.f32.mrf.mxu0
        %v2065 = vadd.f32 0.0, %v2064
        %v2066 = vpop.f32.mrf.mxu0
        %v2067 = vpop.f32.mrf.mxu0
        %v2068 = vadd.f32 0.0, %v2067
        %v2069 = vpop.f32.mrf.mxu0
        %2070 = vmatprep.mubr.bf16.mxu0 0
        %2071 = vmatmul.mubr.bf16.gmra.mxu0 %v1111
        %v2072 = vpop.f32.mrf.mxu0
        %v2073 = vadd.f32 0.0, %v2072
        %v2074 = vpop.f32.mrf.mxu0
        %v2075 = vpop.f32.mrf.mxu0
        %v2076 = vadd.f32 0.0, %v2075
        %v2077 = vpop.f32.mrf.mxu0
        %2078 = vmatprep.mubr.bf16.mxu0 0
        %2079 = vmatmul.mubr.bf16.gmra.mxu0 %v1112
        %v2080 = vpop.f32.mrf.mxu0
        %v2081 = vadd.f32 0.0, %v2080
        %v2082 = vpop.f32.mrf.mxu0
        %v2083 = vpop.f32.mrf.mxu0
        %v2084 = vadd.f32 0.0, %v2083
        %v2085 = vpop.f32.mrf.mxu0
        %2086 = vmatprep.mubr.bf16.mxu0 0
        %2087 = vmatmul.mubr.bf16.gmra.mxu0 %v1113
        %v2088 = vpop.f32.mrf.mxu0
        %v2089 = vadd.f32 0.0, %v2088
        %v2090 = vpop.f32.mrf.mxu0
        %v2091 = vpop.f32.mrf.mxu0
        %v2092 = vadd.f32 0.0, %v2091
        %v2093 = vpop.f32.mrf.mxu0
        %2094 = vmatprep.mubr.bf16.mxu0 0
        %2095 = vmatmul.mubr.bf16.gmra.mxu0 %v1114
        %v2096 = vpop.f32.mrf.mxu0
        %v2097 = vadd.f32 0.0, %v2096
        %v2098 = vpop.f32.mrf.mxu0
        %v2099 = vpop.f32.mrf.mxu0
        %v2100 = vadd.f32 0.0, %v2099
        %v2101 = vpop.f32.mrf.mxu0
        %2102 = vmatprep.mubr.bf16.mxu0 0
        %2103 = vmatmul.mubr.bf16.gmra.mxu0 %v1115
        %v2104 = vpop.f32.mrf.mxu0
        %v2105 = vadd.f32 0.0, %v2104
        %v2106 = vpop.f32.mrf.mxu0
        %v2107 = vpop.f32.mrf.mxu0
        %v2108 = vadd.f32 0.0, %v2107
        %v2109 = vpop.f32.mrf.mxu0
        %2110 = vmatprep.mubr.bf16.mxu0 0
        %2111 = vmatmul.mubr.bf16.gmra.mxu0 %v1116
        %v2112 = vpop.f32.mrf.mxu0
        %v2113 = vadd.f32 0.0, %v2112
        %v2114 = vpop.f32.mrf.mxu0
        %v2115 = vpop.f32.mrf.mxu0
        %v2116 = vadd.f32 0.0, %v2115
        %v2117 = vpop.f32.mrf.mxu0
        %2118 = vmatprep.mubr.bf16.mxu0 0
        %2119 = vmatmul.mubr.bf16.gmra.mxu0 %v1117
        %v2120 = vpop.f32.mrf.mxu0
        %v2121 = vadd.f32 0.0, %v2120
        %v2122 = vpop.f32.mrf.mxu0
        %v2123 = vpop.f32.mrf.mxu0
        %v2124 = vadd.f32 0.0, %v2123
        %v2125 = vpop.f32.mrf.mxu0
        %2126 = vmatprep.mubr.bf16.mxu0 0
        %2127 = vmatmul.mubr.bf16.gmra.mxu0 %v1118
        %v2128 = vpop.f32.mrf.mxu0
        %v2129 = vadd.f32 0.0, %v2128
        %v2130 = vpop.f32.mrf.mxu0
        %v2131 = vpop.f32.mrf.mxu0
        %v2132 = vadd.f32 0.0, %v2131
        %v2133 = vpop.f32.mrf.mxu0
        %2134 = vmatprep.mubr.bf16.mxu0 0
        %2135 = vmatmul.mubr.bf16.gmra.mxu0 %v1119
        %v2136 = vpop.f32.mrf.mxu0
        %v2137 = vadd.f32 0.0, %v2136
        %v2138 = vpop.f32.mrf.mxu0
        %v2139 = vpop.f32.mrf.mxu0
        %v2140 = vadd.f32 0.0, %v2139
        %v2141 = vpop.f32.mrf.mxu0
        %2142 = vmatprep.mubr.bf16.mxu0 0
        %2143 = vmatmul.mubr.bf16.gmra.mxu0 %v1120
        %v2144 = vpop.f32.mrf.mxu0
        %v2145 = vadd.f32 0.0, %v2144
        %v2146 = vpop.f32.mrf.mxu0
        %v2147 = vpop.f32.mrf.mxu0
        %v2148 = vadd.f32 0.0, %v2147
        %v2149 = vpop.f32.mrf.mxu0
        %2150 = vmatprep.mubr.bf16.mxu0 0
        %2151 = vmatmul.mubr.bf16.gmra.mxu0 %v1121
        %v2152 = vpop.f32.mrf.mxu0
        %v2153 = vadd.f32 0.0, %v2152
        %v2154 = vpop.f32.mrf.mxu0
        %v2155 = vpop.f32.mrf.mxu0
        %v2156 = vadd.f32 0.0, %v2155
        %v2157 = vpop.f32.mrf.mxu0
        %2158 = vmatprep.mubr.bf16.mxu0 0
        %2159 = vmatmul.mubr.bf16.gmra.mxu0 %v1122
        %v2160 = vpop.f32.mrf.mxu0
        %v2161 = vadd.f32 0.0, %v2160
        %v2162 = vpop.f32.mrf.mxu0
        %v2163 = vpop.f32.mrf.mxu0
        %v2164 = vadd.f32 0.0, %v2163
        %v2165 = vpop.f32.mrf.mxu0
        %2166 = vmatprep.mubr.bf16.mxu0 0
        %2167 = vmatmul.mubr.bf16.gmra.mxu0 %v1123
        %v2168 = vpop.f32.mrf.mxu0
        %v2169 = vadd.f32 0.0, %v2168
        %v2170 = vpop.f32.mrf.mxu0
        %v2171 = vpop.f32.mrf.mxu0
        %v2172 = vadd.f32 0.0, %v2171
        %v2173 = vpop.f32.mrf.mxu0
        %2174 = vmatprep.mubr.bf16.mxu0 0
        %2175 = vmatmul.mubr.bf16.gmra.mxu0 %v1124
        %v2176 = vpop.f32.mrf.mxu0
        %v2177 = vadd.f32 0.0, %v2176
        %v2178 = vpop.f32.mrf.mxu0
        %v2179 = vpop.f32.mrf.mxu0
        %v2180 = vadd.f32 0.0, %v2179
        %v2181 = vpop.f32.mrf.mxu0
        %2182 = vmatprep.mubr.bf16.mxu0 0
        %2183 = vmatmul.mubr.bf16.gmra.mxu0 %v1125
        %v2184 = vpop.f32.mrf.mxu0
        %v2185 = vadd.f32 0.0, %v2184
        %v2186 = vpop.f32.mrf.mxu0
        %v2187 = vpop.f32.mrf.mxu0
        %v2188 = vadd.f32 0.0, %v2187
        %v2189 = vpop.f32.mrf.mxu0
        %2190 = vmatprep.mubr.bf16.mxu0 0
        %2191 = vmatmul.mubr.bf16.gmra.mxu0 %v1126
        %v2192 = vpop.f32.mrf.mxu0
        %v2193 = vadd.f32 0.0, %v2192
        %v2194 = vpop.f32.mrf.mxu0
        %v2195 = vpop.f32.mrf.mxu0
        %v2196 = vadd.f32 0.0, %v2195
        %v2197 = vpop.f32.mrf.mxu0
        %2198 = vmatprep.mubr.bf16.mxu0 0
        %2199 = vmatmul.mubr.bf16.gmra.mxu0 %v1127
        %v2200 = vpop.f32.mrf.mxu0
        %v2201 = vadd.f32 0.0, %v2200
        %v2202 = vpop.f32.mrf.mxu0
        %v2203 = vpop.f32.mrf.mxu0
        %v2204 = vadd.f32 0.0, %v2203
        %v2205 = vpop.f32.mrf.mxu0
        %2206 = vmatprep.mubr.bf16.mxu0 0
        %2207 = vmatmul.mubr.bf16.gmra.mxu0 %v1128
        %v2208 = vpop.f32.mrf.mxu0
        %v2209 = vadd.f32 0.0, %v2208
        %v2210 = vpop.f32.mrf.mxu0
        %v2211 = vpop.f32.mrf.mxu0
        %v2212 = vadd.f32 0.0, %v2211
        %v2213 = vpop.f32.mrf.mxu0
        %2214 = vmatprep.mubr.bf16.mxu0 0
        %2215 = vmatmul.mubr.bf16.gmra.mxu0 %v1129
        %v2216 = vpop.f32.mrf.mxu0
        %v2217 = vadd.f32 0.0, %v2216
        %v2218 = vpop.f32.mrf.mxu0
        %v2219 = vpop.f32.mrf.mxu0
        %v2220 = vadd.f32 0.0, %v2219
        %v2221 = vpop.f32.mrf.mxu0
        %2222 = vmatprep.mubr.bf16.mxu0 0
        %2223 = vmatmul.mubr.bf16.gmra.mxu0 %v1130
        %v2224 = vpop.f32.mrf.mxu0
        %v2225 = vadd.f32 0.0, %v2224
        %v2226 = vpop.f32.mrf.mxu0
        %v2227 = vpop.f32.mrf.mxu0
        %v2228 = vadd.f32 0.0, %v2227
        %v2229 = vpop.f32.mrf.mxu0
        %2230 = vmatprep.mubr.bf16.mxu0 0
        %2231 = vmatmul.mubr.bf16.gmra.mxu0 %v1131
        %v2232 = vpop.f32.mrf.mxu0
        %v2233 = vadd.f32 0.0, %v2232
        %v2234 = vpop.f32.mrf.mxu0
        %v2235 = vpop.f32.mrf.mxu0
        %v2236 = vadd.f32 0.0, %v2235
        %v2237 = vpop.f32.mrf.mxu0
        %2238 = vmatprep.mubr.bf16.mxu0 0
        %2239 = vmatmul.mubr.bf16.gmra.mxu0 %v1132
        %v2240 = vpop.f32.mrf.mxu0
        %v2241 = vadd.f32 0.0, %v2240
        %v2242 = vpop.f32.mrf.mxu0
        %v2243 = vpop.f32.mrf.mxu0
        %v2244 = vadd.f32 0.0, %v2243
        %v2245 = vpop.f32.mrf.mxu0
        %2246 = vmatprep.mubr.bf16.mxu0 0
        %2247 = vmatmul.mubr.bf16.gmra.mxu0 %v1133
        %v2248 = vpop.f32.mrf.mxu0
        %v2249 = vadd.f32 0.0, %v2248
        %v2250 = vpop.f32.mrf.mxu0
        %v2251 = vpop.f32.mrf.mxu0
        %v2252 = vadd.f32 0.0, %v2251
        %v2253 = vpop.f32.mrf.mxu0
        %2254 = vmatprep.mubr.bf16.mxu0 0
        %2255 = vmatmul.mubr.bf16.gmra.mxu0 %v1134
        %v2256 = vpop.f32.mrf.mxu0
        %v2257 = vadd.f32 0.0, %v2256
        %v2258 = vpop.f32.mrf.mxu0
        %v2259 = vpop.f32.mrf.mxu0
        %v2260 = vadd.f32 0.0, %v2259
        %v2261 = vpop.f32.mrf.mxu0
        %2262 = vmatprep.mubr.bf16.mxu0 0
        %2263 = vmatmul.mubr.bf16.gmra.mxu0 %v1135
        %v2264 = vpop.f32.mrf.mxu0
        %v2265 = vadd.f32 0.0, %v2264
        %v2266 = vpop.f32.mrf.mxu0
        %v2267 = vpop.f32.mrf.mxu0
        %v2268 = vadd.f32 0.0, %v2267
        %v2269 = vpop.f32.mrf.mxu0
        %2270 = vmatprep.mubr.bf16.mxu0 0
        %2271 = vmatmul.mubr.bf16.gmra.mxu0 %v1136
        %v2272 = vpop.f32.mrf.mxu0
        %v2273 = vadd.f32 0.0, %v2272
        %v2274 = vpop.f32.mrf.mxu0
        %v2275 = vpop.f32.mrf.mxu0
        %v2276 = vadd.f32 0.0, %v2275
        %v2277 = vpop.f32.mrf.mxu0
        %2278 = vmatprep.mubr.bf16.mxu0 0
        %2279 = vmatmul.mubr.bf16.gmra.mxu0 %v1137
        %v2280 = vpop.f32.mrf.mxu0
        %v2281 = vadd.f32 0.0, %v2280
        %v2282 = vpop.f32.mrf.mxu0
        %v2283 = vpop.f32.mrf.mxu0
        %v2284 = vadd.f32 0.0, %v2283
        %v2285 = vpop.f32.mrf.mxu0
        %2286 = vmatprep.mubr.bf16.mxu0 0
        %2287 = vmatmul.mubr.bf16.gmra.mxu0 %v1138
        %v2288 = vpop.f32.mrf.mxu0
        %v2289 = vadd.f32 0.0, %v2288
        %v2290 = vpop.f32.mrf.mxu0
        %v2291 = vpop.f32.mrf.mxu0
        %v2292 = vadd.f32 0.0, %v2291
        %v2293 = vpop.f32.mrf.mxu0
        %2294 = vmatprep.mubr.bf16.mxu0 0
        %2295 = vmatmul.mubr.bf16.gmra.mxu0 %v1139
        %v2296 = vpop.f32.mrf.mxu0
        %v2297 = vadd.f32 0.0, %v2296
        %v2298 = vpop.f32.mrf.mxu0
        %v2299 = vpop.f32.mrf.mxu0
        %v2300 = vadd.f32 0.0, %v2299
        %v2301 = vpop.f32.mrf.mxu0
        %2302 = vmatprep.mubr.bf16.mxu0 0
        %2303 = vmatmul.mubr.bf16.gmra.mxu0 %v1140
        %v2304 = vpop.f32.mrf.mxu0
        %v2305 = vadd.f32 0.0, %v2304
        %v2306 = vpop.f32.mrf.mxu0
        %v2307 = vpop.f32.mrf.mxu0
        %v2308 = vadd.f32 0.0, %v2307
        %v2309 = vpop.f32.mrf.mxu0
        %2310 = vmatprep.mubr.bf16.mxu0 0
        %2311 = vmatmul.mubr.bf16.gmra.mxu0 %v1141
        %v2312 = vpop.f32.mrf.mxu0
        %v2313 = vadd.f32 0.0, %v2312
        %v2314 = vpop.f32.mrf.mxu0
        %v2315 = vpop.f32.mrf.mxu0
        %v2316 = vadd.f32 0.0, %v2315
        %v2317 = vpop.f32.mrf.mxu0
        %2318 = vmatprep.mubr.bf16.mxu0 0
        %2319 = vmatmul.mubr.bf16.gmra.mxu0 %v1142
        %v2320 = vpop.f32.mrf.mxu0
        %v2321 = vadd.f32 0.0, %v2320
        %v2322 = vpop.f32.mrf.mxu0
        %v2323 = vpop.f32.mrf.mxu0
        %v2324 = vadd.f32 0.0, %v2323
        %v2325 = vpop.f32.mrf.mxu0
        %2326 = vmatprep.mubr.bf16.mxu0 0
        %2327 = vmatmul.mubr.bf16.gmra.mxu0 %v1143
        %v2328 = vpop.f32.mrf.mxu0
        %v2329 = vadd.f32 0.0, %v2328
        %v2330 = vpop.f32.mrf.mxu0
        %v2331 = vpop.f32.mrf.mxu0
        %v2332 = vadd.f32 0.0, %v2331
        %v2333 = vpop.f32.mrf.mxu0
        %2334 = vmatprep.mubr.bf16.mxu0 0
        %2335 = vmatmul.mubr.bf16.gmra.mxu0 %v1144
        %v2336 = vpop.f32.mrf.mxu0
        %v2337 = vadd.f32 0.0, %v2336
        %v2338 = vpop.f32.mrf.mxu0
        %v2339 = vpop.f32.mrf.mxu0
        %v2340 = vadd.f32 0.0, %v2339
        %v2341 = vpop.f32.mrf.mxu0
        %2342 = vmatprep.mubr.bf16.mxu0 0
        %2343 = vmatmul.mubr.bf16.gmra.mxu0 %v1145
        %v2344 = vpop.f32.mrf.mxu0
        %v2345 = vadd.f32 0.0, %v2344
        %v2346 = vpop.f32.mrf.mxu0
        %v2347 = vpop.f32.mrf.mxu0
        %v2348 = vadd.f32 0.0, %v2347
        %v2349 = vpop.f32.mrf.mxu0
        %2350 = vmatprep.mubr.bf16.mxu0 0
        %2351 = vmatmul.mubr.bf16.gmra.mxu0 %v1146
        %v2352 = vpop.f32.mrf.mxu0
        %v2353 = vadd.f32 0.0, %v2352
        %v2354 = vpop.f32.mrf.mxu0
        %v2355 = vpop.f32.mrf.mxu0
        %v2356 = vadd.f32 0.0, %v2355
        %v2357 = vpop.f32.mrf.mxu0
        %2358 = vmatprep.mubr.bf16.mxu0 0
        %2359 = vmatmul.mubr.bf16.gmra.mxu0 %v1147
        %v2360 = vpop.f32.mrf.mxu0
        %v2361 = vadd.f32 0.0, %v2360
        %v2362 = vpop.f32.mrf.mxu0
        %v2363 = vpop.f32.mrf.mxu0
        %v2364 = vadd.f32 0.0, %v2363
        %v2365 = vpop.f32.mrf.mxu0
        %2366 = vmatprep.mubr.bf16.mxu0 0
        %2367 = vmatmul.mubr.bf16.gmra.mxu0 %v1148
        %v2368 = vpop.f32.mrf.mxu0
        %v2369 = vadd.f32 0.0, %v2368
        %v2370 = vpop.f32.mrf.mxu0
        %v2371 = vpop.f32.mrf.mxu0
        %v2372 = vadd.f32 0.0, %v2371
        %v2373 = vpop.f32.mrf.mxu0
        %2374 = vmatprep.mubr.bf16.mxu0 0
        %2375 = vmatmul.mubr.bf16.gmra.mxu0 %v1149
        %v2376 = vpop.f32.mrf.mxu0
        %v2377 = vadd.f32 0.0, %v2376
        %v2378 = vpop.f32.mrf.mxu0
        %v2379 = vpop.f32.mrf.mxu0
        %v2380 = vadd.f32 0.0, %v2379
        %v2381 = vpop.f32.mrf.mxu0
        %2382 = vdwg.mxu0
        %p2383 = scmp.eq.s32.totalorder %s30, 0
        // Predicated region
        $region37: #{tpu_custom_call.1} parent=27 // pred_check
          %p2384 = pneg %p2383
        $region38: #{tpu_custom_call.1} parent=27 // pred_check_branch
          %2386 = sbr.rel (%p2384) target = $region40
        $region39: #{tpu_custom_call.1} parent=27 // pred_region
          %2387 = vst [vmem:[%s222] sm:$0xff] %v1361
          %2388 = vst [vmem:[%s222 + $0x8] sm:$0xff] %v1364
          %2389 = vst [vmem:[%s222 + $0x10] sm:$0xff] %v1369
          %2390 = vst [vmem:[%s222 + $0x18] sm:$0xff] %v1372
          %2391 = vst [vmem:[%s222 + $0x20] sm:$0xff] %v1377
          %2392 = vst [vmem:[%s222 + $0x28] sm:$0xff] %v1380
          %2393 = vst [vmem:[%s222 + $0x30] sm:$0xff] %v1385
          %2394 = vst [vmem:[%s222 + $0x38] sm:$0xff] %v1388
          %2395 = vst [vmem:[%s222 + $0x40] sm:$0xff] %v1393
          %2396 = vst [vmem:[%s222 + $0x48] sm:$0xff] %v1396
          %2397 = vst [vmem:[%s222 + $0x50] sm:$0xff] %v1401
          %2398 = vst [vmem:[%s222 + $0x58] sm:$0xff] %v1404
          %2399 = vst [vmem:[%s222 + $0x60] sm:$0xff] %v1409
          %2400 = vst [vmem:[%s222 + $0x68] sm:$0xff] %v1412
          %2401 = vst [vmem:[%s222 + $0x70] sm:$0xff] %v1417
          %2402 = vst [vmem:[%s222 + $0x78] sm:$0xff] %v1420
          %2403 = vst [vmem:[%s222 + $0x80] sm:$0xff] %v1425
          %2404 = vst [vmem:[%s222 + $0x88] sm:$0xff] %v1428
          %2405 = vst [vmem:[%s222 + $0x90] sm:$0xff] %v1433
          %2406 = vst [vmem:[%s222 + $0x98] sm:$0xff] %v1436
          %2407 = vst [vmem:[%s222 + $0xa0] sm:$0xff] %v1441
          %2408 = vst [vmem:[%s222 + $0xa8] sm:$0xff] %v1444
          %2409 = vst [vmem:[%s222 + $0xb0] sm:$0xff] %v1449
          %2410 = vst [vmem:[%s222 + $0xb8] sm:$0xff] %v1452
          %2411 = vst [vmem:[%s222 + $0xc0] sm:$0xff] %v1457
          %2412 = vst [vmem:[%s222 + $0xc8] sm:$0xff] %v1460
          %2413 = vst [vmem:[%s222 + $0xd0] sm:$0xff] %v1465
          %2414 = vst [vmem:[%s222 + $0xd8] sm:$0xff] %v1468
          %2415 = vst [vmem:[%s222 + $0xe0] sm:$0xff] %v1473
          %2416 = vst [vmem:[%s222 + $0xe8] sm:$0xff] %v1476
          %2417 = vst [vmem:[%s222 + $0xf0] sm:$0xff] %v1481
          %2418 = vst [vmem:[%s222 + $0xf8] sm:$0xff] %v1484
          %2419 = vst [vmem:[%s222 + $0x100] sm:$0xff] %v1489
          %2420 = vst [vmem:[%s222 + $0x108] sm:$0xff] %v1492
          %2421 = vst [vmem:[%s222 + $0x110] sm:$0xff] %v1497
          %2422 = vst [vmem:[%s222 + $0x118] sm:$0xff] %v1500
          %2423 = vst [vmem:[%s222 + $0x120] sm:$0xff] %v1505
          %2424 = vst [vmem:[%s222 + $0x128] sm:$0xff] %v1508
          %2425 = vst [vmem:[%s222 + $0x130] sm:$0xff] %v1513
          %2426 = vst [vmem:[%s222 + $0x138] sm:$0xff] %v1516
          %2427 = vst [vmem:[%s222 + $0x140] sm:$0xff] %v1521
          %2428 = vst [vmem:[%s222 + $0x148] sm:$0xff] %v1524
          %2429 = vst [vmem:[%s222 + $0x150] sm:$0xff] %v1529
          %2430 = vst [vmem:[%s222 + $0x158] sm:$0xff] %v1532
          %2431 = vst [vmem:[%s222 + $0x160] sm:$0xff] %v1537
          %2432 = vst [vmem:[%s222 + $0x168] sm:$0xff] %v1540
          %2433 = vst [vmem:[%s222 + $0x170] sm:$0xff] %v1545
          %2434 = vst [vmem:[%s222 + $0x178] sm:$0xff] %v1548
          %2435 = vst [vmem:[%s222 + $0x180] sm:$0xff] %v1553
          %2436 = vst [vmem:[%s222 + $0x188] sm:$0xff] %v1556
          %2437 = vst [vmem:[%s222 + $0x190] sm:$0xff] %v1561
          %2438 = vst [vmem:[%s222 + $0x198] sm:$0xff] %v1564
          %2439 = vst [vmem:[%s222 + $0x1a0] sm:$0xff] %v1569
          %2440 = vst [vmem:[%s222 + $0x1a8] sm:$0xff] %v1572
          %2441 = vst [vmem:[%s222 + $0x1b0] sm:$0xff] %v1577
          %2442 = vst [vmem:[%s222 + $0x1b8] sm:$0xff] %v1580
          %2443 = vst [vmem:[%s222 + $0x1c0] sm:$0xff] %v1585
          %2444 = vst [vmem:[%s222 + $0x1c8] sm:$0xff] %v1588
          %2445 = vst [vmem:[%s222 + $0x1d0] sm:$0xff] %v1593
          %2446 = vst [vmem:[%s222 + $0x1d8] sm:$0xff] %v1596
          %2447 = vst [vmem:[%s222 + $0x1e0] sm:$0xff] %v1601
          %2448 = vst [vmem:[%s222 + $0x1e8] sm:$0xff] %v1604
          %2449 = vst [vmem:[%s222 + $0x1f0] sm:$0xff] %v1609
          %2450 = vst [vmem:[%s222 + $0x1f8] sm:$0xff] %v1612
          %2451 = vst [vmem:[%s222 + $0x200] sm:$0xff] %v1617
          %2452 = vst [vmem:[%s222 + $0x208] sm:$0xff] %v1620
          %2453 = vst [vmem:[%s222 + $0x210] sm:$0xff] %v1625
          %2454 = vst [vmem:[%s222 + $0x218] sm:$0xff] %v1628
          %2455 = vst [vmem:[%s222 + $0x220] sm:$0xff] %v1633
          %2456 = vst [vmem:[%s222 + $0x228] sm:$0xff] %v1636
          %2457 = vst [vmem:[%s222 + $0x230] sm:$0xff] %v1641
          %2458 = vst [vmem:[%s222 + $0x238] sm:$0xff] %v1644
          %2459 = vst [vmem:[%s222 + $0x240] sm:$0xff] %v1649
          %2460 = vst [vmem:[%s222 + $0x248] sm:$0xff] %v1652
          %2461 = vst [vmem:[%s222 + $0x250] sm:$0xff] %v1657
          %2462 = vst [vmem:[%s222 + $0x258] sm:$0xff] %v1660
          %2463 = vst [vmem:[%s222 + $0x260] sm:$0xff] %v1665
          %2464 = vst [vmem:[%s222 + $0x268] sm:$0xff] %v1668
          %2465 = vst [vmem:[%s222 + $0x270] sm:$0xff] %v1673
          %2466 = vst [vmem:[%s222 + $0x278] sm:$0xff] %v1676
          %2467 = vst [vmem:[%s222 + $0x280] sm:$0xff] %v1681
          %2468 = vst [vmem:[%s222 + $0x288] sm:$0xff] %v1684
          %2469 = vst [vmem:[%s222 + $0x290] sm:$0xff] %v1689
          %2470 = vst [vmem:[%s222 + $0x298] sm:$0xff] %v1692
          %2471 = vst [vmem:[%s222 + $0x2a0] sm:$0xff] %v1697
          %2472 = vst [vmem:[%s222 + $0x2a8] sm:$0xff] %v1700
          %2473 = vst [vmem:[%s222 + $0x2b0] sm:$0xff] %v1705
          %2474 = vst [vmem:[%s222 + $0x2b8] sm:$0xff] %v1708
          %2475 = vst [vmem:[%s222 + $0x2c0] sm:$0xff] %v1713
          %2476 = vst [vmem:[%s222 + $0x2c8] sm:$0xff] %v1716
          %2477 = vst [vmem:[%s222 + $0x2d0] sm:$0xff] %v1721
          %2478 = vst [vmem:[%s222 + $0x2d8] sm:$0xff] %v1724
          %2479 = vst [vmem:[%s222 + $0x2e0] sm:$0xff] %v1729
          %2480 = vst [vmem:[%s222 + $0x2e8] sm:$0xff] %v1732
          %2481 = vst [vmem:[%s222 + $0x2f0] sm:$0xff] %v1737
          %2482 = vst [vmem:[%s222 + $0x2f8] sm:$0xff] %v1740
          %2483 = vst [vmem:[%s222 + $0x300] sm:$0xff] %v1745
          %2484 = vst [vmem:[%s222 + $0x308] sm:$0xff] %v1748
          %2485 = vst [vmem:[%s222 + $0x310] sm:$0xff] %v1753
          %2486 = vst [vmem:[%s222 + $0x318] sm:$0xff] %v1756
          %2487 = vst [vmem:[%s222 + $0x320] sm:$0xff] %v1761
          %2488 = vst [vmem:[%s222 + $0x328] sm:$0xff] %v1764
          %2489 = vst [vmem:[%s222 + $0x330] sm:$0xff] %v1769
          %2490 = vst [vmem:[%s222 + $0x338] sm:$0xff] %v1772
          %2491 = vst [vmem:[%s222 + $0x340] sm:$0xff] %v1777
          %2492 = vst [vmem:[%s222 + $0x348] sm:$0xff] %v1780
          %2493 = vst [vmem:[%s222 + $0x350] sm:$0xff] %v1785
          %2494 = vst [vmem:[%s222 + $0x358] sm:$0xff] %v1788
          %2495 = vst [vmem:[%s222 + $0x360] sm:$0xff] %v1793
          %2496 = vst [vmem:[%s222 + $0x368] sm:$0xff] %v1796
          %2497 = vst [vmem:[%s222 + $0x370] sm:$0xff] %v1801
          %2498 = vst [vmem:[%s222 + $0x378] sm:$0xff] %v1804
          %2499 = vst [vmem:[%s222 + $0x380] sm:$0xff] %v1809
          %2500 = vst [vmem:[%s222 + $0x388] sm:$0xff] %v1812
          %2501 = vst [vmem:[%s222 + $0x390] sm:$0xff] %v1817
          %2502 = vst [vmem:[%s222 + $0x398] sm:$0xff] %v1820
          %2503 = vst [vmem:[%s222 + $0x3a0] sm:$0xff] %v1825
          %2504 = vst [vmem:[%s222 + $0x3a8] sm:$0xff] %v1828
          %2505 = vst [vmem:[%s222 + $0x3b0] sm:$0xff] %v1833
          %2506 = vst [vmem:[%s222 + $0x3b8] sm:$0xff] %v1836
          %2507 = vst [vmem:[%s222 + $0x3c0] sm:$0xff] %v1841
          %2508 = vst [vmem:[%s222 + $0x3c8] sm:$0xff] %v1844
          %2509 = vst [vmem:[%s222 + $0x3d0] sm:$0xff] %v1849
          %2510 = vst [vmem:[%s222 + $0x3d8] sm:$0xff] %v1852
          %2511 = vst [vmem:[%s222 + $0x3e0] sm:$0xff] %v1857
          %2512 = vst [vmem:[%s222 + $0x3e8] sm:$0xff] %v1860
          %2513 = vst [vmem:[%s222 + $0x3f0] sm:$0xff] %v1865
          %2514 = vst [vmem:[%s222 + $0x3f8] sm:$0xff] %v1868
          %2515 = vst [vmem:[%s222 + $0x400] sm:$0xff] %v1873
          %2516 = vst [vmem:[%s222 + $0x408] sm:$0xff] %v1876
          %2517 = vst [vmem:[%s222 + $0x410] sm:$0xff] %v1881
          %2518 = vst [vmem:[%s222 + $0x418] sm:$0xff] %v1884
          %2519 = vst [vmem:[%s222 + $0x420] sm:$0xff] %v1889
          %2520 = vst [vmem:[%s222 + $0x428] sm:$0xff] %v1892
          %2521 = vst [vmem:[%s222 + $0x430] sm:$0xff] %v1897
          %2522 = vst [vmem:[%s222 + $0x438] sm:$0xff] %v1900
          %2523 = vst [vmem:[%s222 + $0x440] sm:$0xff] %v1905
          %2524 = vst [vmem:[%s222 + $0x448] sm:$0xff] %v1908
          %2525 = vst [vmem:[%s222 + $0x450] sm:$0xff] %v1913
          %2526 = vst [vmem:[%s222 + $0x458] sm:$0xff] %v1916
          %2527 = vst [vmem:[%s222 + $0x460] sm:$0xff] %v1921
          %2528 = vst [vmem:[%s222 + $0x468] sm:$0xff] %v1924
          %2529 = vst [vmem:[%s222 + $0x470] sm:$0xff] %v1929
          %2530 = vst [vmem:[%s222 + $0x478] sm:$0xff] %v1932
          %2531 = vst [vmem:[%s222 + $0x480] sm:$0xff] %v1937
          %2532 = vst [vmem:[%s222 + $0x488] sm:$0xff] %v1940
          %2533 = vst [vmem:[%s222 + $0x490] sm:$0xff] %v1945
          %2534 = vst [vmem:[%s222 + $0x498] sm:$0xff] %v1948
          %2535 = vst [vmem:[%s222 + $0x4a0] sm:$0xff] %v1953
          %2536 = vst [vmem:[%s222 + $0x4a8] sm:$0xff] %v1956
          %2537 = vst [vmem:[%s222 + $0x4b0] sm:$0xff] %v1961
          %2538 = vst [vmem:[%s222 + $0x4b8] sm:$0xff] %v1964
          %2539 = vst [vmem:[%s222 + $0x4c0] sm:$0xff] %v1969
          %2540 = vst [vmem:[%s222 + $0x4c8] sm:$0xff] %v1972
          %2541 = vst [vmem:[%s222 + $0x4d0] sm:$0xff] %v1977
          %2542 = vst [vmem:[%s222 + $0x4d8] sm:$0xff] %v1980
          %2543 = vst [vmem:[%s222 + $0x4e0] sm:$0xff] %v1985
          %2544 = vst [vmem:[%s222 + $0x4e8] sm:$0xff] %v1988
          %2545 = vst [vmem:[%s222 + $0x4f0] sm:$0xff] %v1993
          %2546 = vst [vmem:[%s222 + $0x4f8] sm:$0xff] %v1996
          %2547 = vst [vmem:[%s222 + $0x500] sm:$0xff] %v2001
          %2548 = vst [vmem:[%s222 + $0x508] sm:$0xff] %v2004
          %2549 = vst [vmem:[%s222 + $0x510] sm:$0xff] %v2009
          %2550 = vst [vmem:[%s222 + $0x518] sm:$0xff] %v2012
          %2551 = vst [vmem:[%s222 + $0x520] sm:$0xff] %v2017
          %2552 = vst [vmem:[%s222 + $0x528] sm:$0xff] %v2020
          %2553 = vst [vmem:[%s222 + $0x530] sm:$0xff] %v2025
          %2554 = vst [vmem:[%s222 + $0x538] sm:$0xff] %v2028
          %2555 = vst [vmem:[%s222 + $0x540] sm:$0xff] %v2033
          %2556 = vst [vmem:[%s222 + $0x548] sm:$0xff] %v2036
          %2557 = vst [vmem:[%s222 + $0x550] sm:$0xff] %v2041
          %2558 = vst [vmem:[%s222 + $0x558] sm:$0xff] %v2044
          %2559 = vst [vmem:[%s222 + $0x560] sm:$0xff] %v2049
          %2560 = vst [vmem:[%s222 + $0x568] sm:$0xff] %v2052
          %2561 = vst [vmem:[%s222 + $0x570] sm:$0xff] %v2057
          %2562 = vst [vmem:[%s222 + $0x578] sm:$0xff] %v2060
          %2563 = vst [vmem:[%s222 + $0x580] sm:$0xff] %v2065
          %2564 = vst [vmem:[%s222 + $0x588] sm:$0xff] %v2068
          %2565 = vst [vmem:[%s222 + $0x590] sm:$0xff] %v2073
          %2566 = vst [vmem:[%s222 + $0x598] sm:$0xff] %v2076
          %2567 = vst [vmem:[%s222 + $0x5a0] sm:$0xff] %v2081
          %2568 = vst [vmem:[%s222 + $0x5a8] sm:$0xff] %v2084
          %2569 = vst [vmem:[%s222 + $0x5b0] sm:$0xff] %v2089
          %2570 = vst [vmem:[%s222 + $0x5b8] sm:$0xff] %v2092
          %2571 = vst [vmem:[%s222 + $0x5c0] sm:$0xff] %v2097
          %2572 = vst [vmem:[%s222 + $0x5c8] sm:$0xff] %v2100
          %2573 = vst [vmem:[%s222 + $0x5d0] sm:$0xff] %v2105
          %2574 = vst [vmem:[%s222 + $0x5d8] sm:$0xff] %v2108
          %2575 = vst [vmem:[%s222 + $0x5e0] sm:$0xff] %v2113
          %2576 = vst [vmem:[%s222 + $0x5e8] sm:$0xff] %v2116
          %2577 = vst [vmem:[%s222 + $0x5f0] sm:$0xff] %v2121
          %2578 = vst [vmem:[%s222 + $0x5f8] sm:$0xff] %v2124
          %2579 = vst [vmem:[%s222 + $0x600] sm:$0xff] %v2129
          %2580 = vst [vmem:[%s222 + $0x608] sm:$0xff] %v2132
          %2581 = vst [vmem:[%s222 + $0x610] sm:$0xff] %v2137
          %2582 = vst [vmem:[%s222 + $0x618] sm:$0xff] %v2140
          %2583 = vst [vmem:[%s222 + $0x620] sm:$0xff] %v2145
          %2584 = vst [vmem:[%s222 + $0x628] sm:$0xff] %v2148
          %2585 = vst [vmem:[%s222 + $0x630] sm:$0xff] %v2153
          %2586 = vst [vmem:[%s222 + $0x638] sm:$0xff] %v2156
          %2587 = vst [vmem:[%s222 + $0x640] sm:$0xff] %v2161
          %2588 = vst [vmem:[%s222 + $0x648] sm:$0xff] %v2164
          %2589 = vst [vmem:[%s222 + $0x650] sm:$0xff] %v2169
          %2590 = vst [vmem:[%s222 + $0x658] sm:$0xff] %v2172
          %2591 = vst [vmem:[%s222 + $0x660] sm:$0xff] %v2177
          %2592 = vst [vmem:[%s222 + $0x668] sm:$0xff] %v2180
          %2593 = vst [vmem:[%s222 + $0x670] sm:$0xff] %v2185
          %2594 = vst [vmem:[%s222 + $0x678] sm:$0xff] %v2188
          %2595 = vst [vmem:[%s222 + $0x680] sm:$0xff] %v2193
          %2596 = vst [vmem:[%s222 + $0x688] sm:$0xff] %v2196
          %2597 = vst [vmem:[%s222 + $0x690] sm:$0xff] %v2201
          %2598 = vst [vmem:[%s222 + $0x698] sm:$0xff] %v2204
          %2599 = vst [vmem:[%s222 + $0x6a0] sm:$0xff] %v2209
          %2600 = vst [vmem:[%s222 + $0x6a8] sm:$0xff] %v2212
          %2601 = vst [vmem:[%s222 + $0x6b0] sm:$0xff] %v2217
          %2602 = vst [vmem:[%s222 + $0x6b8] sm:$0xff] %v2220
          %2603 = vst [vmem:[%s222 + $0x6c0] sm:$0xff] %v2225
          %2604 = vst [vmem:[%s222 + $0x6c8] sm:$0xff] %v2228
          %2605 = vst [vmem:[%s222 + $0x6d0] sm:$0xff] %v2233
          %2606 = vst [vmem:[%s222 + $0x6d8] sm:$0xff] %v2236
          %2607 = vst [vmem:[%s222 + $0x6e0] sm:$0xff] %v2241
          %2608 = vst [vmem:[%s222 + $0x6e8] sm:$0xff] %v2244
          %2609 = vst [vmem:[%s222 + $0x6f0] sm:$0xff] %v2249
          %2610 = vst [vmem:[%s222 + $0x6f8] sm:$0xff] %v2252
          %2611 = vst [vmem:[%s222 + $0x700] sm:$0xff] %v2257
          %2612 = vst [vmem:[%s222 + $0x708] sm:$0xff] %v2260
          %2613 = vst [vmem:[%s222 + $0x710] sm:$0xff] %v2265
          %2614 = vst [vmem:[%s222 + $0x718] sm:$0xff] %v2268
          %2615 = vst [vmem:[%s222 + $0x720] sm:$0xff] %v2273
          %2616 = vst [vmem:[%s222 + $0x728] sm:$0xff] %v2276
          %2617 = vst [vmem:[%s222 + $0x730] sm:$0xff] %v2281
          %2618 = vst [vmem:[%s222 + $0x738] sm:$0xff] %v2284
          %2619 = vst [vmem:[%s222 + $0x740] sm:$0xff] %v2289
          %2620 = vst [vmem:[%s222 + $0x748] sm:$0xff] %v2292
          %2621 = vst [vmem:[%s222 + $0x750] sm:$0xff] %v2297
          %2622 = vst [vmem:[%s222 + $0x758] sm:$0xff] %v2300
          %2623 = vst [vmem:[%s222 + $0x760] sm:$0xff] %v2305
          %2624 = vst [vmem:[%s222 + $0x768] sm:$0xff] %v2308
          %2625 = vst [vmem:[%s222 + $0x770] sm:$0xff] %v2313
          %2626 = vst [vmem:[%s222 + $0x778] sm:$0xff] %v2316
          %2627 = vst [vmem:[%s222 + $0x780] sm:$0xff] %v2321
          %2628 = vst [vmem:[%s222 + $0x788] sm:$0xff] %v2324
          %2629 = vst [vmem:[%s222 + $0x790] sm:$0xff] %v2329
          %2630 = vst [vmem:[%s222 + $0x798] sm:$0xff] %v2332
          %2631 = vst [vmem:[%s222 + $0x7a0] sm:$0xff] %v2337
          %2632 = vst [vmem:[%s222 + $0x7a8] sm:$0xff] %v2340
          %2633 = vst [vmem:[%s222 + $0x7b0] sm:$0xff] %v2345
          %2634 = vst [vmem:[%s222 + $0x7b8] sm:$0xff] %v2348
          %2635 = vst [vmem:[%s222 + $0x7c0] sm:$0xff] %v2353
          %2636 = vst [vmem:[%s222 + $0x7c8] sm:$0xff] %v2356
          %2637 = vst [vmem:[%s222 + $0x7d0] sm:$0xff] %v2361
          %2638 = vst [vmem:[%s222 + $0x7d8] sm:$0xff] %v2364
          %2639 = vst [vmem:[%s222 + $0x7e0] sm:$0xff] %v2369
          %2640 = vst [vmem:[%s222 + $0x7e8] sm:$0xff] %v2372
          %2641 = vst [vmem:[%s222 + $0x7f0] sm:$0xff] %v2377
          %2642 = vst [vmem:[%s222 + $0x7f8] sm:$0xff] %v2380
        $region40: #{tpu_custom_call.1} parent=27 // pred_fallthru
          _
        %p2643 = scmp.gt.s32.totalorder %s30, 0
        // Predicated region
        $region41: #{tpu_custom_call.1} parent=27 // pred_check
          %p2644 = pneg %p2643
        $region42: #{tpu_custom_call.1} parent=27 // pred_check_branch
          %2646 = sbr.rel (%p2644) target = $region44
        $region43: #{tpu_custom_call.1} parent=27 // pred_region
          %v2647 = vld [vmem:[%s222] sm:$0xff]
          %v2648 = vld [vmem:[%s222 + $0x8] sm:$0xff]
          %v2649 = vld [vmem:[%s222 + $0x10] sm:$0xff]
          %v2650 = vld [vmem:[%s222 + $0x18] sm:$0xff]
          %v2651 = vld [vmem:[%s222 + $0x20] sm:$0xff]
          %v2652 = vld [vmem:[%s222 + $0x28] sm:$0xff]
          %v2653 = vld [vmem:[%s222 + $0x30] sm:$0xff]
          %v2654 = vld [vmem:[%s222 + $0x38] sm:$0xff]
          %v2655 = vld [vmem:[%s222 + $0x40] sm:$0xff]
          %v2656 = vld [vmem:[%s222 + $0x48] sm:$0xff]
          %v2657 = vld [vmem:[%s222 + $0x50] sm:$0xff]
          %v2658 = vld [vmem:[%s222 + $0x58] sm:$0xff]
          %v2659 = vld [vmem:[%s222 + $0x60] sm:$0xff]
          %v2660 = vld [vmem:[%s222 + $0x68] sm:$0xff]
          %v2661 = vld [vmem:[%s222 + $0x70] sm:$0xff]
          %v2662 = vld [vmem:[%s222 + $0x78] sm:$0xff]
          %v2663 = vld [vmem:[%s222 + $0x80] sm:$0xff]
          %v2664 = vld [vmem:[%s222 + $0x88] sm:$0xff]
          %v2665 = vld [vmem:[%s222 + $0x90] sm:$0xff]
          %v2666 = vld [vmem:[%s222 + $0x98] sm:$0xff]
          %v2667 = vld [vmem:[%s222 + $0xa0] sm:$0xff]
          %v2668 = vld [vmem:[%s222 + $0xa8] sm:$0xff]
          %v2669 = vld [vmem:[%s222 + $0xb0] sm:$0xff]
          %v2670 = vld [vmem:[%s222 + $0xb8] sm:$0xff]
          %v2671 = vld [vmem:[%s222 + $0xc0] sm:$0xff]
          %v2672 = vld [vmem:[%s222 + $0xc8] sm:$0xff]
          %v2673 = vld [vmem:[%s222 + $0xd0] sm:$0xff]
          %v2674 = vld [vmem:[%s222 + $0xd8] sm:$0xff]
          %v2675 = vld [vmem:[%s222 + $0xe0] sm:$0xff]
          %v2676 = vld [vmem:[%s222 + $0xe8] sm:$0xff]
          %v2677 = vld [vmem:[%s222 + $0xf0] sm:$0xff]
          %v2678 = vld [vmem:[%s222 + $0xf8] sm:$0xff]
          %v2679 = vld [vmem:[%s222 + $0x100] sm:$0xff]
          %v2680 = vld [vmem:[%s222 + $0x108] sm:$0xff]
          %v2681 = vld [vmem:[%s222 + $0x110] sm:$0xff]
          %v2682 = vld [vmem:[%s222 + $0x118] sm:$0xff]
          %v2683 = vld [vmem:[%s222 + $0x120] sm:$0xff]
          %v2684 = vld [vmem:[%s222 + $0x128] sm:$0xff]
          %v2685 = vld [vmem:[%s222 + $0x130] sm:$0xff]
          %v2686 = vld [vmem:[%s222 + $0x138] sm:$0xff]
          %v2687 = vld [vmem:[%s222 + $0x140] sm:$0xff]
          %v2688 = vld [vmem:[%s222 + $0x148] sm:$0xff]
          %v2689 = vld [vmem:[%s222 + $0x150] sm:$0xff]
          %v2690 = vld [vmem:[%s222 + $0x158] sm:$0xff]
          %v2691 = vld [vmem:[%s222 + $0x160] sm:$0xff]
          %v2692 = vld [vmem:[%s222 + $0x168] sm:$0xff]
          %v2693 = vld [vmem:[%s222 + $0x170] sm:$0xff]
          %v2694 = vld [vmem:[%s222 + $0x178] sm:$0xff]
          %v2695 = vld [vmem:[%s222 + $0x180] sm:$0xff]
          %v2696 = vld [vmem:[%s222 + $0x188] sm:$0xff]
          %v2697 = vld [vmem:[%s222 + $0x190] sm:$0xff]
          %v2698 = vld [vmem:[%s222 + $0x198] sm:$0xff]
          %v2699 = vld [vmem:[%s222 + $0x1a0] sm:$0xff]
          %v2700 = vld [vmem:[%s222 + $0x1a8] sm:$0xff]
          %v2701 = vld [vmem:[%s222 + $0x1b0] sm:$0xff]
          %v2702 = vld [vmem:[%s222 + $0x1b8] sm:$0xff]
          %v2703 = vld [vmem:[%s222 + $0x1c0] sm:$0xff]
          %v2704 = vld [vmem:[%s222 + $0x1c8] sm:$0xff]
          %v2705 = vld [vmem:[%s222 + $0x1d0] sm:$0xff]
          %v2706 = vld [vmem:[%s222 + $0x1d8] sm:$0xff]
          %v2707 = vld [vmem:[%s222 + $0x1e0] sm:$0xff]
          %v2708 = vld [vmem:[%s222 + $0x1e8] sm:$0xff]
          %v2709 = vld [vmem:[%s222 + $0x1f0] sm:$0xff]
          %v2710 = vld [vmem:[%s222 + $0x1f8] sm:$0xff]
          %v2711 = vld [vmem:[%s222 + $0x200] sm:$0xff]
          %v2712 = vld [vmem:[%s222 + $0x208] sm:$0xff]
          %v2713 = vld [vmem:[%s222 + $0x210] sm:$0xff]
          %v2714 = vld [vmem:[%s222 + $0x218] sm:$0xff]
          %v2715 = vld [vmem:[%s222 + $0x220] sm:$0xff]
          %v2716 = vld [vmem:[%s222 + $0x228] sm:$0xff]
          %v2717 = vld [vmem:[%s222 + $0x230] sm:$0xff]
          %v2718 = vld [vmem:[%s222 + $0x238] sm:$0xff]
          %v2719 = vld [vmem:[%s222 + $0x240] sm:$0xff]
          %v2720 = vld [vmem:[%s222 + $0x248] sm:$0xff]
          %v2721 = vld [vmem:[%s222 + $0x250] sm:$0xff]
          %v2722 = vld [vmem:[%s222 + $0x258] sm:$0xff]
          %v2723 = vld [vmem:[%s222 + $0x260] sm:$0xff]
          %v2724 = vld [vmem:[%s222 + $0x268] sm:$0xff]
          %v2725 = vld [vmem:[%s222 + $0x270] sm:$0xff]
          %v2726 = vld [vmem:[%s222 + $0x278] sm:$0xff]
          %v2727 = vld [vmem:[%s222 + $0x280] sm:$0xff]
          %v2728 = vld [vmem:[%s222 + $0x288] sm:$0xff]
          %v2729 = vld [vmem:[%s222 + $0x290] sm:$0xff]
          %v2730 = vld [vmem:[%s222 + $0x298] sm:$0xff]
          %v2731 = vld [vmem:[%s222 + $0x2a0] sm:$0xff]
          %v2732 = vld [vmem:[%s222 + $0x2a8] sm:$0xff]
          %v2733 = vld [vmem:[%s222 + $0x2b0] sm:$0xff]
          %v2734 = vld [vmem:[%s222 + $0x2b8] sm:$0xff]
          %v2735 = vld [vmem:[%s222 + $0x2c0] sm:$0xff]
          %v2736 = vld [vmem:[%s222 + $0x2c8] sm:$0xff]
          %v2737 = vld [vmem:[%s222 + $0x2d0] sm:$0xff]
          %v2738 = vld [vmem:[%s222 + $0x2d8] sm:$0xff]
          %v2739 = vld [vmem:[%s222 + $0x2e0] sm:$0xff]
          %v2740 = vld [vmem:[%s222 + $0x2e8] sm:$0xff]
          %v2741 = vld [vmem:[%s222 + $0x2f0] sm:$0xff]
          %v2742 = vld [vmem:[%s222 + $0x2f8] sm:$0xff]
          %v2743 = vld [vmem:[%s222 + $0x300] sm:$0xff]
          %v2744 = vld [vmem:[%s222 + $0x308] sm:$0xff]
          %v2745 = vld [vmem:[%s222 + $0x310] sm:$0xff]
          %v2746 = vld [vmem:[%s222 + $0x318] sm:$0xff]
          %v2747 = vld [vmem:[%s222 + $0x320] sm:$0xff]
          %v2748 = vld [vmem:[%s222 + $0x328] sm:$0xff]
          %v2749 = vld [vmem:[%s222 + $0x330] sm:$0xff]
          %v2750 = vld [vmem:[%s222 + $0x338] sm:$0xff]
          %v2751 = vld [vmem:[%s222 + $0x340] sm:$0xff]
          %v2752 = vld [vmem:[%s222 + $0x348] sm:$0xff]
          %v2753 = vld [vmem:[%s222 + $0x350] sm:$0xff]
          %v2754 = vld [vmem:[%s222 + $0x358] sm:$0xff]
          %v2755 = vld [vmem:[%s222 + $0x360] sm:$0xff]
          %v2756 = vld [vmem:[%s222 + $0x368] sm:$0xff]
          %v2757 = vld [vmem:[%s222 + $0x370] sm:$0xff]
          %v2758 = vld [vmem:[%s222 + $0x378] sm:$0xff]
          %v2759 = vld [vmem:[%s222 + $0x380] sm:$0xff]
          %v2760 = vld [vmem:[%s222 + $0x388] sm:$0xff]
          %v2761 = vld [vmem:[%s222 + $0x390] sm:$0xff]
          %v2762 = vld [vmem:[%s222 + $0x398] sm:$0xff]
          %v2763 = vld [vmem:[%s222 + $0x3a0] sm:$0xff]
          %v2764 = vld [vmem:[%s222 + $0x3a8] sm:$0xff]
          %v2765 = vld [vmem:[%s222 + $0x3b0] sm:$0xff]
          %v2766 = vld [vmem:[%s222 + $0x3b8] sm:$0xff]
          %v2767 = vld [vmem:[%s222 + $0x3c0] sm:$0xff]
          %v2768 = vld [vmem:[%s222 + $0x3c8] sm:$0xff]
          %v2769 = vld [vmem:[%s222 + $0x3d0] sm:$0xff]
          %v2770 = vld [vmem:[%s222 + $0x3d8] sm:$0xff]
          %v2771 = vld [vmem:[%s222 + $0x3e0] sm:$0xff]
          %v2772 = vld [vmem:[%s222 + $0x3e8] sm:$0xff]
          %v2773 = vld [vmem:[%s222 + $0x3f0] sm:$0xff]
          %v2774 = vld [vmem:[%s222 + $0x3f8] sm:$0xff]
          %v2775 = vld [vmem:[%s222 + $0x400] sm:$0xff]
          %v2776 = vld [vmem:[%s222 + $0x408] sm:$0xff]
          %v2777 = vld [vmem:[%s222 + $0x410] sm:$0xff]
          %v2778 = vld [vmem:[%s222 + $0x418] sm:$0xff]
          %v2779 = vld [vmem:[%s222 + $0x420] sm:$0xff]
          %v2780 = vld [vmem:[%s222 + $0x428] sm:$0xff]
          %v2781 = vld [vmem:[%s222 + $0x430] sm:$0xff]
          %v2782 = vld [vmem:[%s222 + $0x438] sm:$0xff]
          %v2783 = vld [vmem:[%s222 + $0x440] sm:$0xff]
          %v2784 = vld [vmem:[%s222 + $0x448] sm:$0xff]
          %v2785 = vld [vmem:[%s222 + $0x450] sm:$0xff]
          %v2786 = vld [vmem:[%s222 + $0x458] sm:$0xff]
          %v2787 = vld [vmem:[%s222 + $0x460] sm:$0xff]
          %v2788 = vld [vmem:[%s222 + $0x468] sm:$0xff]
          %v2789 = vld [vmem:[%s222 + $0x470] sm:$0xff]
          %v2790 = vld [vmem:[%s222 + $0x478] sm:$0xff]
          %v2791 = vld [vmem:[%s222 + $0x480] sm:$0xff]
          %v2792 = vld [vmem:[%s222 + $0x488] sm:$0xff]
          %v2793 = vld [vmem:[%s222 + $0x490] sm:$0xff]
          %v2794 = vld [vmem:[%s222 + $0x498] sm:$0xff]
          %v2795 = vld [vmem:[%s222 + $0x4a0] sm:$0xff]
          %v2796 = vld [vmem:[%s222 + $0x4a8] sm:$0xff]
          %v2797 = vld [vmem:[%s222 + $0x4b0] sm:$0xff]
          %v2798 = vld [vmem:[%s222 + $0x4b8] sm:$0xff]
          %v2799 = vld [vmem:[%s222 + $0x4c0] sm:$0xff]
          %v2800 = vld [vmem:[%s222 + $0x4c8] sm:$0xff]
          %v2801 = vld [vmem:[%s222 + $0x4d0] sm:$0xff]
          %v2802 = vld [vmem:[%s222 + $0x4d8] sm:$0xff]
          %v2803 = vld [vmem:[%s222 + $0x4e0] sm:$0xff]
          %v2804 = vld [vmem:[%s222 + $0x4e8] sm:$0xff]
          %v2805 = vld [vmem:[%s222 + $0x4f0] sm:$0xff]
          %v2806 = vld [vmem:[%s222 + $0x4f8] sm:$0xff]
          %v2807 = vld [vmem:[%s222 + $0x500] sm:$0xff]
          %v2808 = vld [vmem:[%s222 + $0x508] sm:$0xff]
          %v2809 = vld [vmem:[%s222 + $0x510] sm:$0xff]
          %v2810 = vld [vmem:[%s222 + $0x518] sm:$0xff]
          %v2811 = vld [vmem:[%s222 + $0x520] sm:$0xff]
          %v2812 = vld [vmem:[%s222 + $0x528] sm:$0xff]
          %v2813 = vld [vmem:[%s222 + $0x530] sm:$0xff]
          %v2814 = vld [vmem:[%s222 + $0x538] sm:$0xff]
          %v2815 = vld [vmem:[%s222 + $0x540] sm:$0xff]
          %v2816 = vld [vmem:[%s222 + $0x548] sm:$0xff]
          %v2817 = vld [vmem:[%s222 + $0x550] sm:$0xff]
          %v2818 = vld [vmem:[%s222 + $0x558] sm:$0xff]
          %v2819 = vld [vmem:[%s222 + $0x560] sm:$0xff]
          %v2820 = vld [vmem:[%s222 + $0x568] sm:$0xff]
          %v2821 = vld [vmem:[%s222 + $0x570] sm:$0xff]
          %v2822 = vld [vmem:[%s222 + $0x578] sm:$0xff]
          %v2823 = vld [vmem:[%s222 + $0x580] sm:$0xff]
          %v2824 = vld [vmem:[%s222 + $0x588] sm:$0xff]
          %v2825 = vld [vmem:[%s222 + $0x590] sm:$0xff]
          %v2826 = vld [vmem:[%s222 + $0x598] sm:$0xff]
          %v2827 = vld [vmem:[%s222 + $0x5a0] sm:$0xff]
          %v2828 = vld [vmem:[%s222 + $0x5a8] sm:$0xff]
          %v2829 = vld [vmem:[%s222 + $0x5b0] sm:$0xff]
          %v2830 = vld [vmem:[%s222 + $0x5b8] sm:$0xff]
          %v2831 = vld [vmem:[%s222 + $0x5c0] sm:$0xff]
          %v2832 = vld [vmem:[%s222 + $0x5c8] sm:$0xff]
          %v2833 = vld [vmem:[%s222 + $0x5d0] sm:$0xff]
          %v2834 = vld [vmem:[%s222 + $0x5d8] sm:$0xff]
          %v2835 = vld [vmem:[%s222 + $0x5e0] sm:$0xff]
          %v2836 = vld [vmem:[%s222 + $0x5e8] sm:$0xff]
          %v2837 = vld [vmem:[%s222 + $0x5f0] sm:$0xff]
          %v2838 = vld [vmem:[%s222 + $0x5f8] sm:$0xff]
          %v2839 = vld [vmem:[%s222 + $0x600] sm:$0xff]
          %v2840 = vld [vmem:[%s222 + $0x608] sm:$0xff]
          %v2841 = vld [vmem:[%s222 + $0x610] sm:$0xff]
          %v2842 = vld [vmem:[%s222 + $0x618] sm:$0xff]
          %v2843 = vld [vmem:[%s222 + $0x620] sm:$0xff]
          %v2844 = vld [vmem:[%s222 + $0x628] sm:$0xff]
          %v2845 = vld [vmem:[%s222 + $0x630] sm:$0xff]
          %v2846 = vld [vmem:[%s222 + $0x638] sm:$0xff]
          %v2847 = vld [vmem:[%s222 + $0x640] sm:$0xff]
          %v2848 = vld [vmem:[%s222 + $0x648] sm:$0xff]
          %v2849 = vld [vmem:[%s222 + $0x650] sm:$0xff]
          %v2850 = vld [vmem:[%s222 + $0x658] sm:$0xff]
          %v2851 = vld [vmem:[%s222 + $0x660] sm:$0xff]
          %v2852 = vld [vmem:[%s222 + $0x668] sm:$0xff]
          %v2853 = vld [vmem:[%s222 + $0x670] sm:$0xff]
          %v2854 = vld [vmem:[%s222 + $0x678] sm:$0xff]
          %v2855 = vld [vmem:[%s222 + $0x680] sm:$0xff]
          %v2856 = vld [vmem:[%s222 + $0x688] sm:$0xff]
          %v2857 = vld [vmem:[%s222 + $0x690] sm:$0xff]
          %v2858 = vld [vmem:[%s222 + $0x698] sm:$0xff]
          %v2859 = vld [vmem:[%s222 + $0x6a0] sm:$0xff]
          %v2860 = vld [vmem:[%s222 + $0x6a8] sm:$0xff]
          %v2861 = vld [vmem:[%s222 + $0x6b0] sm:$0xff]
          %v2862 = vld [vmem:[%s222 + $0x6b8] sm:$0xff]
          %v2863 = vld [vmem:[%s222 + $0x6c0] sm:$0xff]
          %v2864 = vld [vmem:[%s222 + $0x6c8] sm:$0xff]
          %v2865 = vld [vmem:[%s222 + $0x6d0] sm:$0xff]
          %v2866 = vld [vmem:[%s222 + $0x6d8] sm:$0xff]
          %v2867 = vld [vmem:[%s222 + $0x6e0] sm:$0xff]
          %v2868 = vld [vmem:[%s222 + $0x6e8] sm:$0xff]
          %v2869 = vld [vmem:[%s222 + $0x6f0] sm:$0xff]
          %v2870 = vld [vmem:[%s222 + $0x6f8] sm:$0xff]
          %v2871 = vld [vmem:[%s222 + $0x700] sm:$0xff]
          %v2872 = vld [vmem:[%s222 + $0x708] sm:$0xff]
          %v2873 = vld [vmem:[%s222 + $0x710] sm:$0xff]
          %v2874 = vld [vmem:[%s222 + $0x718] sm:$0xff]
          %v2875 = vld [vmem:[%s222 + $0x720] sm:$0xff]
          %v2876 = vld [vmem:[%s222 + $0x728] sm:$0xff]
          %v2877 = vld [vmem:[%s222 + $0x730] sm:$0xff]
          %v2878 = vld [vmem:[%s222 + $0x738] sm:$0xff]
          %v2879 = vld [vmem:[%s222 + $0x740] sm:$0xff]
          %v2880 = vld [vmem:[%s222 + $0x748] sm:$0xff]
          %v2881 = vld [vmem:[%s222 + $0x750] sm:$0xff]
          %v2882 = vld [vmem:[%s222 + $0x758] sm:$0xff]
          %v2883 = vld [vmem:[%s222 + $0x760] sm:$0xff]
          %v2884 = vld [vmem:[%s222 + $0x768] sm:$0xff]
          %v2885 = vld [vmem:[%s222 + $0x770] sm:$0xff]
          %v2886 = vld [vmem:[%s222 + $0x778] sm:$0xff]
          %v2887 = vld [vmem:[%s222 + $0x780] sm:$0xff]
          %v2888 = vld [vmem:[%s222 + $0x788] sm:$0xff]
          %v2889 = vld [vmem:[%s222 + $0x790] sm:$0xff]
          %v2890 = vld [vmem:[%s222 + $0x798] sm:$0xff]
          %v2891 = vld [vmem:[%s222 + $0x7a0] sm:$0xff]
          %v2892 = vld [vmem:[%s222 + $0x7a8] sm:$0xff]
          %v2893 = vld [vmem:[%s222 + $0x7b0] sm:$0xff]
          %v2894 = vld [vmem:[%s222 + $0x7b8] sm:$0xff]
          %v2895 = vld [vmem:[%s222 + $0x7c0] sm:$0xff]
          %v2896 = vld [vmem:[%s222 + $0x7c8] sm:$0xff]
          %v2897 = vld [vmem:[%s222 + $0x7d0] sm:$0xff]
          %v2898 = vld [vmem:[%s222 + $0x7d8] sm:$0xff]
          %v2899 = vld [vmem:[%s222 + $0x7e0] sm:$0xff]
          %v2900 = vld [vmem:[%s222 + $0x7e8] sm:$0xff]
          %v2901 = vld [vmem:[%s222 + $0x7f0] sm:$0xff]
          %v2902 = vld [vmem:[%s222 + $0x7f8] sm:$0xff]
          %v2903 = vadd.f32 %v2647, %v1361
          %v2904 = vadd.f32 %v2648, %v1364
          %v2905 = vadd.f32 %v2649, %v1369
          %v2906 = vadd.f32 %v2650, %v1372
          %v2907 = vadd.f32 %v2651, %v1377
          %v2908 = vadd.f32 %v2652, %v1380
          %v2909 = vadd.f32 %v2653, %v1385
          %v2910 = vadd.f32 %v2654, %v1388
          %v2911 = vadd.f32 %v2655, %v1393
          %v2912 = vadd.f32 %v2656, %v1396
          %v2913 = vadd.f32 %v2657, %v1401
          %v2914 = vadd.f32 %v2658, %v1404
          %v2915 = vadd.f32 %v2659, %v1409
          %v2916 = vadd.f32 %v2660, %v1412
          %v2917 = vadd.f32 %v2661, %v1417
          %v2918 = vadd.f32 %v2662, %v1420
          %v2919 = vadd.f32 %v2663, %v1425
          %v2920 = vadd.f32 %v2664, %v1428
          %v2921 = vadd.f32 %v2665, %v1433
          %v2922 = vadd.f32 %v2666, %v1436
          %v2923 = vadd.f32 %v2667, %v1441
          %v2924 = vadd.f32 %v2668, %v1444
          %v2925 = vadd.f32 %v2669, %v1449
          %v2926 = vadd.f32 %v2670, %v1452
          %v2927 = vadd.f32 %v2671, %v1457
          %v2928 = vadd.f32 %v2672, %v1460
          %v2929 = vadd.f32 %v2673, %v1465
          %v2930 = vadd.f32 %v2674, %v1468
          %v2931 = vadd.f32 %v2675, %v1473
          %v2932 = vadd.f32 %v2676, %v1476
          %v2933 = vadd.f32 %v2677, %v1481
          %v2934 = vadd.f32 %v2678, %v1484
          %v2935 = vadd.f32 %v2679, %v1489
          %v2936 = vadd.f32 %v2680, %v1492
          %v2937 = vadd.f32 %v2681, %v1497
          %v2938 = vadd.f32 %v2682, %v1500
          %v2939 = vadd.f32 %v2683, %v1505
          %v2940 = vadd.f32 %v2684, %v1508
          %v2941 = vadd.f32 %v2685, %v1513
          %v2942 = vadd.f32 %v2686, %v1516
          %v2943 = vadd.f32 %v2687, %v1521
          %v2944 = vadd.f32 %v2688, %v1524
          %v2945 = vadd.f32 %v2689, %v1529
          %v2946 = vadd.f32 %v2690, %v1532
          %v2947 = vadd.f32 %v2691, %v1537
          %v2948 = vadd.f32 %v2692, %v1540
          %v2949 = vadd.f32 %v2693, %v1545
          %v2950 = vadd.f32 %v2694, %v1548
          %v2951 = vadd.f32 %v2695, %v1553
          %v2952 = vadd.f32 %v2696, %v1556
          %v2953 = vadd.f32 %v2697, %v1561
          %v2954 = vadd.f32 %v2698, %v1564
          %v2955 = vadd.f32 %v2699, %v1569
          %v2956 = vadd.f32 %v2700, %v1572
          %v2957 = vadd.f32 %v2701, %v1577
          %v2958 = vadd.f32 %v2702, %v1580
          %v2959 = vadd.f32 %v2703, %v1585
          %v2960 = vadd.f32 %v2704, %v1588
          %v2961 = vadd.f32 %v2705, %v1593
          %v2962 = vadd.f32 %v2706, %v1596
          %v2963 = vadd.f32 %v2707, %v1601
          %v2964 = vadd.f32 %v2708, %v1604
          %v2965 = vadd.f32 %v2709, %v1609
          %v2966 = vadd.f32 %v2710, %v1612
          %v2967 = vadd.f32 %v2711, %v1617
          %v2968 = vadd.f32 %v2712, %v1620
          %v2969 = vadd.f32 %v2713, %v1625
          %v2970 = vadd.f32 %v2714, %v1628
          %v2971 = vadd.f32 %v2715, %v1633
          %v2972 = vadd.f32 %v2716, %v1636
          %v2973 = vadd.f32 %v2717, %v1641
          %v2974 = vadd.f32 %v2718, %v1644
          %v2975 = vadd.f32 %v2719, %v1649
          %v2976 = vadd.f32 %v2720, %v1652
          %v2977 = vadd.f32 %v2721, %v1657
          %v2978 = vadd.f32 %v2722, %v1660
          %v2979 = vadd.f32 %v2723, %v1665
          %v2980 = vadd.f32 %v2724, %v1668
          %v2981 = vadd.f32 %v2725, %v1673
          %v2982 = vadd.f32 %v2726, %v1676
          %v2983 = vadd.f32 %v2727, %v1681
          %v2984 = vadd.f32 %v2728, %v1684
          %v2985 = vadd.f32 %v2729, %v1689
          %v2986 = vadd.f32 %v2730, %v1692
          %v2987 = vadd.f32 %v2731, %v1697
          %v2988 = vadd.f32 %v2732, %v1700
          %v2989 = vadd.f32 %v2733, %v1705
          %v2990 = vadd.f32 %v2734, %v1708
          %v2991 = vadd.f32 %v2735, %v1713
          %v2992 = vadd.f32 %v2736, %v1716
          %v2993 = vadd.f32 %v2737, %v1721
          %v2994 = vadd.f32 %v2738, %v1724
          %v2995 = vadd.f32 %v2739, %v1729
          %v2996 = vadd.f32 %v2740, %v1732
          %v2997 = vadd.f32 %v2741, %v1737
          %v2998 = vadd.f32 %v2742, %v1740
          %v2999 = vadd.f32 %v2743, %v1745
          %v3000 = vadd.f32 %v2744, %v1748
          %v3001 = vadd.f32 %v2745, %v1753
          %v3002 = vadd.f32 %v2746, %v1756
          %v3003 = vadd.f32 %v2747, %v1761
          %v3004 = vadd.f32 %v2748, %v1764
          %v3005 = vadd.f32 %v2749, %v1769
          %v3006 = vadd.f32 %v2750, %v1772
          %v3007 = vadd.f32 %v2751, %v1777
          %v3008 = vadd.f32 %v2752, %v1780
          %v3009 = vadd.f32 %v2753, %v1785
          %v3010 = vadd.f32 %v2754, %v1788
          %v3011 = vadd.f32 %v2755, %v1793
          %v3012 = vadd.f32 %v2756, %v1796
          %v3013 = vadd.f32 %v2757, %v1801
          %v3014 = vadd.f32 %v2758, %v1804
          %v3015 = vadd.f32 %v2759, %v1809
          %v3016 = vadd.f32 %v2760, %v1812
          %v3017 = vadd.f32 %v2761, %v1817
          %v3018 = vadd.f32 %v2762, %v1820
          %v3019 = vadd.f32 %v2763, %v1825
          %v3020 = vadd.f32 %v2764, %v1828
          %v3021 = vadd.f32 %v2765, %v1833
          %v3022 = vadd.f32 %v2766, %v1836
          %v3023 = vadd.f32 %v2767, %v1841
          %v3024 = vadd.f32 %v2768, %v1844
          %v3025 = vadd.f32 %v2769, %v1849
          %v3026 = vadd.f32 %v2770, %v1852
          %v3027 = vadd.f32 %v2771, %v1857
          %v3028 = vadd.f32 %v2772, %v1860
          %v3029 = vadd.f32 %v2773, %v1865
          %v3030 = vadd.f32 %v2774, %v1868
          %v3031 = vadd.f32 %v2775, %v1873
          %v3032 = vadd.f32 %v2776, %v1876
          %v3033 = vadd.f32 %v2777, %v1881
          %v3034 = vadd.f32 %v2778, %v1884
          %v3035 = vadd.f32 %v2779, %v1889
          %v3036 = vadd.f32 %v2780, %v1892
          %v3037 = vadd.f32 %v2781, %v1897
          %v3038 = vadd.f32 %v2782, %v1900
          %v3039 = vadd.f32 %v2783, %v1905
          %v3040 = vadd.f32 %v2784, %v1908
          %v3041 = vadd.f32 %v2785, %v1913
          %v3042 = vadd.f32 %v2786, %v1916
          %v3043 = vadd.f32 %v2787, %v1921
          %v3044 = vadd.f32 %v2788, %v1924
          %v3045 = vadd.f32 %v2789, %v1929
          %v3046 = vadd.f32 %v2790, %v1932
          %v3047 = vadd.f32 %v2791, %v1937
          %v3048 = vadd.f32 %v2792, %v1940
          %v3049 = vadd.f32 %v2793, %v1945
          %v3050 = vadd.f32 %v2794, %v1948
          %v3051 = vadd.f32 %v2795, %v1953
          %v3052 = vadd.f32 %v2796, %v1956
          %v3053 = vadd.f32 %v2797, %v1961
          %v3054 = vadd.f32 %v2798, %v1964
          %v3055 = vadd.f32 %v2799, %v1969
          %v3056 = vadd.f32 %v2800, %v1972
          %v3057 = vadd.f32 %v2801, %v1977
          %v3058 = vadd.f32 %v2802, %v1980
          %v3059 = vadd.f32 %v2803, %v1985
          %v3060 = vadd.f32 %v2804, %v1988
          %v3061 = vadd.f32 %v2805, %v1993
          %v3062 = vadd.f32 %v2806, %v1996
          %v3063 = vadd.f32 %v2807, %v2001
          %v3064 = vadd.f32 %v2808, %v2004
          %v3065 = vadd.f32 %v2809, %v2009
          %v3066 = vadd.f32 %v2810, %v2012
          %v3067 = vadd.f32 %v2811, %v2017
          %v3068 = vadd.f32 %v2812, %v2020
          %v3069 = vadd.f32 %v2813, %v2025
          %v3070 = vadd.f32 %v2814, %v2028
          %v3071 = vadd.f32 %v2815, %v2033
          %v3072 = vadd.f32 %v2816, %v2036
          %v3073 = vadd.f32 %v2817, %v2041
          %v3074 = vadd.f32 %v2818, %v2044
          %v3075 = vadd.f32 %v2819, %v2049
          %v3076 = vadd.f32 %v2820, %v2052
          %v3077 = vadd.f32 %v2821, %v2057
          %v3078 = vadd.f32 %v2822, %v2060
          %v3079 = vadd.f32 %v2823, %v2065
          %v3080 = vadd.f32 %v2824, %v2068
          %v3081 = vadd.f32 %v2825, %v2073
          %v3082 = vadd.f32 %v2826, %v2076
          %v3083 = vadd.f32 %v2827, %v2081
          %v3084 = vadd.f32 %v2828, %v2084
          %v3085 = vadd.f32 %v2829, %v2089
          %v3086 = vadd.f32 %v2830, %v2092
          %v3087 = vadd.f32 %v2831, %v2097
          %v3088 = vadd.f32 %v2832, %v2100
          %v3089 = vadd.f32 %v2833, %v2105
          %v3090 = vadd.f32 %v2834, %v2108
          %v3091 = vadd.f32 %v2835, %v2113
          %v3092 = vadd.f32 %v2836, %v2116
          %v3093 = vadd.f32 %v2837, %v2121
          %v3094 = vadd.f32 %v2838, %v2124
          %v3095 = vadd.f32 %v2839, %v2129
          %v3096 = vadd.f32 %v2840, %v2132
          %v3097 = vadd.f32 %v2841, %v2137
          %v3098 = vadd.f32 %v2842, %v2140
          %v3099 = vadd.f32 %v2843, %v2145
          %v3100 = vadd.f32 %v2844, %v2148
          %v3101 = vadd.f32 %v2845, %v2153
          %v3102 = vadd.f32 %v2846, %v2156
          %v3103 = vadd.f32 %v2847, %v2161
          %v3104 = vadd.f32 %v2848, %v2164
          %v3105 = vadd.f32 %v2849, %v2169
          %v3106 = vadd.f32 %v2850, %v2172
          %v3107 = vadd.f32 %v2851, %v2177
          %v3108 = vadd.f32 %v2852, %v2180
          %v3109 = vadd.f32 %v2853, %v2185
          %v3110 = vadd.f32 %v2854, %v2188
          %v3111 = vadd.f32 %v2855, %v2193
          %v3112 = vadd.f32 %v2856, %v2196
          %v3113 = vadd.f32 %v2857, %v2201
          %v3114 = vadd.f32 %v2858, %v2204
          %v3115 = vadd.f32 %v2859, %v2209
          %v3116 = vadd.f32 %v2860, %v2212
          %v3117 = vadd.f32 %v2861, %v2217
          %v3118 = vadd.f32 %v2862, %v2220
          %v3119 = vadd.f32 %v2863, %v2225
          %v3120 = vadd.f32 %v2864, %v2228
          %v3121 = vadd.f32 %v2865, %v2233
          %v3122 = vadd.f32 %v2866, %v2236
          %v3123 = vadd.f32 %v2867, %v2241
          %v3124 = vadd.f32 %v2868, %v2244
          %v3125 = vadd.f32 %v2869, %v2249
          %v3126 = vadd.f32 %v2870, %v2252
          %v3127 = vadd.f32 %v2871, %v2257
          %v3128 = vadd.f32 %v2872, %v2260
          %v3129 = vadd.f32 %v2873, %v2265
          %v3130 = vadd.f32 %v2874, %v2268
          %v3131 = vadd.f32 %v2875, %v2273
          %v3132 = vadd.f32 %v2876, %v2276
          %v3133 = vadd.f32 %v2877, %v2281
          %v3134 = vadd.f32 %v2878, %v2284
          %v3135 = vadd.f32 %v2879, %v2289
          %v3136 = vadd.f32 %v2880, %v2292
          %v3137 = vadd.f32 %v2881, %v2297
          %v3138 = vadd.f32 %v2882, %v2300
          %v3139 = vadd.f32 %v2883, %v2305
          %v3140 = vadd.f32 %v2884, %v2308
          %v3141 = vadd.f32 %v2885, %v2313
          %v3142 = vadd.f32 %v2886, %v2316
          %v3143 = vadd.f32 %v2887, %v2321
          %v3144 = vadd.f32 %v2888, %v2324
          %v3145 = vadd.f32 %v2889, %v2329
          %v3146 = vadd.f32 %v2890, %v2332
          %v3147 = vadd.f32 %v2891, %v2337
          %v3148 = vadd.f32 %v2892, %v2340
          %v3149 = vadd.f32 %v2893, %v2345
          %v3150 = vadd.f32 %v2894, %v2348
          %v3151 = vadd.f32 %v2895, %v2353
          %v3152 = vadd.f32 %v2896, %v2356
          %v3153 = vadd.f32 %v2897, %v2361
          %v3154 = vadd.f32 %v2898, %v2364
          %v3155 = vadd.f32 %v2899, %v2369
          %v3156 = vadd.f32 %v2900, %v2372
          %v3157 = vadd.f32 %v2901, %v2377
          %v3158 = vadd.f32 %v2902, %v2380
          %3159 = vst [vmem:[%s222] sm:$0xff] %v2903
          %3160 = vst [vmem:[%s222 + $0x8] sm:$0xff] %v2904
          %3161 = vst [vmem:[%s222 + $0x10] sm:$0xff] %v2905
          %3162 = vst [vmem:[%s222 + $0x18] sm:$0xff] %v2906
          %3163 = vst [vmem:[%s222 + $0x20] sm:$0xff] %v2907
          %3164 = vst [vmem:[%s222 + $0x28] sm:$0xff] %v2908
          %3165 = vst [vmem:[%s222 + $0x30] sm:$0xff] %v2909
          %3166 = vst [vmem:[%s222 + $0x38] sm:$0xff] %v2910
          %3167 = vst [vmem:[%s222 + $0x40] sm:$0xff] %v2911
          %3168 = vst [vmem:[%s222 + $0x48] sm:$0xff] %v2912
          %3169 = vst [vmem:[%s222 + $0x50] sm:$0xff] %v2913
          %3170 = vst [vmem:[%s222 + $0x58] sm:$0xff] %v2914
          %3171 = vst [vmem:[%s222 + $0x60] sm:$0xff] %v2915
          %3172 = vst [vmem:[%s222 + $0x68] sm:$0xff] %v2916
          %3173 = vst [vmem:[%s222 + $0x70] sm:$0xff] %v2917
          %3174 = vst [vmem:[%s222 + $0x78] sm:$0xff] %v2918
          %3175 = vst [vmem:[%s222 + $0x80] sm:$0xff] %v2919
          %3176 = vst [vmem:[%s222 + $0x88] sm:$0xff] %v2920
          %3177 = vst [vmem:[%s222 + $0x90] sm:$0xff] %v2921
          %3178 = vst [vmem:[%s222 + $0x98] sm:$0xff] %v2922
          %3179 = vst [vmem:[%s222 + $0xa0] sm:$0xff] %v2923
          %3180 = vst [vmem:[%s222 + $0xa8] sm:$0xff] %v2924
          %3181 = vst [vmem:[%s222 + $0xb0] sm:$0xff] %v2925
          %3182 = vst [vmem:[%s222 + $0xb8] sm:$0xff] %v2926
          %3183 = vst [vmem:[%s222 + $0xc0] sm:$0xff] %v2927
          %3184 = vst [vmem:[%s222 + $0xc8] sm:$0xff] %v2928
          %3185 = vst [vmem:[%s222 + $0xd0] sm:$0xff] %v2929
          %3186 = vst [vmem:[%s222 + $0xd8] sm:$0xff] %v2930
          %3187 = vst [vmem:[%s222 + $0xe0] sm:$0xff] %v2931
          %3188 = vst [vmem:[%s222 + $0xe8] sm:$0xff] %v2932
          %3189 = vst [vmem:[%s222 + $0xf0] sm:$0xff] %v2933
          %3190 = vst [vmem:[%s222 + $0xf8] sm:$0xff] %v2934
          %3191 = vst [vmem:[%s222 + $0x100] sm:$0xff] %v2935
          %3192 = vst [vmem:[%s222 + $0x108] sm:$0xff] %v2936
          %3193 = vst [vmem:[%s222 + $0x110] sm:$0xff] %v2937
          %3194 = vst [vmem:[%s222 + $0x118] sm:$0xff] %v2938
          %3195 = vst [vmem:[%s222 + $0x120] sm:$0xff] %v2939
          %3196 = vst [vmem:[%s222 + $0x128] sm:$0xff] %v2940
          %3197 = vst [vmem:[%s222 + $0x130] sm:$0xff] %v2941
          %3198 = vst [vmem:[%s222 + $0x138] sm:$0xff] %v2942
          %3199 = vst [vmem:[%s222 + $0x140] sm:$0xff] %v2943
          %3200 = vst [vmem:[%s222 + $0x148] sm:$0xff] %v2944
          %3201 = vst [vmem:[%s222 + $0x150] sm:$0xff] %v2945
          %3202 = vst [vmem:[%s222 + $0x158] sm:$0xff] %v2946
          %3203 = vst [vmem:[%s222 + $0x160] sm:$0xff] %v2947
          %3204 = vst [vmem:[%s222 + $0x168] sm:$0xff] %v2948
          %3205 = vst [vmem:[%s222 + $0x170] sm:$0xff] %v2949
          %3206 = vst [vmem:[%s222 + $0x178] sm:$0xff] %v2950
          %3207 = vst [vmem:[%s222 + $0x180] sm:$0xff] %v2951
          %3208 = vst [vmem:[%s222 + $0x188] sm:$0xff] %v2952
          %3209 = vst [vmem:[%s222 + $0x190] sm:$0xff] %v2953
          %3210 = vst [vmem:[%s222 + $0x198] sm:$0xff] %v2954
          %3211 = vst [vmem:[%s222 + $0x1a0] sm:$0xff] %v2955
          %3212 = vst [vmem:[%s222 + $0x1a8] sm:$0xff] %v2956
          %3213 = vst [vmem:[%s222 + $0x1b0] sm:$0xff] %v2957
          %3214 = vst [vmem:[%s222 + $0x1b8] sm:$0xff] %v2958
          %3215 = vst [vmem:[%s222 + $0x1c0] sm:$0xff] %v2959
          %3216 = vst [vmem:[%s222 + $0x1c8] sm:$0xff] %v2960
          %3217 = vst [vmem:[%s222 + $0x1d0] sm:$0xff] %v2961
          %3218 = vst [vmem:[%s222 + $0x1d8] sm:$0xff] %v2962
          %3219 = vst [vmem:[%s222 + $0x1e0] sm:$0xff] %v2963
          %3220 = vst [vmem:[%s222 + $0x1e8] sm:$0xff] %v2964
          %3221 = vst [vmem:[%s222 + $0x1f0] sm:$0xff] %v2965
          %3222 = vst [vmem:[%s222 + $0x1f8] sm:$0xff] %v2966
          %3223 = vst [vmem:[%s222 + $0x200] sm:$0xff] %v2967
          %3224 = vst [vmem:[%s222 + $0x208] sm:$0xff] %v2968
          %3225 = vst [vmem:[%s222 + $0x210] sm:$0xff] %v2969
          %3226 = vst [vmem:[%s222 + $0x218] sm:$0xff] %v2970
          %3227 = vst [vmem:[%s222 + $0x220] sm:$0xff] %v2971
          %3228 = vst [vmem:[%s222 + $0x228] sm:$0xff] %v2972
          %3229 = vst [vmem:[%s222 + $0x230] sm:$0xff] %v2973
          %3230 = vst [vmem:[%s222 + $0x238] sm:$0xff] %v2974
          %3231 = vst [vmem:[%s222 + $0x240] sm:$0xff] %v2975
          %3232 = vst [vmem:[%s222 + $0x248] sm:$0xff] %v2976
          %3233 = vst [vmem:[%s222 + $0x250] sm:$0xff] %v2977
          %3234 = vst [vmem:[%s222 + $0x258] sm:$0xff] %v2978
          %3235 = vst [vmem:[%s222 + $0x260] sm:$0xff] %v2979
          %3236 = vst [vmem:[%s222 + $0x268] sm:$0xff] %v2980
          %3237 = vst [vmem:[%s222 + $0x270] sm:$0xff] %v2981
          %3238 = vst [vmem:[%s222 + $0x278] sm:$0xff] %v2982
          %3239 = vst [vmem:[%s222 + $0x280] sm:$0xff] %v2983
          %3240 = vst [vmem:[%s222 + $0x288] sm:$0xff] %v2984
          %3241 = vst [vmem:[%s222 + $0x290] sm:$0xff] %v2985
          %3242 = vst [vmem:[%s222 + $0x298] sm:$0xff] %v2986
          %3243 = vst [vmem:[%s222 + $0x2a0] sm:$0xff] %v2987
          %3244 = vst [vmem:[%s222 + $0x2a8] sm:$0xff] %v2988
          %3245 = vst [vmem:[%s222 + $0x2b0] sm:$0xff] %v2989
          %3246 = vst [vmem:[%s222 + $0x2b8] sm:$0xff] %v2990
          %3247 = vst [vmem:[%s222 + $0x2c0] sm:$0xff] %v2991
          %3248 = vst [vmem:[%s222 + $0x2c8] sm:$0xff] %v2992
          %3249 = vst [vmem:[%s222 + $0x2d0] sm:$0xff] %v2993
          %3250 = vst [vmem:[%s222 + $0x2d8] sm:$0xff] %v2994
          %3251 = vst [vmem:[%s222 + $0x2e0] sm:$0xff] %v2995
          %3252 = vst [vmem:[%s222 + $0x2e8] sm:$0xff] %v2996
          %3253 = vst [vmem:[%s222 + $0x2f0] sm:$0xff] %v2997
          %3254 = vst [vmem:[%s222 + $0x2f8] sm:$0xff] %v2998
          %3255 = vst [vmem:[%s222 + $0x300] sm:$0xff] %v2999
          %3256 = vst [vmem:[%s222 + $0x308] sm:$0xff] %v3000
          %3257 = vst [vmem:[%s222 + $0x310] sm:$0xff] %v3001
          %3258 = vst [vmem:[%s222 + $0x318] sm:$0xff] %v3002
          %3259 = vst [vmem:[%s222 + $0x320] sm:$0xff] %v3003
          %3260 = vst [vmem:[%s222 + $0x328] sm:$0xff] %v3004
          %3261 = vst [vmem:[%s222 + $0x330] sm:$0xff] %v3005
          %3262 = vst [vmem:[%s222 + $0x338] sm:$0xff] %v3006
          %3263 = vst [vmem:[%s222 + $0x340] sm:$0xff] %v3007
          %3264 = vst [vmem:[%s222 + $0x348] sm:$0xff] %v3008
          %3265 = vst [vmem:[%s222 + $0x350] sm:$0xff] %v3009
          %3266 = vst [vmem:[%s222 + $0x358] sm:$0xff] %v3010
          %3267 = vst [vmem:[%s222 + $0x360] sm:$0xff] %v3011
          %3268 = vst [vmem:[%s222 + $0x368] sm:$0xff] %v3012
          %3269 = vst [vmem:[%s222 + $0x370] sm:$0xff] %v3013
          %3270 = vst [vmem:[%s222 + $0x378] sm:$0xff] %v3014
          %3271 = vst [vmem:[%s222 + $0x380] sm:$0xff] %v3015
          %3272 = vst [vmem:[%s222 + $0x388] sm:$0xff] %v3016
          %3273 = vst [vmem:[%s222 + $0x390] sm:$0xff] %v3017
          %3274 = vst [vmem:[%s222 + $0x398] sm:$0xff] %v3018
          %3275 = vst [vmem:[%s222 + $0x3a0] sm:$0xff] %v3019
          %3276 = vst [vmem:[%s222 + $0x3a8] sm:$0xff] %v3020
          %3277 = vst [vmem:[%s222 + $0x3b0] sm:$0xff] %v3021
          %3278 = vst [vmem:[%s222 + $0x3b8] sm:$0xff] %v3022
          %3279 = vst [vmem:[%s222 + $0x3c0] sm:$0xff] %v3023
          %3280 = vst [vmem:[%s222 + $0x3c8] sm:$0xff] %v3024
          %3281 = vst [vmem:[%s222 + $0x3d0] sm:$0xff] %v3025
          %3282 = vst [vmem:[%s222 + $0x3d8] sm:$0xff] %v3026
          %3283 = vst [vmem:[%s222 + $0x3e0] sm:$0xff] %v3027
          %3284 = vst [vmem:[%s222 + $0x3e8] sm:$0xff] %v3028
          %3285 = vst [vmem:[%s222 + $0x3f0] sm:$0xff] %v3029
          %3286 = vst [vmem:[%s222 + $0x3f8] sm:$0xff] %v3030
          %3287 = vst [vmem:[%s222 + $0x400] sm:$0xff] %v3031
          %3288 = vst [vmem:[%s222 + $0x408] sm:$0xff] %v3032
          %3289 = vst [vmem:[%s222 + $0x410] sm:$0xff] %v3033
          %3290 = vst [vmem:[%s222 + $0x418] sm:$0xff] %v3034
          %3291 = vst [vmem:[%s222 + $0x420] sm:$0xff] %v3035
          %3292 = vst [vmem:[%s222 + $0x428] sm:$0xff] %v3036
          %3293 = vst [vmem:[%s222 + $0x430] sm:$0xff] %v3037
          %3294 = vst [vmem:[%s222 + $0x438] sm:$0xff] %v3038
          %3295 = vst [vmem:[%s222 + $0x440] sm:$0xff] %v3039
          %3296 = vst [vmem:[%s222 + $0x448] sm:$0xff] %v3040
          %3297 = vst [vmem:[%s222 + $0x450] sm:$0xff] %v3041
          %3298 = vst [vmem:[%s222 + $0x458] sm:$0xff] %v3042
          %3299 = vst [vmem:[%s222 + $0x460] sm:$0xff] %v3043
          %3300 = vst [vmem:[%s222 + $0x468] sm:$0xff] %v3044
          %3301 = vst [vmem:[%s222 + $0x470] sm:$0xff] %v3045
          %3302 = vst [vmem:[%s222 + $0x478] sm:$0xff] %v3046
          %3303 = vst [vmem:[%s222 + $0x480] sm:$0xff] %v3047
          %3304 = vst [vmem:[%s222 + $0x488] sm:$0xff] %v3048
          %3305 = vst [vmem:[%s222 + $0x490] sm:$0xff] %v3049
          %3306 = vst [vmem:[%s222 + $0x498] sm:$0xff] %v3050
          %3307 = vst [vmem:[%s222 + $0x4a0] sm:$0xff] %v3051
          %3308 = vst [vmem:[%s222 + $0x4a8] sm:$0xff] %v3052
          %3309 = vst [vmem:[%s222 + $0x4b0] sm:$0xff] %v3053
          %3310 = vst [vmem:[%s222 + $0x4b8] sm:$0xff] %v3054
          %3311 = vst [vmem:[%s222 + $0x4c0] sm:$0xff] %v3055
          %3312 = vst [vmem:[%s222 + $0x4c8] sm:$0xff] %v3056
          %3313 = vst [vmem:[%s222 + $0x4d0] sm:$0xff] %v3057
          %3314 = vst [vmem:[%s222 + $0x4d8] sm:$0xff] %v3058
          %3315 = vst [vmem:[%s222 + $0x4e0] sm:$0xff] %v3059
          %3316 = vst [vmem:[%s222 + $0x4e8] sm:$0xff] %v3060
          %3317 = vst [vmem:[%s222 + $0x4f0] sm:$0xff] %v3061
          %3318 = vst [vmem:[%s222 + $0x4f8] sm:$0xff] %v3062
          %3319 = vst [vmem:[%s222 + $0x500] sm:$0xff] %v3063
          %3320 = vst [vmem:[%s222 + $0x508] sm:$0xff] %v3064
          %3321 = vst [vmem:[%s222 + $0x510] sm:$0xff] %v3065
          %3322 = vst [vmem:[%s222 + $0x518] sm:$0xff] %v3066
          %3323 = vst [vmem:[%s222 + $0x520] sm:$0xff] %v3067
          %3324 = vst [vmem:[%s222 + $0x528] sm:$0xff] %v3068
          %3325 = vst [vmem:[%s222 + $0x530] sm:$0xff] %v3069
          %3326 = vst [vmem:[%s222 + $0x538] sm:$0xff] %v3070
          %3327 = vst [vmem:[%s222 + $0x540] sm:$0xff] %v3071
          %3328 = vst [vmem:[%s222 + $0x548] sm:$0xff] %v3072
          %3329 = vst [vmem:[%s222 + $0x550] sm:$0xff] %v3073
          %3330 = vst [vmem:[%s222 + $0x558] sm:$0xff] %v3074
          %3331 = vst [vmem:[%s222 + $0x560] sm:$0xff] %v3075
          %3332 = vst [vmem:[%s222 + $0x568] sm:$0xff] %v3076
          %3333 = vst [vmem:[%s222 + $0x570] sm:$0xff] %v3077
          %3334 = vst [vmem:[%s222 + $0x578] sm:$0xff] %v3078
          %3335 = vst [vmem:[%s222 + $0x580] sm:$0xff] %v3079
          %3336 = vst [vmem:[%s222 + $0x588] sm:$0xff] %v3080
          %3337 = vst [vmem:[%s222 + $0x590] sm:$0xff] %v3081
          %3338 = vst [vmem:[%s222 + $0x598] sm:$0xff] %v3082
          %3339 = vst [vmem:[%s222 + $0x5a0] sm:$0xff] %v3083
          %3340 = vst [vmem:[%s222 + $0x5a8] sm:$0xff] %v3084
          %3341 = vst [vmem:[%s222 + $0x5b0] sm:$0xff] %v3085
          %3342 = vst [vmem:[%s222 + $0x5b8] sm:$0xff] %v3086
          %3343 = vst [vmem:[%s222 + $0x5c0] sm:$0xff] %v3087
          %3344 = vst [vmem:[%s222 + $0x5c8] sm:$0xff] %v3088
          %3345 = vst [vmem:[%s222 + $0x5d0] sm:$0xff] %v3089
          %3346 = vst [vmem:[%s222 + $0x5d8] sm:$0xff] %v3090
          %3347 = vst [vmem:[%s222 + $0x5e0] sm:$0xff] %v3091
          %3348 = vst [vmem:[%s222 + $0x5e8] sm:$0xff] %v3092
          %3349 = vst [vmem:[%s222 + $0x5f0] sm:$0xff] %v3093
          %3350 = vst [vmem:[%s222 + $0x5f8] sm:$0xff] %v3094
          %3351 = vst [vmem:[%s222 + $0x600] sm:$0xff] %v3095
          %3352 = vst [vmem:[%s222 + $0x608] sm:$0xff] %v3096
          %3353 = vst [vmem:[%s222 + $0x610] sm:$0xff] %v3097
          %3354 = vst [vmem:[%s222 + $0x618] sm:$0xff] %v3098
          %3355 = vst [vmem:[%s222 + $0x620] sm:$0xff] %v3099
          %3356 = vst [vmem:[%s222 + $0x628] sm:$0xff] %v3100
          %3357 = vst [vmem:[%s222 + $0x630] sm:$0xff] %v3101
          %3358 = vst [vmem:[%s222 + $0x638] sm:$0xff] %v3102
          %3359 = vst [vmem:[%s222 + $0x640] sm:$0xff] %v3103
          %3360 = vst [vmem:[%s222 + $0x648] sm:$0xff] %v3104
          %3361 = vst [vmem:[%s222 + $0x650] sm:$0xff] %v3105
          %3362 = vst [vmem:[%s222 + $0x658] sm:$0xff] %v3106
          %3363 = vst [vmem:[%s222 + $0x660] sm:$0xff] %v3107
          %3364 = vst [vmem:[%s222 + $0x668] sm:$0xff] %v3108
          %3365 = vst [vmem:[%s222 + $0x670] sm:$0xff] %v3109
          %3366 = vst [vmem:[%s222 + $0x678] sm:$0xff] %v3110
          %3367 = vst [vmem:[%s222 + $0x680] sm:$0xff] %v3111
          %3368 = vst [vmem:[%s222 + $0x688] sm:$0xff] %v3112
          %3369 = vst [vmem:[%s222 + $0x690] sm:$0xff] %v3113
          %3370 = vst [vmem:[%s222 + $0x698] sm:$0xff] %v3114
          %3371 = vst [vmem:[%s222 + $0x6a0] sm:$0xff] %v3115
          %3372 = vst [vmem:[%s222 + $0x6a8] sm:$0xff] %v3116
          %3373 = vst [vmem:[%s222 + $0x6b0] sm:$0xff] %v3117
          %3374 = vst [vmem:[%s222 + $0x6b8] sm:$0xff] %v3118
          %3375 = vst [vmem:[%s222 + $0x6c0] sm:$0xff] %v3119
          %3376 = vst [vmem:[%s222 + $0x6c8] sm:$0xff] %v3120
          %3377 = vst [vmem:[%s222 + $0x6d0] sm:$0xff] %v3121
          %3378 = vst [vmem:[%s222 + $0x6d8] sm:$0xff] %v3122
          %3379 = vst [vmem:[%s222 + $0x6e0] sm:$0xff] %v3123
          %3380 = vst [vmem:[%s222 + $0x6e8] sm:$0xff] %v3124
          %3381 = vst [vmem:[%s222 + $0x6f0] sm:$0xff] %v3125
          %3382 = vst [vmem:[%s222 + $0x6f8] sm:$0xff] %v3126
          %3383 = vst [vmem:[%s222 + $0x700] sm:$0xff] %v3127
          %3384 = vst [vmem:[%s222 + $0x708] sm:$0xff] %v3128
          %3385 = vst [vmem:[%s222 + $0x710] sm:$0xff] %v3129
          %3386 = vst [vmem:[%s222 + $0x718] sm:$0xff] %v3130
          %3387 = vst [vmem:[%s222 + $0x720] sm:$0xff] %v3131
          %3388 = vst [vmem:[%s222 + $0x728] sm:$0xff] %v3132
          %3389 = vst [vmem:[%s222 + $0x730] sm:$0xff] %v3133
          %3390 = vst [vmem:[%s222 + $0x738] sm:$0xff] %v3134
          %3391 = vst [vmem:[%s222 + $0x740] sm:$0xff] %v3135
          %3392 = vst [vmem:[%s222 + $0x748] sm:$0xff] %v3136
          %3393 = vst [vmem:[%s222 + $0x750] sm:$0xff] %v3137
          %3394 = vst [vmem:[%s222 + $0x758] sm:$0xff] %v3138
          %3395 = vst [vmem:[%s222 + $0x760] sm:$0xff] %v3139
          %3396 = vst [vmem:[%s222 + $0x768] sm:$0xff] %v3140
          %3397 = vst [vmem:[%s222 + $0x770] sm:$0xff] %v3141
          %3398 = vst [vmem:[%s222 + $0x778] sm:$0xff] %v3142
          %3399 = vst [vmem:[%s222 + $0x780] sm:$0xff] %v3143
          %3400 = vst [vmem:[%s222 + $0x788] sm:$0xff] %v3144
          %3401 = vst [vmem:[%s222 + $0x790] sm:$0xff] %v3145
          %3402 = vst [vmem:[%s222 + $0x798] sm:$0xff] %v3146
          %3403 = vst [vmem:[%s222 + $0x7a0] sm:$0xff] %v3147
          %3404 = vst [vmem:[%s222 + $0x7a8] sm:$0xff] %v3148
          %3405 = vst [vmem:[%s222 + $0x7b0] sm:$0xff] %v3149
          %3406 = vst [vmem:[%s222 + $0x7b8] sm:$0xff] %v3150
          %3407 = vst [vmem:[%s222 + $0x7c0] sm:$0xff] %v3151
          %3408 = vst [vmem:[%s222 + $0x7c8] sm:$0xff] %v3152
          %3409 = vst [vmem:[%s222 + $0x7d0] sm:$0xff] %v3153
          %3410 = vst [vmem:[%s222 + $0x7d8] sm:$0xff] %v3154
          %3411 = vst [vmem:[%s222 + $0x7e0] sm:$0xff] %v3155
          %3412 = vst [vmem:[%s222 + $0x7e8] sm:$0xff] %v3156
          %3413 = vst [vmem:[%s222 + $0x7f0] sm:$0xff] %v3157
          %3414 = vst [vmem:[%s222 + $0x7f8] sm:$0xff] %v3158
        $region44: #{tpu_custom_call.1} parent=27 // pred_fallthru
          _
        // Predicated region
        $region45: #{tpu_custom_call.1} parent=27 // pred_check
          %p3415 = pneg %p2383
        $region46: #{tpu_custom_call.1} parent=27 // pred_check_branch
          %3417 = sbr.rel (%p3415) target = $region48
        $region47: #{tpu_custom_call.1} parent=27 // pred_region
          %v3418 = vld [vmem:[%s222] sm:$0xff]
          %v3419 = vld [vmem:[%s222 + $0x8] sm:$0xff]
          %v3420 = vld [vmem:[%s222 + $0x10] sm:$0xff]
          %v3421 = vld [vmem:[%s222 + $0x18] sm:$0xff]
          %v3422 = vld [vmem:[%s222 + $0x20] sm:$0xff]
          %v3423 = vld [vmem:[%s222 + $0x28] sm:$0xff]
          %v3424 = vld [vmem:[%s222 + $0x30] sm:$0xff]
          %v3425 = vld [vmem:[%s222 + $0x38] sm:$0xff]
          %v3426 = vld [vmem:[%s222 + $0x40] sm:$0xff]
          %v3427 = vld [vmem:[%s222 + $0x48] sm:$0xff]
          %v3428 = vld [vmem:[%s222 + $0x50] sm:$0xff]
          %v3429 = vld [vmem:[%s222 + $0x58] sm:$0xff]
          %v3430 = vld [vmem:[%s222 + $0x60] sm:$0xff]
          %v3431 = vld [vmem:[%s222 + $0x68] sm:$0xff]
          %v3432 = vld [vmem:[%s222 + $0x70] sm:$0xff]
          %v3433 = vld [vmem:[%s222 + $0x78] sm:$0xff]
          %v3434 = vld [vmem:[%s222 + $0x80] sm:$0xff]
          %v3435 = vld [vmem:[%s222 + $0x88] sm:$0xff]
          %v3436 = vld [vmem:[%s222 + $0x90] sm:$0xff]
          %v3437 = vld [vmem:[%s222 + $0x98] sm:$0xff]
          %v3438 = vld [vmem:[%s222 + $0xa0] sm:$0xff]
          %v3439 = vld [vmem:[%s222 + $0xa8] sm:$0xff]
          %v3440 = vld [vmem:[%s222 + $0xb0] sm:$0xff]
          %v3441 = vld [vmem:[%s222 + $0xb8] sm:$0xff]
          %v3442 = vld [vmem:[%s222 + $0xc0] sm:$0xff]
          %v3443 = vld [vmem:[%s222 + $0xc8] sm:$0xff]
          %v3444 = vld [vmem:[%s222 + $0xd0] sm:$0xff]
          %v3445 = vld [vmem:[%s222 + $0xd8] sm:$0xff]
          %v3446 = vld [vmem:[%s222 + $0xe0] sm:$0xff]
          %v3447 = vld [vmem:[%s222 + $0xe8] sm:$0xff]
          %v3448 = vld [vmem:[%s222 + $0xf0] sm:$0xff]
          %v3449 = vld [vmem:[%s222 + $0xf8] sm:$0xff]
          %v3450 = vld [vmem:[%s222 + $0x100] sm:$0xff]
          %v3451 = vld [vmem:[%s222 + $0x108] sm:$0xff]
          %v3452 = vld [vmem:[%s222 + $0x110] sm:$0xff]
          %v3453 = vld [vmem:[%s222 + $0x118] sm:$0xff]
          %v3454 = vld [vmem:[%s222 + $0x120] sm:$0xff]
          %v3455 = vld [vmem:[%s222 + $0x128] sm:$0xff]
          %v3456 = vld [vmem:[%s222 + $0x130] sm:$0xff]
          %v3457 = vld [vmem:[%s222 + $0x138] sm:$0xff]
          %v3458 = vld [vmem:[%s222 + $0x140] sm:$0xff]
          %v3459 = vld [vmem:[%s222 + $0x148] sm:$0xff]
          %v3460 = vld [vmem:[%s222 + $0x150] sm:$0xff]
          %v3461 = vld [vmem:[%s222 + $0x158] sm:$0xff]
          %v3462 = vld [vmem:[%s222 + $0x160] sm:$0xff]
          %v3463 = vld [vmem:[%s222 + $0x168] sm:$0xff]
          %v3464 = vld [vmem:[%s222 + $0x170] sm:$0xff]
          %v3465 = vld [vmem:[%s222 + $0x178] sm:$0xff]
          %v3466 = vld [vmem:[%s222 + $0x180] sm:$0xff]
          %v3467 = vld [vmem:[%s222 + $0x188] sm:$0xff]
          %v3468 = vld [vmem:[%s222 + $0x190] sm:$0xff]
          %v3469 = vld [vmem:[%s222 + $0x198] sm:$0xff]
          %v3470 = vld [vmem:[%s222 + $0x1a0] sm:$0xff]
          %v3471 = vld [vmem:[%s222 + $0x1a8] sm:$0xff]
          %v3472 = vld [vmem:[%s222 + $0x1b0] sm:$0xff]
          %v3473 = vld [vmem:[%s222 + $0x1b8] sm:$0xff]
          %v3474 = vld [vmem:[%s222 + $0x1c0] sm:$0xff]
          %v3475 = vld [vmem:[%s222 + $0x1c8] sm:$0xff]
          %v3476 = vld [vmem:[%s222 + $0x1d0] sm:$0xff]
          %v3477 = vld [vmem:[%s222 + $0x1d8] sm:$0xff]
          %v3478 = vld [vmem:[%s222 + $0x1e0] sm:$0xff]
          %v3479 = vld [vmem:[%s222 + $0x1e8] sm:$0xff]
          %v3480 = vld [vmem:[%s222 + $0x1f0] sm:$0xff]
          %v3481 = vld [vmem:[%s222 + $0x1f8] sm:$0xff]
          %v3482 = vld [vmem:[%s222 + $0x200] sm:$0xff]
          %v3483 = vld [vmem:[%s222 + $0x208] sm:$0xff]
          %v3484 = vld [vmem:[%s222 + $0x210] sm:$0xff]
          %v3485 = vld [vmem:[%s222 + $0x218] sm:$0xff]
          %v3486 = vld [vmem:[%s222 + $0x220] sm:$0xff]
          %v3487 = vld [vmem:[%s222 + $0x228] sm:$0xff]
          %v3488 = vld [vmem:[%s222 + $0x230] sm:$0xff]
          %v3489 = vld [vmem:[%s222 + $0x238] sm:$0xff]
          %v3490 = vld [vmem:[%s222 + $0x240] sm:$0xff]
          %v3491 = vld [vmem:[%s222 + $0x248] sm:$0xff]
          %v3492 = vld [vmem:[%s222 + $0x250] sm:$0xff]
          %v3493 = vld [vmem:[%s222 + $0x258] sm:$0xff]
          %v3494 = vld [vmem:[%s222 + $0x260] sm:$0xff]
          %v3495 = vld [vmem:[%s222 + $0x268] sm:$0xff]
          %v3496 = vld [vmem:[%s222 + $0x270] sm:$0xff]
          %v3497 = vld [vmem:[%s222 + $0x278] sm:$0xff]
          %v3498 = vld [vmem:[%s222 + $0x280] sm:$0xff]
          %v3499 = vld [vmem:[%s222 + $0x288] sm:$0xff]
          %v3500 = vld [vmem:[%s222 + $0x290] sm:$0xff]
          %v3501 = vld [vmem:[%s222 + $0x298] sm:$0xff]
          %v3502 = vld [vmem:[%s222 + $0x2a0] sm:$0xff]
          %v3503 = vld [vmem:[%s222 + $0x2a8] sm:$0xff]
          %v3504 = vld [vmem:[%s222 + $0x2b0] sm:$0xff]
          %v3505 = vld [vmem:[%s222 + $0x2b8] sm:$0xff]
          %v3506 = vld [vmem:[%s222 + $0x2c0] sm:$0xff]
          %v3507 = vld [vmem:[%s222 + $0x2c8] sm:$0xff]
          %v3508 = vld [vmem:[%s222 + $0x2d0] sm:$0xff]
          %v3509 = vld [vmem:[%s222 + $0x2d8] sm:$0xff]
          %v3510 = vld [vmem:[%s222 + $0x2e0] sm:$0xff]
          %v3511 = vld [vmem:[%s222 + $0x2e8] sm:$0xff]
          %v3512 = vld [vmem:[%s222 + $0x2f0] sm:$0xff]
          %v3513 = vld [vmem:[%s222 + $0x2f8] sm:$0xff]
          %v3514 = vld [vmem:[%s222 + $0x300] sm:$0xff]
          %v3515 = vld [vmem:[%s222 + $0x308] sm:$0xff]
          %v3516 = vld [vmem:[%s222 + $0x310] sm:$0xff]
          %v3517 = vld [vmem:[%s222 + $0x318] sm:$0xff]
          %v3518 = vld [vmem:[%s222 + $0x320] sm:$0xff]
          %v3519 = vld [vmem:[%s222 + $0x328] sm:$0xff]
          %v3520 = vld [vmem:[%s222 + $0x330] sm:$0xff]
          %v3521 = vld [vmem:[%s222 + $0x338] sm:$0xff]
          %v3522 = vld [vmem:[%s222 + $0x340] sm:$0xff]
          %v3523 = vld [vmem:[%s222 + $0x348] sm:$0xff]
          %v3524 = vld [vmem:[%s222 + $0x350] sm:$0xff]
          %v3525 = vld [vmem:[%s222 + $0x358] sm:$0xff]
          %v3526 = vld [vmem:[%s222 + $0x360] sm:$0xff]
          %v3527 = vld [vmem:[%s222 + $0x368] sm:$0xff]
          %v3528 = vld [vmem:[%s222 + $0x370] sm:$0xff]
          %v3529 = vld [vmem:[%s222 + $0x378] sm:$0xff]
          %v3530 = vld [vmem:[%s222 + $0x380] sm:$0xff]
          %v3531 = vld [vmem:[%s222 + $0x388] sm:$0xff]
          %v3532 = vld [vmem:[%s222 + $0x390] sm:$0xff]
          %v3533 = vld [vmem:[%s222 + $0x398] sm:$0xff]
          %v3534 = vld [vmem:[%s222 + $0x3a0] sm:$0xff]
          %v3535 = vld [vmem:[%s222 + $0x3a8] sm:$0xff]
          %v3536 = vld [vmem:[%s222 + $0x3b0] sm:$0xff]
          %v3537 = vld [vmem:[%s222 + $0x3b8] sm:$0xff]
          %v3538 = vld [vmem:[%s222 + $0x3c0] sm:$0xff]
          %v3539 = vld [vmem:[%s222 + $0x3c8] sm:$0xff]
          %v3540 = vld [vmem:[%s222 + $0x3d0] sm:$0xff]
          %v3541 = vld [vmem:[%s222 + $0x3d8] sm:$0xff]
          %v3542 = vld [vmem:[%s222 + $0x3e0] sm:$0xff]
          %v3543 = vld [vmem:[%s222 + $0x3e8] sm:$0xff]
          %v3544 = vld [vmem:[%s222 + $0x3f0] sm:$0xff]
          %v3545 = vld [vmem:[%s222 + $0x3f8] sm:$0xff]
          %v3546 = vld [vmem:[%s222 + $0x400] sm:$0xff]
          %v3547 = vld [vmem:[%s222 + $0x408] sm:$0xff]
          %v3548 = vld [vmem:[%s222 + $0x410] sm:$0xff]
          %v3549 = vld [vmem:[%s222 + $0x418] sm:$0xff]
          %v3550 = vld [vmem:[%s222 + $0x420] sm:$0xff]
          %v3551 = vld [vmem:[%s222 + $0x428] sm:$0xff]
          %v3552 = vld [vmem:[%s222 + $0x430] sm:$0xff]
          %v3553 = vld [vmem:[%s222 + $0x438] sm:$0xff]
          %v3554 = vld [vmem:[%s222 + $0x440] sm:$0xff]
          %v3555 = vld [vmem:[%s222 + $0x448] sm:$0xff]
          %v3556 = vld [vmem:[%s222 + $0x450] sm:$0xff]
          %v3557 = vld [vmem:[%s222 + $0x458] sm:$0xff]
          %v3558 = vld [vmem:[%s222 + $0x460] sm:$0xff]
          %v3559 = vld [vmem:[%s222 + $0x468] sm:$0xff]
          %v3560 = vld [vmem:[%s222 + $0x470] sm:$0xff]
          %v3561 = vld [vmem:[%s222 + $0x478] sm:$0xff]
          %v3562 = vld [vmem:[%s222 + $0x480] sm:$0xff]
          %v3563 = vld [vmem:[%s222 + $0x488] sm:$0xff]
          %v3564 = vld [vmem:[%s222 + $0x490] sm:$0xff]
          %v3565 = vld [vmem:[%s222 + $0x498] sm:$0xff]
          %v3566 = vld [vmem:[%s222 + $0x4a0] sm:$0xff]
          %v3567 = vld [vmem:[%s222 + $0x4a8] sm:$0xff]
          %v3568 = vld [vmem:[%s222 + $0x4b0] sm:$0xff]
          %v3569 = vld [vmem:[%s222 + $0x4b8] sm:$0xff]
          %v3570 = vld [vmem:[%s222 + $0x4c0] sm:$0xff]
          %v3571 = vld [vmem:[%s222 + $0x4c8] sm:$0xff]
          %v3572 = vld [vmem:[%s222 + $0x4d0] sm:$0xff]
          %v3573 = vld [vmem:[%s222 + $0x4d8] sm:$0xff]
          %v3574 = vld [vmem:[%s222 + $0x4e0] sm:$0xff]
          %v3575 = vld [vmem:[%s222 + $0x4e8] sm:$0xff]
          %v3576 = vld [vmem:[%s222 + $0x4f0] sm:$0xff]
          %v3577 = vld [vmem:[%s222 + $0x4f8] sm:$0xff]
          %v3578 = vld [vmem:[%s222 + $0x500] sm:$0xff]
          %v3579 = vld [vmem:[%s222 + $0x508] sm:$0xff]
          %v3580 = vld [vmem:[%s222 + $0x510] sm:$0xff]
          %v3581 = vld [vmem:[%s222 + $0x518] sm:$0xff]
          %v3582 = vld [vmem:[%s222 + $0x520] sm:$0xff]
          %v3583 = vld [vmem:[%s222 + $0x528] sm:$0xff]
          %v3584 = vld [vmem:[%s222 + $0x530] sm:$0xff]
          %v3585 = vld [vmem:[%s222 + $0x538] sm:$0xff]
          %v3586 = vld [vmem:[%s222 + $0x540] sm:$0xff]
          %v3587 = vld [vmem:[%s222 + $0x548] sm:$0xff]
          %v3588 = vld [vmem:[%s222 + $0x550] sm:$0xff]
          %v3589 = vld [vmem:[%s222 + $0x558] sm:$0xff]
          %v3590 = vld [vmem:[%s222 + $0x560] sm:$0xff]
          %v3591 = vld [vmem:[%s222 + $0x568] sm:$0xff]
          %v3592 = vld [vmem:[%s222 + $0x570] sm:$0xff]
          %v3593 = vld [vmem:[%s222 + $0x578] sm:$0xff]
          %v3594 = vld [vmem:[%s222 + $0x580] sm:$0xff]
          %v3595 = vld [vmem:[%s222 + $0x588] sm:$0xff]
          %v3596 = vld [vmem:[%s222 + $0x590] sm:$0xff]
          %v3597 = vld [vmem:[%s222 + $0x598] sm:$0xff]
          %v3598 = vld [vmem:[%s222 + $0x5a0] sm:$0xff]
          %v3599 = vld [vmem:[%s222 + $0x5a8] sm:$0xff]
          %v3600 = vld [vmem:[%s222 + $0x5b0] sm:$0xff]
          %v3601 = vld [vmem:[%s222 + $0x5b8] sm:$0xff]
          %v3602 = vld [vmem:[%s222 + $0x5c0] sm:$0xff]
          %v3603 = vld [vmem:[%s222 + $0x5c8] sm:$0xff]
          %v3604 = vld [vmem:[%s222 + $0x5d0] sm:$0xff]
          %v3605 = vld [vmem:[%s222 + $0x5d8] sm:$0xff]
          %v3606 = vld [vmem:[%s222 + $0x5e0] sm:$0xff]
          %v3607 = vld [vmem:[%s222 + $0x5e8] sm:$0xff]
          %v3608 = vld [vmem:[%s222 + $0x5f0] sm:$0xff]
          %v3609 = vld [vmem:[%s222 + $0x5f8] sm:$0xff]
          %v3610 = vld [vmem:[%s222 + $0x600] sm:$0xff]
          %v3611 = vld [vmem:[%s222 + $0x608] sm:$0xff]
          %v3612 = vld [vmem:[%s222 + $0x610] sm:$0xff]
          %v3613 = vld [vmem:[%s222 + $0x618] sm:$0xff]
          %v3614 = vld [vmem:[%s222 + $0x620] sm:$0xff]
          %v3615 = vld [vmem:[%s222 + $0x628] sm:$0xff]
          %v3616 = vld [vmem:[%s222 + $0x630] sm:$0xff]
          %v3617 = vld [vmem:[%s222 + $0x638] sm:$0xff]
          %v3618 = vld [vmem:[%s222 + $0x640] sm:$0xff]
          %v3619 = vld [vmem:[%s222 + $0x648] sm:$0xff]
          %v3620 = vld [vmem:[%s222 + $0x650] sm:$0xff]
          %v3621 = vld [vmem:[%s222 + $0x658] sm:$0xff]
          %v3622 = vld [vmem:[%s222 + $0x660] sm:$0xff]
          %v3623 = vld [vmem:[%s222 + $0x668] sm:$0xff]
          %v3624 = vld [vmem:[%s222 + $0x670] sm:$0xff]
          %v3625 = vld [vmem:[%s222 + $0x678] sm:$0xff]
          %v3626 = vld [vmem:[%s222 + $0x680] sm:$0xff]
          %v3627 = vld [vmem:[%s222 + $0x688] sm:$0xff]
          %v3628 = vld [vmem:[%s222 + $0x690] sm:$0xff]
          %v3629 = vld [vmem:[%s222 + $0x698] sm:$0xff]
          %v3630 = vld [vmem:[%s222 + $0x6a0] sm:$0xff]
          %v3631 = vld [vmem:[%s222 + $0x6a8] sm:$0xff]
          %v3632 = vld [vmem:[%s222 + $0x6b0] sm:$0xff]
          %v3633 = vld [vmem:[%s222 + $0x6b8] sm:$0xff]
          %v3634 = vld [vmem:[%s222 + $0x6c0] sm:$0xff]
          %v3635 = vld [vmem:[%s222 + $0x6c8] sm:$0xff]
          %v3636 = vld [vmem:[%s222 + $0x6d0] sm:$0xff]
          %v3637 = vld [vmem:[%s222 + $0x6d8] sm:$0xff]
          %v3638 = vld [vmem:[%s222 + $0x6e0] sm:$0xff]
          %v3639 = vld [vmem:[%s222 + $0x6e8] sm:$0xff]
          %v3640 = vld [vmem:[%s222 + $0x6f0] sm:$0xff]
          %v3641 = vld [vmem:[%s222 + $0x6f8] sm:$0xff]
          %v3642 = vld [vmem:[%s222 + $0x700] sm:$0xff]
          %v3643 = vld [vmem:[%s222 + $0x708] sm:$0xff]
          %v3644 = vld [vmem:[%s222 + $0x710] sm:$0xff]
          %v3645 = vld [vmem:[%s222 + $0x718] sm:$0xff]
          %v3646 = vld [vmem:[%s222 + $0x720] sm:$0xff]
          %v3647 = vld [vmem:[%s222 + $0x728] sm:$0xff]
          %v3648 = vld [vmem:[%s222 + $0x730] sm:$0xff]
          %v3649 = vld [vmem:[%s222 + $0x738] sm:$0xff]
          %v3650 = vld [vmem:[%s222 + $0x740] sm:$0xff]
          %v3651 = vld [vmem:[%s222 + $0x748] sm:$0xff]
          %v3652 = vld [vmem:[%s222 + $0x750] sm:$0xff]
          %v3653 = vld [vmem:[%s222 + $0x758] sm:$0xff]
          %v3654 = vld [vmem:[%s222 + $0x760] sm:$0xff]
          %v3655 = vld [vmem:[%s222 + $0x768] sm:$0xff]
          %v3656 = vld [vmem:[%s222 + $0x770] sm:$0xff]
          %v3657 = vld [vmem:[%s222 + $0x778] sm:$0xff]
          %v3658 = vld [vmem:[%s222 + $0x780] sm:$0xff]
          %v3659 = vld [vmem:[%s222 + $0x788] sm:$0xff]
          %v3660 = vld [vmem:[%s222 + $0x790] sm:$0xff]
          %v3661 = vld [vmem:[%s222 + $0x798] sm:$0xff]
          %v3662 = vld [vmem:[%s222 + $0x7a0] sm:$0xff]
          %v3663 = vld [vmem:[%s222 + $0x7a8] sm:$0xff]
          %v3664 = vld [vmem:[%s222 + $0x7b0] sm:$0xff]
          %v3665 = vld [vmem:[%s222 + $0x7b8] sm:$0xff]
          %v3666 = vld [vmem:[%s222 + $0x7c0] sm:$0xff]
          %v3667 = vld [vmem:[%s222 + $0x7c8] sm:$0xff]
          %v3668 = vld [vmem:[%s222 + $0x7d0] sm:$0xff]
          %v3669 = vld [vmem:[%s222 + $0x7d8] sm:$0xff]
          %v3670 = vld [vmem:[%s222 + $0x7e0] sm:$0xff]
          %v3671 = vld [vmem:[%s222 + $0x7e8] sm:$0xff]
          %v3672 = vld [vmem:[%s222 + $0x7f0] sm:$0xff]
          %v3673 = vld [vmem:[%s222 + $0x7f8] sm:$0xff]
          %v3674 = vadd.f32 %v3418, %v3419
          %v3675 = vadd.f32 %v3674, %v3420
          %v3676 = vadd.f32 %v3675, %v3421
          %v3677 = vadd.f32 %v3676, %v3422
          %v3678 = vadd.f32 %v3677, %v3423
          %v3679 = vadd.f32 %v3678, %v3424
          %v3680 = vadd.f32 %v3679, %v3425
          %v3681 = vadd.f32 %v3680, %v3426
          %v3682 = vadd.f32 %v3681, %v3427
          %v3683 = vadd.f32 %v3682, %v3428
          %v3684 = vadd.f32 %v3683, %v3429
          %v3685 = vadd.f32 %v3684, %v3430
          %v3686 = vadd.f32 %v3685, %v3431
          %v3687 = vadd.f32 %v3686, %v3432
          %v3688 = vadd.f32 %v3687, %v3433
          %v3689 = vadd.f32 %v3688, %v3434
          %v3690 = vadd.f32 %v3689, %v3435
          %v3691 = vadd.f32 %v3690, %v3436
          %v3692 = vadd.f32 %v3691, %v3437
          %v3693 = vadd.f32 %v3692, %v3438
          %v3694 = vadd.f32 %v3693, %v3439
          %v3695 = vadd.f32 %v3694, %v3440
          %v3696 = vadd.f32 %v3695, %v3441
          %v3697 = vadd.f32 %v3696, %v3442
          %v3698 = vadd.f32 %v3697, %v3443
          %v3699 = vadd.f32 %v3698, %v3444
          %v3700 = vadd.f32 %v3699, %v3445
          %v3701 = vadd.f32 %v3700, %v3446
          %v3702 = vadd.f32 %v3701, %v3447
          %v3703 = vadd.f32 %v3702, %v3448
          %v3704 = vadd.f32 %v3703, %v3449
          %v3705 = vadd.f32 %v3704, %v3450
          %v3706 = vadd.f32 %v3705, %v3451
          %v3707 = vadd.f32 %v3706, %v3452
          %v3708 = vadd.f32 %v3707, %v3453
          %v3709 = vadd.f32 %v3708, %v3454
          %v3710 = vadd.f32 %v3709, %v3455
          %v3711 = vadd.f32 %v3710, %v3456
          %v3712 = vadd.f32 %v3711, %v3457
          %v3713 = vadd.f32 %v3712, %v3458
          %v3714 = vadd.f32 %v3713, %v3459
          %v3715 = vadd.f32 %v3714, %v3460
          %v3716 = vadd.f32 %v3715, %v3461
          %v3717 = vadd.f32 %v3716, %v3462
          %v3718 = vadd.f32 %v3717, %v3463
          %v3719 = vadd.f32 %v3718, %v3464
          %v3720 = vadd.f32 %v3719, %v3465
          %v3721 = vadd.f32 %v3720, %v3466
          %v3722 = vadd.f32 %v3721, %v3467
          %v3723 = vadd.f32 %v3722, %v3468
          %v3724 = vadd.f32 %v3723, %v3469
          %v3725 = vadd.f32 %v3724, %v3470
          %v3726 = vadd.f32 %v3725, %v3471
          %v3727 = vadd.f32 %v3726, %v3472
          %v3728 = vadd.f32 %v3727, %v3473
          %v3729 = vadd.f32 %v3728, %v3474
          %v3730 = vadd.f32 %v3729, %v3475
          %v3731 = vadd.f32 %v3730, %v3476
          %v3732 = vadd.f32 %v3731, %v3477
          %v3733 = vadd.f32 %v3732, %v3478
          %v3734 = vadd.f32 %v3733, %v3479
          %v3735 = vadd.f32 %v3734, %v3480
          %v3736 = vadd.f32 %v3735, %v3481
          %v3737 = vadd.f32 %v3736, %v3482
          %v3738 = vadd.f32 %v3737, %v3483
          %v3739 = vadd.f32 %v3738, %v3484
          %v3740 = vadd.f32 %v3739, %v3485
          %v3741 = vadd.f32 %v3740, %v3486
          %v3742 = vadd.f32 %v3741, %v3487
          %v3743 = vadd.f32 %v3742, %v3488
          %v3744 = vadd.f32 %v3743, %v3489
          %v3745 = vadd.f32 %v3744, %v3490
          %v3746 = vadd.f32 %v3745, %v3491
          %v3747 = vadd.f32 %v3746, %v3492
          %v3748 = vadd.f32 %v3747, %v3493
          %v3749 = vadd.f32 %v3748, %v3494
          %v3750 = vadd.f32 %v3749, %v3495
          %v3751 = vadd.f32 %v3750, %v3496
          %v3752 = vadd.f32 %v3751, %v3497
          %v3753 = vadd.f32 %v3752, %v3498
          %v3754 = vadd.f32 %v3753, %v3499
          %v3755 = vadd.f32 %v3754, %v3500
          %v3756 = vadd.f32 %v3755, %v3501
          %v3757 = vadd.f32 %v3756, %v3502
          %v3758 = vadd.f32 %v3757, %v3503
          %v3759 = vadd.f32 %v3758, %v3504
          %v3760 = vadd.f32 %v3759, %v3505
          %v3761 = vadd.f32 %v3760, %v3506
          %v3762 = vadd.f32 %v3761, %v3507
          %v3763 = vadd.f32 %v3762, %v3508
          %v3764 = vadd.f32 %v3763, %v3509
          %v3765 = vadd.f32 %v3764, %v3510
          %v3766 = vadd.f32 %v3765, %v3511
          %v3767 = vadd.f32 %v3766, %v3512
          %v3768 = vadd.f32 %v3767, %v3513
          %v3769 = vadd.f32 %v3768, %v3514
          %v3770 = vadd.f32 %v3769, %v3515
          %v3771 = vadd.f32 %v3770, %v3516
          %v3772 = vadd.f32 %v3771, %v3517
          %v3773 = vadd.f32 %v3772, %v3518
          %v3774 = vadd.f32 %v3773, %v3519
          %v3775 = vadd.f32 %v3774, %v3520
          %v3776 = vadd.f32 %v3775, %v3521
          %v3777 = vadd.f32 %v3776, %v3522
          %v3778 = vadd.f32 %v3777, %v3523
          %v3779 = vadd.f32 %v3778, %v3524
          %v3780 = vadd.f32 %v3779, %v3525
          %v3781 = vadd.f32 %v3780, %v3526
          %v3782 = vadd.f32 %v3781, %v3527
          %v3783 = vadd.f32 %v3782, %v3528
          %v3784 = vadd.f32 %v3783, %v3529
          %v3785 = vadd.f32 %v3784, %v3530
          %v3786 = vadd.f32 %v3785, %v3531
          %v3787 = vadd.f32 %v3786, %v3532
          %v3788 = vadd.f32 %v3787, %v3533
          %v3789 = vadd.f32 %v3788, %v3534
          %v3790 = vadd.f32 %v3789, %v3535
          %v3791 = vadd.f32 %v3790, %v3536
          %v3792 = vadd.f32 %v3791, %v3537
          %v3793 = vadd.f32 %v3792, %v3538
          %v3794 = vadd.f32 %v3793, %v3539
          %v3795 = vadd.f32 %v3794, %v3540
          %v3796 = vadd.f32 %v3795, %v3541
          %v3797 = vadd.f32 %v3796, %v3542
          %v3798 = vadd.f32 %v3797, %v3543
          %v3799 = vadd.f32 %v3798, %v3544
          %v3800 = vadd.f32 %v3799, %v3545
          %v3801 = vadd.f32 %v3800, %v3546
          %v3802 = vadd.f32 %v3801, %v3547
          %v3803 = vadd.f32 %v3802, %v3548
          %v3804 = vadd.f32 %v3803, %v3549
          %v3805 = vadd.f32 %v3804, %v3550
          %v3806 = vadd.f32 %v3805, %v3551
          %v3807 = vadd.f32 %v3806, %v3552
          %v3808 = vadd.f32 %v3807, %v3553
          %v3809 = vadd.f32 %v3808, %v3554
          %v3810 = vadd.f32 %v3809, %v3555
          %v3811 = vadd.f32 %v3810, %v3556
          %v3812 = vadd.f32 %v3811, %v3557
          %v3813 = vadd.f32 %v3812, %v3558
          %v3814 = vadd.f32 %v3813, %v3559
          %v3815 = vadd.f32 %v3814, %v3560
          %v3816 = vadd.f32 %v3815, %v3561
          %v3817 = vadd.f32 %v3816, %v3562
          %v3818 = vadd.f32 %v3817, %v3563
          %v3819 = vadd.f32 %v3818, %v3564
          %v3820 = vadd.f32 %v3819, %v3565
          %v3821 = vadd.f32 %v3820, %v3566
          %v3822 = vadd.f32 %v3821, %v3567
          %v3823 = vadd.f32 %v3822, %v3568
          %v3824 = vadd.f32 %v3823, %v3569
          %v3825 = vadd.f32 %v3824, %v3570
          %v3826 = vadd.f32 %v3825, %v3571
          %v3827 = vadd.f32 %v3826, %v3572
          %v3828 = vadd.f32 %v3827, %v3573
          %v3829 = vadd.f32 %v3828, %v3574
          %v3830 = vadd.f32 %v3829, %v3575
          %v3831 = vadd.f32 %v3830, %v3576
          %v3832 = vadd.f32 %v3831, %v3577
          %v3833 = vadd.f32 %v3832, %v3578
          %v3834 = vadd.f32 %v3833, %v3579
          %v3835 = vadd.f32 %v3834, %v3580
          %v3836 = vadd.f32 %v3835, %v3581
          %v3837 = vadd.f32 %v3836, %v3582
          %v3838 = vadd.f32 %v3837, %v3583
          %v3839 = vadd.f32 %v3838, %v3584
          %v3840 = vadd.f32 %v3839, %v3585
          %v3841 = vadd.f32 %v3840, %v3586
          %v3842 = vadd.f32 %v3841, %v3587
          %v3843 = vadd.f32 %v3842, %v3588
          %v3844 = vadd.f32 %v3843, %v3589
          %v3845 = vadd.f32 %v3844, %v3590
          %v3846 = vadd.f32 %v3845, %v3591
          %v3847 = vadd.f32 %v3846, %v3592
          %v3848 = vadd.f32 %v3847, %v3593
          %v3849 = vadd.f32 %v3848, %v3594
          %v3850 = vadd.f32 %v3849, %v3595
          %v3851 = vadd.f32 %v3850, %v3596
          %v3852 = vadd.f32 %v3851, %v3597
          %v3853 = vadd.f32 %v3852, %v3598
          %v3854 = vadd.f32 %v3853, %v3599
          %v3855 = vadd.f32 %v3854, %v3600
          %v3856 = vadd.f32 %v3855, %v3601
          %v3857 = vadd.f32 %v3856, %v3602
          %v3858 = vadd.f32 %v3857, %v3603
          %v3859 = vadd.f32 %v3858, %v3604
          %v3860 = vadd.f32 %v3859, %v3605
          %v3861 = vadd.f32 %v3860, %v3606
          %v3862 = vadd.f32 %v3861, %v3607
          %v3863 = vadd.f32 %v3862, %v3608
          %v3864 = vadd.f32 %v3863, %v3609
          %v3865 = vadd.f32 %v3864, %v3610
          %v3866 = vadd.f32 %v3865, %v3611
          %v3867 = vadd.f32 %v3866, %v3612
          %v3868 = vadd.f32 %v3867, %v3613
          %v3869 = vadd.f32 %v3868, %v3614
          %v3870 = vadd.f32 %v3869, %v3615
          %v3871 = vadd.f32 %v3870, %v3616
          %v3872 = vadd.f32 %v3871, %v3617
          %v3873 = vadd.f32 %v3872, %v3618
          %v3874 = vadd.f32 %v3873, %v3619
          %v3875 = vadd.f32 %v3874, %v3620
          %v3876 = vadd.f32 %v3875, %v3621
          %v3877 = vadd.f32 %v3876, %v3622
          %v3878 = vadd.f32 %v3877, %v3623
          %v3879 = vadd.f32 %v3878, %v3624
          %v3880 = vadd.f32 %v3879, %v3625
          %v3881 = vadd.f32 %v3880, %v3626
          %v3882 = vadd.f32 %v3881, %v3627
          %v3883 = vadd.f32 %v3882, %v3628
          %v3884 = vadd.f32 %v3883, %v3629
          %v3885 = vadd.f32 %v3884, %v3630
          %v3886 = vadd.f32 %v3885, %v3631
          %v3887 = vadd.f32 %v3886, %v3632
          %v3888 = vadd.f32 %v3887, %v3633
          %v3889 = vadd.f32 %v3888, %v3634
          %v3890 = vadd.f32 %v3889, %v3635
          %v3891 = vadd.f32 %v3890, %v3636
          %v3892 = vadd.f32 %v3891, %v3637
          %v3893 = vadd.f32 %v3892, %v3638
          %v3894 = vadd.f32 %v3893, %v3639
          %v3895 = vadd.f32 %v3894, %v3640
          %v3896 = vadd.f32 %v3895, %v3641
          %v3897 = vadd.f32 %v3896, %v3642
          %v3898 = vadd.f32 %v3897, %v3643
          %v3899 = vadd.f32 %v3898, %v3644
          %v3900 = vadd.f32 %v3899, %v3645
          %v3901 = vadd.f32 %v3900, %v3646
          %v3902 = vadd.f32 %v3901, %v3647
          %v3903 = vadd.f32 %v3902, %v3648
          %v3904 = vadd.f32 %v3903, %v3649
          %v3905 = vadd.f32 %v3904, %v3650
          %v3906 = vadd.f32 %v3905, %v3651
          %v3907 = vadd.f32 %v3906, %v3652
          %v3908 = vadd.f32 %v3907, %v3653
          %v3909 = vadd.f32 %v3908, %v3654
          %v3910 = vadd.f32 %v3909, %v3655
          %v3911 = vadd.f32 %v3910, %v3656
          %v3912 = vadd.f32 %v3911, %v3657
          %v3913 = vadd.f32 %v3912, %v3658
          %v3914 = vadd.f32 %v3913, %v3659
          %v3915 = vadd.f32 %v3914, %v3660
          %v3916 = vadd.f32 %v3915, %v3661
          %v3917 = vadd.f32 %v3916, %v3662
          %v3918 = vadd.f32 %v3917, %v3663
          %v3919 = vadd.f32 %v3918, %v3664
          %v3920 = vadd.f32 %v3919, %v3665
          %v3921 = vadd.f32 %v3920, %v3666
          %v3922 = vadd.f32 %v3921, %v3667
          %v3923 = vadd.f32 %v3922, %v3668
          %v3924 = vadd.f32 %v3923, %v3669
          %v3925 = vadd.f32 %v3924, %v3670
          %v3926 = vadd.f32 %v3925, %v3671
          %v3927 = vadd.f32 %v3926, %v3672
          %v3928 = vadd.f32 %v3927, %v3673
          %v3929 = vrot.slane %v3928, 4
          %v3930 = vadd.f32 %v3928, %v3929
          %v3931 = vrot.slane %v3930, 2
          %v3932 = vadd.f32 %v3930, %v3931
          %v3933 = vrot.slane %v3932, 1
          %v3934 = vadd.f32 %v3932, %v3933
          %3935 = vst [vmem:[%s229] sm:$0x1] %v3934
          %v3936 = vmul.f32 %v3418, %v3418
          %v3937 = vmul.f32 %v3419, %v3419
          %v3938 = vmul.f32 %v3420, %v3420
          %v3939 = vmul.f32 %v3421, %v3421
          %v3940 = vmul.f32 %v3422, %v3422
          %v3941 = vmul.f32 %v3423, %v3423
          %v3942 = vmul.f32 %v3424, %v3424
          %v3943 = vmul.f32 %v3425, %v3425
          %v3944 = vmul.f32 %v3426, %v3426
          %v3945 = vmul.f32 %v3427, %v3427
          %v3946 = vmul.f32 %v3428, %v3428
          %v3947 = vmul.f32 %v3429, %v3429
          %v3948 = vmul.f32 %v3430, %v3430
          %v3949 = vmul.f32 %v3431, %v3431
          %v3950 = vmul.f32 %v3432, %v3432
          %v3951 = vmul.f32 %v3433, %v3433
          %v3952 = vmul.f32 %v3434, %v3434
          %v3953 = vmul.f32 %v3435, %v3435
          %v3954 = vmul.f32 %v3436, %v3436
          %v3955 = vmul.f32 %v3437, %v3437
          %v3956 = vmul.f32 %v3438, %v3438
          %v3957 = vmul.f32 %v3439, %v3439
          %v3958 = vmul.f32 %v3440, %v3440
          %v3959 = vmul.f32 %v3441, %v3441
          %v3960 = vmul.f32 %v3442, %v3442
          %v3961 = vmul.f32 %v3443, %v3443
          %v3962 = vmul.f32 %v3444, %v3444
          %v3963 = vmul.f32 %v3445, %v3445
          %v3964 = vmul.f32 %v3446, %v3446
          %v3965 = vmul.f32 %v3447, %v3447
          %v3966 = vmul.f32 %v3448, %v3448
          %v3967 = vmul.f32 %v3449, %v3449
          %v3968 = vmul.f32 %v3450, %v3450
          %v3969 = vmul.f32 %v3451, %v3451
          %v3970 = vmul.f32 %v3452, %v3452
          %v3971 = vmul.f32 %v3453, %v3453
          %v3972 = vmul.f32 %v3454, %v3454
          %v3973 = vmul.f32 %v3455, %v3455
          %v3974 = vmul.f32 %v3456, %v3456
          %v3975 = vmul.f32 %v3457, %v3457
          %v3976 = vmul.f32 %v3458, %v3458
          %v3977 = vmul.f32 %v3459, %v3459
          %v3978 = vmul.f32 %v3460, %v3460
          %v3979 = vmul.f32 %v3461, %v3461
          %v3980 = vmul.f32 %v3462, %v3462
          %v3981 = vmul.f32 %v3463, %v3463
          %v3982 = vmul.f32 %v3464, %v3464
          %v3983 = vmul.f32 %v3465, %v3465
          %v3984 = vmul.f32 %v3466, %v3466
          %v3985 = vmul.f32 %v3467, %v3467
          %v3986 = vmul.f32 %v3468, %v3468
          %v3987 = vmul.f32 %v3469, %v3469
          %v3988 = vmul.f32 %v3470, %v3470
          %v3989 = vmul.f32 %v3471, %v3471
          %v3990 = vmul.f32 %v3472, %v3472
          %v3991 = vmul.f32 %v3473, %v3473
          %v3992 = vmul.f32 %v3474, %v3474
          %v3993 = vmul.f32 %v3475, %v3475
          %v3994 = vmul.f32 %v3476, %v3476
          %v3995 = vmul.f32 %v3477, %v3477
          %v3996 = vmul.f32 %v3478, %v3478
          %v3997 = vmul.f32 %v3479, %v3479
          %v3998 = vmul.f32 %v3480, %v3480
          %v3999 = vmul.f32 %v3481, %v3481
          %v4000 = vmul.f32 %v3482, %v3482
          %v4001 = vmul.f32 %v3483, %v3483
          %v4002 = vmul.f32 %v3484, %v3484
          %v4003 = vmul.f32 %v3485, %v3485
          %v4004 = vmul.f32 %v3486, %v3486
          %v4005 = vmul.f32 %v3487, %v3487
          %v4006 = vmul.f32 %v3488, %v3488
          %v4007 = vmul.f32 %v3489, %v3489
          %v4008 = vmul.f32 %v3490, %v3490
          %v4009 = vmul.f32 %v3491, %v3491
          %v4010 = vmul.f32 %v3492, %v3492
          %v4011 = vmul.f32 %v3493, %v3493
          %v4012 = vmul.f32 %v3494, %v3494
          %v4013 = vmul.f32 %v3495, %v3495
          %v4014 = vmul.f32 %v3496, %v3496
          %v4015 = vmul.f32 %v3497, %v3497
          %v4016 = vmul.f32 %v3498, %v3498
          %v4017 = vmul.f32 %v3499, %v3499
          %v4018 = vmul.f32 %v3500, %v3500
          %v4019 = vmul.f32 %v3501, %v3501
          %v4020 = vmul.f32 %v3502, %v3502
          %v4021 = vmul.f32 %v3503, %v3503
          %v4022 = vmul.f32 %v3504, %v3504
          %v4023 = vmul.f32 %v3505, %v3505
          %v4024 = vmul.f32 %v3506, %v3506
          %v4025 = vmul.f32 %v3507, %v3507
          %v4026 = vmul.f32 %v3508, %v3508
          %v4027 = vmul.f32 %v3509, %v3509
          %v4028 = vmul.f32 %v3510, %v3510
          %v4029 = vmul.f32 %v3511, %v3511
          %v4030 = vmul.f32 %v3512, %v3512
          %v4031 = vmul.f32 %v3513, %v3513
          %v4032 = vmul.f32 %v3514, %v3514
          %v4033 = vmul.f32 %v3515, %v3515
          %v4034 = vmul.f32 %v3516, %v3516
          %v4035 = vmul.f32 %v3517, %v3517
          %v4036 = vmul.f32 %v3518, %v3518
          %v4037 = vmul.f32 %v3519, %v3519
          %v4038 = vmul.f32 %v3520, %v3520
          %v4039 = vmul.f32 %v3521, %v3521
          %v4040 = vmul.f32 %v3522, %v3522
          %v4041 = vmul.f32 %v3523, %v3523
          %v4042 = vmul.f32 %v3524, %v3524
          %v4043 = vmul.f32 %v3525, %v3525
          %v4044 = vmul.f32 %v3526, %v3526
          %v4045 = vmul.f32 %v3527, %v3527
          %v4046 = vmul.f32 %v3528, %v3528
          %v4047 = vmul.f32 %v3529, %v3529
          %v4048 = vmul.f32 %v3530, %v3530
          %v4049 = vmul.f32 %v3531, %v3531
          %v4050 = vmul.f32 %v3532, %v3532
          %v4051 = vmul.f32 %v3533, %v3533
          %v4052 = vmul.f32 %v3534, %v3534
          %v4053 = vmul.f32 %v3535, %v3535
          %v4054 = vmul.f32 %v3536, %v3536
          %v4055 = vmul.f32 %v3537, %v3537
          %v4056 = vmul.f32 %v3538, %v3538
          %v4057 = vmul.f32 %v3539, %v3539
          %v4058 = vmul.f32 %v3540, %v3540
          %v4059 = vmul.f32 %v3541, %v3541
          %v4060 = vmul.f32 %v3542, %v3542
          %v4061 = vmul.f32 %v3543, %v3543
          %v4062 = vmul.f32 %v3544, %v3544
          %v4063 = vmul.f32 %v3545, %v3545
          %v4064 = vmul.f32 %v3546, %v3546
          %v4065 = vmul.f32 %v3547, %v3547
          %v4066 = vmul.f32 %v3548, %v3548
          %v4067 = vmul.f32 %v3549, %v3549
          %v4068 = vmul.f32 %v3550, %v3550
          %v4069 = vmul.f32 %v3551, %v3551
          %v4070 = vmul.f32 %v3552, %v3552
          %v4071 = vmul.f32 %v3553, %v3553
          %v4072 = vmul.f32 %v3554, %v3554
          %v4073 = vmul.f32 %v3555, %v3555
          %v4074 = vmul.f32 %v3556, %v3556
          %v4075 = vmul.f32 %v3557, %v3557
          %v4076 = vmul.f32 %v3558, %v3558
          %v4077 = vmul.f32 %v3559, %v3559
          %v4078 = vmul.f32 %v3560, %v3560
          %v4079 = vmul.f32 %v3561, %v3561
          %v4080 = vmul.f32 %v3562, %v3562
          %v4081 = vmul.f32 %v3563, %v3563
          %v4082 = vmul.f32 %v3564, %v3564
          %v4083 = vmul.f32 %v3565, %v3565
          %v4084 = vmul.f32 %v3566, %v3566
          %v4085 = vmul.f32 %v3567, %v3567
          %v4086 = vmul.f32 %v3568, %v3568
          %v4087 = vmul.f32 %v3569, %v3569
          %v4088 = vmul.f32 %v3570, %v3570
          %v4089 = vmul.f32 %v3571, %v3571
          %v4090 = vmul.f32 %v3572, %v3572
          %v4091 = vmul.f32 %v3573, %v3573
          %v4092 = vmul.f32 %v3574, %v3574
          %v4093 = vmul.f32 %v3575, %v3575
          %v4094 = vmul.f32 %v3576, %v3576
          %v4095 = vmul.f32 %v3577, %v3577
          %v4096 = vmul.f32 %v3578, %v3578
          %v4097 = vmul.f32 %v3579, %v3579
          %v4098 = vmul.f32 %v3580, %v3580
          %v4099 = vmul.f32 %v3581, %v3581
          %v4100 = vmul.f32 %v3582, %v3582
          %v4101 = vmul.f32 %v3583, %v3583
          %v4102 = vmul.f32 %v3584, %v3584
          %v4103 = vmul.f32 %v3585, %v3585
          %v4104 = vmul.f32 %v3586, %v3586
          %v4105 = vmul.f32 %v3587, %v3587
          %v4106 = vmul.f32 %v3588, %v3588
          %v4107 = vmul.f32 %v3589, %v3589
          %v4108 = vmul.f32 %v3590, %v3590
          %v4109 = vmul.f32 %v3591, %v3591
          %v4110 = vmul.f32 %v3592, %v3592
          %v4111 = vmul.f32 %v3593, %v3593
          %v4112 = vmul.f32 %v3594, %v3594
          %v4113 = vmul.f32 %v3595, %v3595
          %v4114 = vmul.f32 %v3596, %v3596
          %v4115 = vmul.f32 %v3597, %v3597
          %v4116 = vmul.f32 %v3598, %v3598
          %v4117 = vmul.f32 %v3599, %v3599
          %v4118 = vmul.f32 %v3600, %v3600
          %v4119 = vmul.f32 %v3601, %v3601
          %v4120 = vmul.f32 %v3602, %v3602
          %v4121 = vmul.f32 %v3603, %v3603
          %v4122 = vmul.f32 %v3604, %v3604
          %v4123 = vmul.f32 %v3605, %v3605
          %v4124 = vmul.f32 %v3606, %v3606
          %v4125 = vmul.f32 %v3607, %v3607
          %v4126 = vmul.f32 %v3608, %v3608
          %v4127 = vmul.f32 %v3609, %v3609
          %v4128 = vmul.f32 %v3610, %v3610
          %v4129 = vmul.f32 %v3611, %v3611
          %v4130 = vmul.f32 %v3612, %v3612
          %v4131 = vmul.f32 %v3613, %v3613
          %v4132 = vmul.f32 %v3614, %v3614
          %v4133 = vmul.f32 %v3615, %v3615
          %v4134 = vmul.f32 %v3616, %v3616
          %v4135 = vmul.f32 %v3617, %v3617
          %v4136 = vmul.f32 %v3618, %v3618
          %v4137 = vmul.f32 %v3619, %v3619
          %v4138 = vmul.f32 %v3620, %v3620
          %v4139 = vmul.f32 %v3621, %v3621
          %v4140 = vmul.f32 %v3622, %v3622
          %v4141 = vmul.f32 %v3623, %v3623
          %v4142 = vmul.f32 %v3624, %v3624
          %v4143 = vmul.f32 %v3625, %v3625
          %v4144 = vmul.f32 %v3626, %v3626
          %v4145 = vmul.f32 %v3627, %v3627
          %v4146 = vmul.f32 %v3628, %v3628
          %v4147 = vmul.f32 %v3629, %v3629
          %v4148 = vmul.f32 %v3630, %v3630
          %v4149 = vmul.f32 %v3631, %v3631
          %v4150 = vmul.f32 %v3632, %v3632
          %v4151 = vmul.f32 %v3633, %v3633
          %v4152 = vmul.f32 %v3634, %v3634
          %v4153 = vmul.f32 %v3635, %v3635
          %v4154 = vmul.f32 %v3636, %v3636
          %v4155 = vmul.f32 %v3637, %v3637
          %v4156 = vmul.f32 %v3638, %v3638
          %v4157 = vmul.f32 %v3639, %v3639
          %v4158 = vmul.f32 %v3640, %v3640
          %v4159 = vmul.f32 %v3641, %v3641
          %v4160 = vmul.f32 %v3642, %v3642
          %v4161 = vmul.f32 %v3643, %v3643
          %v4162 = vmul.f32 %v3644, %v3644
          %v4163 = vmul.f32 %v3645, %v3645
          %v4164 = vmul.f32 %v3646, %v3646
          %v4165 = vmul.f32 %v3647, %v3647
          %v4166 = vmul.f32 %v3648, %v3648
          %v4167 = vmul.f32 %v3649, %v3649
          %v4168 = vmul.f32 %v3650, %v3650
          %v4169 = vmul.f32 %v3651, %v3651
          %v4170 = vmul.f32 %v3652, %v3652
          %v4171 = vmul.f32 %v3653, %v3653
          %v4172 = vmul.f32 %v3654, %v3654
          %v4173 = vmul.f32 %v3655, %v3655
          %v4174 = vmul.f32 %v3656, %v3656
          %v4175 = vmul.f32 %v3657, %v3657
          %v4176 = vmul.f32 %v3658, %v3658
          %v4177 = vmul.f32 %v3659, %v3659
          %v4178 = vmul.f32 %v3660, %v3660
          %v4179 = vmul.f32 %v3661, %v3661
          %v4180 = vmul.f32 %v3662, %v3662
          %v4181 = vmul.f32 %v3663, %v3663
          %v4182 = vmul.f32 %v3664, %v3664
          %v4183 = vmul.f32 %v3665, %v3665
          %v4184 = vmul.f32 %v3666, %v3666
          %v4185 = vmul.f32 %v3667, %v3667
          %v4186 = vmul.f32 %v3668, %v3668
          %v4187 = vmul.f32 %v3669, %v3669
          %v4188 = vmul.f32 %v3670, %v3670
          %v4189 = vmul.f32 %v3671, %v3671
          %v4190 = vmul.f32 %v3672, %v3672
          %v4191 = vmul.f32 %v3673, %v3673
          %v4192 = vadd.f32 %v3936, %v3937
          %v4193 = vadd.f32 %v4192, %v3938
          %v4194 = vadd.f32 %v4193, %v3939
          %v4195 = vadd.f32 %v4194, %v3940
          %v4196 = vadd.f32 %v4195, %v3941
          %v4197 = vadd.f32 %v4196, %v3942
          %v4198 = vadd.f32 %v4197, %v3943
          %v4199 = vadd.f32 %v4198, %v3944
          %v4200 = vadd.f32 %v4199, %v3945
          %v4201 = vadd.f32 %v4200, %v3946
          %v4202 = vadd.f32 %v4201, %v3947
          %v4203 = vadd.f32 %v4202, %v3948
          %v4204 = vadd.f32 %v4203, %v3949
          %v4205 = vadd.f32 %v4204, %v3950
          %v4206 = vadd.f32 %v4205, %v3951
          %v4207 = vadd.f32 %v4206, %v3952
          %v4208 = vadd.f32 %v4207, %v3953
          %v4209 = vadd.f32 %v4208, %v3954
          %v4210 = vadd.f32 %v4209, %v3955
          %v4211 = vadd.f32 %v4210, %v3956
          %v4212 = vadd.f32 %v4211, %v3957
          %v4213 = vadd.f32 %v4212, %v3958
          %v4214 = vadd.f32 %v4213, %v3959
          %v4215 = vadd.f32 %v4214, %v3960
          %v4216 = vadd.f32 %v4215, %v3961
          %v4217 = vadd.f32 %v4216, %v3962
          %v4218 = vadd.f32 %v4217, %v3963
          %v4219 = vadd.f32 %v4218, %v3964
          %v4220 = vadd.f32 %v4219, %v3965
          %v4221 = vadd.f32 %v4220, %v3966
          %v4222 = vadd.f32 %v4221, %v3967
          %v4223 = vadd.f32 %v4222, %v3968
          %v4224 = vadd.f32 %v4223, %v3969
          %v4225 = vadd.f32 %v4224, %v3970
          %v4226 = vadd.f32 %v4225, %v3971
          %v4227 = vadd.f32 %v4226, %v3972
          %v4228 = vadd.f32 %v4227, %v3973
          %v4229 = vadd.f32 %v4228, %v3974
          %v4230 = vadd.f32 %v4229, %v3975
          %v4231 = vadd.f32 %v4230, %v3976
          %v4232 = vadd.f32 %v4231, %v3977
          %v4233 = vadd.f32 %v4232, %v3978
          %v4234 = vadd.f32 %v4233, %v3979
          %v4235 = vadd.f32 %v4234, %v3980
          %v4236 = vadd.f32 %v4235, %v3981
          %v4237 = vadd.f32 %v4236, %v3982
          %v4238 = vadd.f32 %v4237, %v3983
          %v4239 = vadd.f32 %v4238, %v3984
          %v4240 = vadd.f32 %v4239, %v3985
          %v4241 = vadd.f32 %v4240, %v3986
          %v4242 = vadd.f32 %v4241, %v3987
          %v4243 = vadd.f32 %v4242, %v3988
          %v4244 = vadd.f32 %v4243, %v3989
          %v4245 = vadd.f32 %v4244, %v3990
          %v4246 = vadd.f32 %v4245, %v3991
          %v4247 = vadd.f32 %v4246, %v3992
          %v4248 = vadd.f32 %v4247, %v3993
          %v4249 = vadd.f32 %v4248, %v3994
          %v4250 = vadd.f32 %v4249, %v3995
          %v4251 = vadd.f32 %v4250, %v3996
          %v4252 = vadd.f32 %v4251, %v3997
          %v4253 = vadd.f32 %v4252, %v3998
          %v4254 = vadd.f32 %v4253, %v3999
          %v4255 = vadd.f32 %v4254, %v4000
          %v4256 = vadd.f32 %v4255, %v4001
          %v4257 = vadd.f32 %v4256, %v4002
          %v4258 = vadd.f32 %v4257, %v4003
          %v4259 = vadd.f32 %v4258, %v4004
          %v4260 = vadd.f32 %v4259, %v4005
          %v4261 = vadd.f32 %v4260, %v4006
          %v4262 = vadd.f32 %v4261, %v4007
          %v4263 = vadd.f32 %v4262, %v4008
          %v4264 = vadd.f32 %v4263, %v4009
          %v4265 = vadd.f32 %v4264, %v4010
          %v4266 = vadd.f32 %v4265, %v4011
          %v4267 = vadd.f32 %v4266, %v4012
          %v4268 = vadd.f32 %v4267, %v4013
          %v4269 = vadd.f32 %v4268, %v4014
          %v4270 = vadd.f32 %v4269, %v4015
          %v4271 = vadd.f32 %v4270, %v4016
          %v4272 = vadd.f32 %v4271, %v4017
          %v4273 = vadd.f32 %v4272, %v4018
          %v4274 = vadd.f32 %v4273, %v4019
          %v4275 = vadd.f32 %v4274, %v4020
          %v4276 = vadd.f32 %v4275, %v4021
          %v4277 = vadd.f32 %v4276, %v4022
          %v4278 = vadd.f32 %v4277, %v4023
          %v4279 = vadd.f32 %v4278, %v4024
          %v4280 = vadd.f32 %v4279, %v4025
          %v4281 = vadd.f32 %v4280, %v4026
          %v4282 = vadd.f32 %v4281, %v4027
          %v4283 = vadd.f32 %v4282, %v4028
          %v4284 = vadd.f32 %v4283, %v4029
          %v4285 = vadd.f32 %v4284, %v4030
          %v4286 = vadd.f32 %v4285, %v4031
          %v4287 = vadd.f32 %v4286, %v4032
          %v4288 = vadd.f32 %v4287, %v4033
          %v4289 = vadd.f32 %v4288, %v4034
          %v4290 = vadd.f32 %v4289, %v4035
          %v4291 = vadd.f32 %v4290, %v4036
          %v4292 = vadd.f32 %v4291, %v4037
          %v4293 = vadd.f32 %v4292, %v4038
          %v4294 = vadd.f32 %v4293, %v4039
          %v4295 = vadd.f32 %v4294, %v4040
          %v4296 = vadd.f32 %v4295, %v4041
          %v4297 = vadd.f32 %v4296, %v4042
          %v4298 = vadd.f32 %v4297, %v4043
          %v4299 = vadd.f32 %v4298, %v4044
          %v4300 = vadd.f32 %v4299, %v4045
          %v4301 = vadd.f32 %v4300, %v4046
          %v4302 = vadd.f32 %v4301, %v4047
          %v4303 = vadd.f32 %v4302, %v4048
          %v4304 = vadd.f32 %v4303, %v4049
          %v4305 = vadd.f32 %v4304, %v4050
          %v4306 = vadd.f32 %v4305, %v4051
          %v4307 = vadd.f32 %v4306, %v4052
          %v4308 = vadd.f32 %v4307, %v4053
          %v4309 = vadd.f32 %v4308, %v4054
          %v4310 = vadd.f32 %v4309, %v4055
          %v4311 = vadd.f32 %v4310, %v4056
          %v4312 = vadd.f32 %v4311, %v4057
          %v4313 = vadd.f32 %v4312, %v4058
          %v4314 = vadd.f32 %v4313, %v4059
          %v4315 = vadd.f32 %v4314, %v4060
          %v4316 = vadd.f32 %v4315, %v4061
          %v4317 = vadd.f32 %v4316, %v4062
          %v4318 = vadd.f32 %v4317, %v4063
          %v4319 = vadd.f32 %v4318, %v4064
          %v4320 = vadd.f32 %v4319, %v4065
          %v4321 = vadd.f32 %v4320, %v4066
          %v4322 = vadd.f32 %v4321, %v4067
          %v4323 = vadd.f32 %v4322, %v4068
          %v4324 = vadd.f32 %v4323, %v4069
          %v4325 = vadd.f32 %v4324, %v4070
          %v4326 = vadd.f32 %v4325, %v4071
          %v4327 = vadd.f32 %v4326, %v4072
          %v4328 = vadd.f32 %v4327, %v4073
          %v4329 = vadd.f32 %v4328, %v4074
          %v4330 = vadd.f32 %v4329, %v4075
          %v4331 = vadd.f32 %v4330, %v4076
          %v4332 = vadd.f32 %v4331, %v4077
          %v4333 = vadd.f32 %v4332, %v4078
          %v4334 = vadd.f32 %v4333, %v4079
          %v4335 = vadd.f32 %v4334, %v4080
          %v4336 = vadd.f32 %v4335, %v4081
          %v4337 = vadd.f32 %v4336, %v4082
          %v4338 = vadd.f32 %v4337, %v4083
          %v4339 = vadd.f32 %v4338, %v4084
          %v4340 = vadd.f32 %v4339, %v4085
          %v4341 = vadd.f32 %v4340, %v4086
          %v4342 = vadd.f32 %v4341, %v4087
          %v4343 = vadd.f32 %v4342, %v4088
          %v4344 = vadd.f32 %v4343, %v4089
          %v4345 = vadd.f32 %v4344, %v4090
          %v4346 = vadd.f32 %v4345, %v4091
          %v4347 = vadd.f32 %v4346, %v4092
          %v4348 = vadd.f32 %v4347, %v4093
          %v4349 = vadd.f32 %v4348, %v4094
          %v4350 = vadd.f32 %v4349, %v4095
          %v4351 = vadd.f32 %v4350, %v4096
          %v4352 = vadd.f32 %v4351, %v4097
          %v4353 = vadd.f32 %v4352, %v4098
          %v4354 = vadd.f32 %v4353, %v4099
          %v4355 = vadd.f32 %v4354, %v4100
          %v4356 = vadd.f32 %v4355, %v4101
          %v4357 = vadd.f32 %v4356, %v4102
          %v4358 = vadd.f32 %v4357, %v4103
          %v4359 = vadd.f32 %v4358, %v4104
          %v4360 = vadd.f32 %v4359, %v4105
          %v4361 = vadd.f32 %v4360, %v4106
          %v4362 = vadd.f32 %v4361, %v4107
          %v4363 = vadd.f32 %v4362, %v4108
          %v4364 = vadd.f32 %v4363, %v4109
          %v4365 = vadd.f32 %v4364, %v4110
          %v4366 = vadd.f32 %v4365, %v4111
          %v4367 = vadd.f32 %v4366, %v4112
          %v4368 = vadd.f32 %v4367, %v4113
          %v4369 = vadd.f32 %v4368, %v4114
          %v4370 = vadd.f32 %v4369, %v4115
          %v4371 = vadd.f32 %v4370, %v4116
          %v4372 = vadd.f32 %v4371, %v4117
          %v4373 = vadd.f32 %v4372, %v4118
          %v4374 = vadd.f32 %v4373, %v4119
          %v4375 = vadd.f32 %v4374, %v4120
          %v4376 = vadd.f32 %v4375, %v4121
          %v4377 = vadd.f32 %v4376, %v4122
          %v4378 = vadd.f32 %v4377, %v4123
          %v4379 = vadd.f32 %v4378, %v4124
          %v4380 = vadd.f32 %v4379, %v4125
          %v4381 = vadd.f32 %v4380, %v4126
          %v4382 = vadd.f32 %v4381, %v4127
          %v4383 = vadd.f32 %v4382, %v4128
          %v4384 = vadd.f32 %v4383, %v4129
          %v4385 = vadd.f32 %v4384, %v4130
          %v4386 = vadd.f32 %v4385, %v4131
          %v4387 = vadd.f32 %v4386, %v4132
          %v4388 = vadd.f32 %v4387, %v4133
          %v4389 = vadd.f32 %v4388, %v4134
          %v4390 = vadd.f32 %v4389, %v4135
          %v4391 = vadd.f32 %v4390, %v4136
          %v4392 = vadd.f32 %v4391, %v4137
          %v4393 = vadd.f32 %v4392, %v4138
          %v4394 = vadd.f32 %v4393, %v4139
          %v4395 = vadd.f32 %v4394, %v4140
          %v4396 = vadd.f32 %v4395, %v4141
          %v4397 = vadd.f32 %v4396, %v4142
          %v4398 = vadd.f32 %v4397, %v4143
          %v4399 = vadd.f32 %v4398, %v4144
          %v4400 = vadd.f32 %v4399, %v4145
          %v4401 = vadd.f32 %v4400, %v4146
          %v4402 = vadd.f32 %v4401, %v4147
          %v4403 = vadd.f32 %v4402, %v4148
          %v4404 = vadd.f32 %v4403, %v4149
          %v4405 = vadd.f32 %v4404, %v4150
          %v4406 = vadd.f32 %v4405, %v4151
          %v4407 = vadd.f32 %v4406, %v4152
          %v4408 = vadd.f32 %v4407, %v4153
          %v4409 = vadd.f32 %v4408, %v4154
          %v4410 = vadd.f32 %v4409, %v4155
          %v4411 = vadd.f32 %v4410, %v4156
          %v4412 = vadd.f32 %v4411, %v4157
          %v4413 = vadd.f32 %v4412, %v4158
          %v4414 = vadd.f32 %v4413, %v4159
          %v4415 = vadd.f32 %v4414, %v4160
          %v4416 = vadd.f32 %v4415, %v4161
          %v4417 = vadd.f32 %v4416, %v4162
          %v4418 = vadd.f32 %v4417, %v4163
          %v4419 = vadd.f32 %v4418, %v4164
          %v4420 = vadd.f32 %v4419, %v4165
          %v4421 = vadd.f32 %v4420, %v4166
          %v4422 = vadd.f32 %v4421, %v4167
          %v4423 = vadd.f32 %v4422, %v4168
          %v4424 = vadd.f32 %v4423, %v4169
          %v4425 = vadd.f32 %v4424, %v4170
          %v4426 = vadd.f32 %v4425, %v4171
          %v4427 = vadd.f32 %v4426, %v4172
          %v4428 = vadd.f32 %v4427, %v4173
          %v4429 = vadd.f32 %v4428, %v4174
          %v4430 = vadd.f32 %v4429, %v4175
          %v4431 = vadd.f32 %v4430, %v4176
          %v4432 = vadd.f32 %v4431, %v4177
          %v4433 = vadd.f32 %v4432, %v4178
          %v4434 = vadd.f32 %v4433, %v4179
          %v4435 = vadd.f32 %v4434, %v4180
          %v4436 = vadd.f32 %v4435, %v4181
          %v4437 = vadd.f32 %v4436, %v4182
          %v4438 = vadd.f32 %v4437, %v4183
          %v4439 = vadd.f32 %v4438, %v4184
          %v4440 = vadd.f32 %v4439, %v4185
          %v4441 = vadd.f32 %v4440, %v4186
          %v4442 = vadd.f32 %v4441, %v4187
          %v4443 = vadd.f32 %v4442, %v4188
          %v4444 = vadd.f32 %v4443, %v4189
          %v4445 = vadd.f32 %v4444, %v4190
          %v4446 = vadd.f32 %v4445, %v4191
          %v4447 = vrot.slane %v4446, 4
          %v4448 = vadd.f32 %v4446, %v4447
          %v4449 = vrot.slane %v4448, 2
          %v4450 = vadd.f32 %v4448, %v4449
          %v4451 = vrot.slane %v4450, 1
          %v4452 = vadd.f32 %v4450, %v4451
          %4453 = vst [vmem:[%s229 + $0x1] sm:$0x1] %v4452
        $region48: #{tpu_custom_call.1} parent=27 // pred_fallthru
          _
        %s4454 = sand.u32 %s94, 1
        %s4455 = scalar_lea.sflag [#allocation4], %s4454
        %s4456 = sand.u32 %s94, 1
        %s4457 = smul.addr %s4456, 2048
        %s4458 = scalar_lea.vmem [#allocation7], %s4457
        %s4459 = sand.u32 %s120, 1
        %s4460 = scalar_lea.sflag [#allocation9], %s4459
        %s4461 = sand.u32 %s120, 1
        %s4462 = smul.addr %s4461, 8
        %s4463 = scalar_lea.vmem [#allocation8], %s4462
        // Predicated region
        $region49: #{tpu_custom_call.1} parent=27 // pred_check
          %p4464 = pneg %p104
        $region50: #{tpu_custom_call.1} parent=27 // pred_check_branch
          %4466 = sbr.rel (%p4464) target = $region52
        $region51: #{tpu_custom_call.1} parent=27 // pred_region
          %s4467 = smul.u32 256, %s29
          %s4469 = ssub.s32 32768, 32768
          %4470 = vsyncadd %s4455, %s4469
          %s4471 = smul.addr %s4467, 128
          %s4472 = scalar_lea.hbm %s2, %s4471
          %s4473 = sshll.u32 %s4458, 4
          %s4474 = int_to_ptr.vmem [resolvable:$true] %s4473
          %4479 = dma.vmem_to_hbm [thread:$0]  %s4474, 32768, %s4472, %s4455, 128, 128, 8
        $region52: #{tpu_custom_call.1} parent=27 // pred_fallthru
          _
        // Predicated region
        $region53: #{tpu_custom_call.1} parent=27 // pred_check
          %p4480 = pneg %p130
        $region54: #{tpu_custom_call.1} parent=27 // pred_check_branch
          %4482 = sbr.rel (%p4480) target = $region56
        $region55: #{tpu_custom_call.1} parent=27 // pred_region
          %s4484 = ssub.s32 128, 128
          %4485 = vsyncadd %s4460, %s4484
          %s4486 = smul.addr %s29, 128
          %s4487 = scalar_lea.hbm %s3, %s4486
          %s4489 = sshll.u32 %s4463, 4
          %s4490 = int_to_ptr.vmem [resolvable:$true] %s4489
          %4492 = dma.vmem_to_hbm [thread:$0]  %s4490, 128, %s4487, %s4460
        $region56: #{tpu_custom_call.1} parent=27 // pred_fallthru
          _
      $region28: #{tpu_custom_call.1} parent=5 // pred_fallthru
        _
      %p4493 = scmp.le.s32.totalorder 2, %s20
      // Predicated region
      $region57: #{tpu_custom_call.1} parent=5 // pred_check
        %p4494 = pneg %p4493
      $region58: #{tpu_custom_call.1} parent=5 // pred_check_branch
        %4496 = sbr.rel (%p4494) target = $region60
      $region59: #{tpu_custom_call.1} parent=5 // pred_region
        %s4497 = ssub.s32 %s20, 2
        // Predicated region
        $region61: #{tpu_custom_call.1} parent=59 // pred_check
          %p4498 = pneg %p110
        $region62: #{tpu_custom_call.1} parent=59 // pred_check_branch
          %4500 = sbr.rel (%p4498) target = $region64
        $region63: #{tpu_custom_call.1} parent=59 // pred_region
          %s4501 = sand.u32 %s95, 1
          %s4502 = scalar_lea.sflag [#allocation4], %s4501
          %s4503 = sand.u32 %s95, 1
          %s4504 = smul.addr %s4503, 2048
          %s4505 = scalar_lea.vmem [#allocation7], %s4504
          %4506 = dma.done %s4502, 32768
        $region64: #{tpu_custom_call.1} parent=59 // pred_fallthru
          _
        // Predicated region
        $region65: #{tpu_custom_call.1} parent=59 // pred_check
          %p4507 = pneg %p136
        $region66: #{tpu_custom_call.1} parent=59 // pred_check_branch
          %4509 = sbr.rel (%p4507) target = $region68
        $region67: #{tpu_custom_call.1} parent=59 // pred_region
          %s4510 = sand.u32 %s121, 1
          %s4511 = scalar_lea.sflag [#allocation9], %s4510
          %s4512 = sand.u32 %s121, 1
          %s4513 = smul.addr %s4512, 8
          %s4514 = scalar_lea.vmem [#allocation8], %s4513
          %4515 = dma.done %s4511, 128
        $region68: #{tpu_custom_call.1} parent=59 // pred_fallthru
          _
      $region60: #{tpu_custom_call.1} parent=5 // pred_fallthru
        _
    $region6: #{tpu_custom_call.1} parent=1 // loop_footer
      %s24 = sadd.s32 1, %s20
    $region7: #{tpu_custom_call.1} parent=1 // loop_footer_branch
      %19 = sbr.rel target = $region3
    $region8: #{tpu_custom_call.1} parent=1 // loop_exit
      _
    %4516 = vsyncpa [#allocation3], 1
    %s4517 = scalar_lea.sflag [#allocation3], 1
    %4518 = vsyncpa %s4517, 1
    %4519 = vsyncpa [#allocation6], 1
    %4520 = vsyncpa [#allocation4], 1
    %s4521 = scalar_lea.sflag [#allocation4], 1
    %4522 = vsyncpa %s4521, 1
    %4523 = vsyncpa [#allocation9], 1
    %s4524 = scalar_lea.sflag [#allocation9], 1
    %4525 = vsyncpa %s4524, 1

</llo_original>
